<compile_context>
chip_gen: v7x
topology: tpu7x:2x2x1
jax: 0.10.0
libtpu: 0.0.40
codegen_flags: <defaults>
</compile_context>

<pallas_src>
import functools

import jax
import jax.numpy as jnp
from jax import lax
from jax.experimental import pallas as pl
from jax.experimental.pallas import tpu as pltpu


def _round_up(x, m):
    return ((x + m - 1) // m) * m


# ---------------------------------------------------------------------------
# conv1: fused (patches @ W + b) -> LeakyReLU(0.2), M-tiled parallel grid
# ---------------------------------------------------------------------------
def _conv1_kernel(p_ref, w_ref, b_ref, o_ref):
    acc = jnp.dot(p_ref[...], w_ref[...], preferred_element_type=jnp.float32)
    acc = acc + b_ref[...]
    o_ref[...] = jnp.where(acc > 0, acc, 0.2 * acc)


def _conv1_matmul(patches, w, b):
    m, k = patches.shape
    n_out = w.shape[1]                         # 128 (lane-dense output slab)
    tm = min(512, _round_up(m, 8))             # tile rows: multiple of 8, <= 512
    m_pad = _round_up(m, tm)
    patches = jnp.pad(patches, ((0, m_pad - m), (0, 0)))
    cost = pl.CostEstimate(
        flops=2 * m_pad * k * n_out,
        transcendentals=0,
        bytes_accessed=4 * (m_pad * k + k * n_out + m_pad * n_out),
    )
    out = pl.pallas_call(
        _conv1_kernel,
        out_shape=jax.ShapeDtypeStruct((m_pad, n_out), jnp.float32),
        grid=(m_pad // tm,),
        in_specs=[
            pl.BlockSpec((tm, k), lambda i: (i, 0)),
            pl.BlockSpec((k, n_out), lambda i: (0, 0)),   # weights stay resident
            pl.BlockSpec((1, n_out), lambda i: (0, 0)),   # bias stays resident
        ],
        out_specs=pl.BlockSpec((tm, n_out), lambda i: (i, 0)),
        compiler_params=pltpu.CompilerParams(dimension_semantics=("parallel",)),
        cost_estimate=cost,
    )(patches, w, b)
    return out[:m]


# ---------------------------------------------------------------------------
# conv2: 4x4 conv as 16 shifted matmuls over the flat activation, fused sigmoid
# ---------------------------------------------------------------------------
def _conv2_kernel(a_ref, w_ref, b_ref, o_ref, *, wp, q):
    # a_ref: (1, R, 128) flat padded activation for one image (row = h*Wp + w)
    # w_ref: (16, 128, 128) per-tap weights, b_ref: (1, 128), o_ref: (1, Q, 128)
    cout = o_ref.shape[-1]
    acc = jnp.zeros((q, cout), jnp.float32)
    for kh in range(4):
        for kw in range(4):
            s = kh * wp + kw                      # static row shift for this tap
            acc = acc + jnp.dot(
                a_ref[0, s:s + q, :], w_ref[kh * 4 + kw],
                preferred_element_type=jnp.float32)
    acc = acc + b_ref[...]
    o_ref[0] = 1.0 / (1.0 + jnp.exp(-acc))        # sigmoid


def _conv2_sigmoid(a_flat, w_taps, b, wp, q):
    n, r, c = a_flat.shape
    cout = w_taps.shape[-1]                       # 128
    kernel = functools.partial(_conv2_kernel, wp=wp, q=q)
    cost = pl.CostEstimate(
        flops=2 * n * q * c * cout * 16,
        transcendentals=n * q * cout,
        bytes_accessed=4 * (n * r * c + 16 * c * cout + n * q * cout),
    )
    return pl.pallas_call(
        kernel,
        out_shape=jax.ShapeDtypeStruct((n, q, cout), jnp.float32),
        grid=(n,),
        in_specs=[
            pl.BlockSpec((1, r, c), lambda i: (i, 0, 0)),
            pl.BlockSpec((16, c, cout), lambda i: (0, 0, 0)),   # resident
            pl.BlockSpec((1, cout), lambda i: (0, 0)),          # resident
        ],
        out_specs=pl.BlockSpec((1, q, cout), lambda i: (i, 0, 0)),
        compiler_params=pltpu.CompilerParams(dimension_semantics=("parallel",)),
        cost_estimate=cost,
    )(a_flat, w_taps, b)


# ---------------------------------------------------------------------------
# host-side helpers
# ---------------------------------------------------------------------------
def _im2col(x_nchw, k, stride, pad):
    # (N, C, H, W) -> patches (N*Ho*Wo, k*k*C), column order (kh, kw, cin)
    n, c, h, w = x_nchw.shape
    xp = jnp.pad(x_nchw, ((0, 0), (0, 0), (pad, pad), (pad, pad)))
    hp, wp = h + 2 * pad, w + 2 * pad
    ho = (hp - k) // stride + 1
    wo = (wp - k) // stride + 1
    x_nhwc = jnp.transpose(xp, (0, 2, 3, 1))
    taps = []
    for i in range(k):
        for j in range(k):
            taps.append(
                x_nhwc[:, i:i + stride * ho:stride, j:j + stride * wo:stride, :])
    p = jnp.stack(taps, axis=3)                   # (N, Ho, Wo, k*k, C)
    return p.reshape(n * ho * wo, k * k * c), ho, wo


def _prep_conv1_weights(w1, b1):
    # PyTorch (64,1,4,4) OIHW -> (16, 64) -> lane-dense pad cout to 128
    cout, cin, kh, kw = w1.shape
    wm = jnp.transpose(w1, (2, 3, 1, 0)).reshape(kh * kw * cin, cout)
    wm = jnp.pad(wm, ((0, 0), (0, 128 - cout)))
    bm = jnp.pad(b1, (0, 128 - cout)).reshape(1, 128)
    return wm, bm


def _prep_conv2_weights(w2, b2):
    # PyTorch (1,64,4,4) OIHW -> per-tap (16, cin, cout) padded to (16, 128, 128)
    cout, cin, kh, kw = w2.shape
    wt = jnp.transpose(w2, (2, 3, 1, 0)).reshape(kh * kw, cin, cout)
    wt = jnp.pad(wt, ((0, 0), (0, 128 - cin), (0, 128 - cout)))
    bt = jnp.pad(b2, (0, 128 - cout)).reshape(1, 128)
    return wt, bt


def discriminator_forward(x, params):
    """x: (N, 1, H, W) float32; returns (N, 1, H', W') as in the PyTorch model."""
    w1, b1, w2, b2 = params
    n = x.shape[0]

    # --- conv1: Conv2d(1, 64, k4, s2, p1) + LeakyReLU(0.2), fused kernel ---
    p1, ho1, wo1 = _im2col(x, k=4, stride=2, pad=1)
    wm1, bm1 = _prep_conv1_weights(w1, b1)
    y1 = _conv1_matmul(p1, wm1, bm1)              # (N*ho1*wo1, 128); cols 64..127 == 0
    a1 = y1.reshape(n, ho1, wo1, 128)             # stays NHWC, no NCHW round trip

    # --- conv2: Conv2d(64, 1, k4, s1, p1) + Sigmoid, fused kernel ---
    hp, wp = ho1 + 2, wo1 + 2                     # spatial zero-pad of 1 (= conv padding)
    out_h, out_w = hp - 3, wp - 3                 # = ho1 - 1, wo1 - 1
    q = _round_up(out_h * wp, 8)                  # output rows per image (wide layout)
    r = q + _round_up(3 * wp + 4, 8)              # input rows incl. tap halo (>= hp*wp)
    a1p = jnp.pad(a1, ((0, 0), (1, 1), (1, 1), (0, 0)))
    a_flat = a1p.reshape(n, hp * wp, 128)
    a_flat = jnp.pad(a_flat, ((0, 0), (0, r - hp * wp), (0, 0)))

    wt2, bt2 = _prep_conv2_weights(w2, b2)
    yw = _conv2_sigmoid(a_flat, wt2, bt2, wp, q)  # (N, q, 128)

    # keep valid rows (ow < out_w) and the real output channel, back to NCHW
    out = yw[:, :out_h * wp, :].reshape(n, out_h, wp, 128)[:, :, :out_w, :1]
    return jnp.transpose(out, (0, 3, 1, 2))       # (N, 1, out_h, out_w)


def init_params(key):
    # Deterministic init matching PyTorch Conv2d default U(-1/sqrt(fan_in), +)
    k1, k2, k3, k4 = jax.random.split(key, 4)
    fan1 = 1 * 4 * 4
    w1 = jax.random.uniform(k1, (64, 1, 4, 4), jnp.float32, -1.0, 1.0) / jnp.sqrt(fan1)
    b1 = jax.random.uniform(k2, (64,), jnp.float32, -1.0, 1.0) / jnp.sqrt(fan1)
    fan2 = 64 * 4 * 4
    w2 = jax.random.uniform(k3, (1, 64, 4, 4), jnp.float32, -1.0, 1.0) / jnp.sqrt(fan2)
    b2 = jax.random.uniform(k4, (1,), jnp.float32, -1.0, 1.0) / jnp.sqrt(fan2)
    return w1, b1, w2, b2


def reference_forward(x, params):
    # Pure-JAX reference (XLA convs) for correctness checking only.
    w1, b1, w2, b2 = params
    dn1 = lax.conv_dimension_numbers(x.shape, w1.shape, ("NCHW", "OIHW", "NCHW"))
    y = lax.conv_general_dilated(x, w1, (2, 2), ((1, 1), (1, 1)), dimension_numbers=dn1)
    y = y + b1.reshape(1, -1, 1, 1)
    y = jnp.where(y > 0, y, 0.2 * y)
    dn2 = lax.conv_dimension_numbers(y.shape, w2.shape, ("NCHW", "OIHW", "NCHW"))
    z = lax.conv_general_dilated(y, w2, (1, 1), ((1, 1), (1, 1)), dimension_numbers=dn2)
    z = z + b2.reshape(1, -1, 1, 1)
    return jax.nn.sigmoid(z)


if __name__ == "__main__":
    key = jax.random.PRNGKey(0)
    kx, kp = jax.random.split(key)
    x = jax.random.normal(kx, (2, 1, 16, 16), jnp.float32)
    params = init_params(kp)

    fwd = jax.jit(discriminator_forward)
    out = jax.block_until_ready(fwd(x, params))
    assert out.shape == (2, 1, 7, 7), out.shape

    ref = reference_forward(x, params)
    assert jnp.allclose(out, ref, atol=1e-4), float(jnp.max(jnp.abs(out - ref)))
    print("KERNEL_OK")
</pallas_src>

<mosaic_0001>
module attributes {stable_mosaic.version = 11 : i64} {
  func.func @_conv1_kernel(%arg0: i32, %arg1: memref<128x16xf32, #tpu.memory_space<vmem>>, %arg2: memref<16x128xf32, #tpu.memory_space<vmem>>, %arg3: memref<1x128xf32, #tpu.memory_space<vmem>>, %arg4: memref<128x128xf32, #tpu.memory_space<vmem>>) attributes {dimension_semantics = [#tpu.dimension_semantics<parallel>], iteration_bounds = array<i64: 1>, scalar_prefetch = 0 : i64, scratch_operands = 0 : i64, tpu.core_type = #tpu.core_type<tc>, window_params = [{transform_indices = @transform_0, window_bounds = array<i64: 128, 16>}, {pipeline_mode = #tpu.pipeline_mode<synchronous>, transform_indices = @transform_1, window_bounds = array<i64: 16, 128>}, {pipeline_mode = #tpu.pipeline_mode<synchronous>, transform_indices = @transform_2, window_bounds = array<i64: 1, 128>}, {transform_indices = @transform_3, window_bounds = array<i64: 128, 128>}]} {
    %c0 = arith.constant 0 : index
    %c0_0 = arith.constant 0 : index
    %0 = vector.load %arg1[%c0, %c0_0] : memref<128x16xf32, #tpu.memory_space<vmem>>, vector<128x16xf32>
    %c0_1 = arith.constant 0 : index
    %c0_2 = arith.constant 0 : index
    %1 = vector.load %arg2[%c0_1, %c0_2] : memref<16x128xf32, #tpu.memory_space<vmem>>, vector<16x128xf32>
    %cst = arith.constant dense<0.000000e+00> : vector<128x128xf32>
    %2 = tpu.matmul %0, %1, %cst {dimension_numbers = #tpu.dot_dimension_numbers<[1], [0], [0], [1], [0, 0, 1, 1], [], []>} : vector<128x16xf32>, vector<16x128xf32>, vector<128x128xf32> -> vector<128x128xf32>
    %c0_3 = arith.constant 0 : index
    %c0_4 = arith.constant 0 : index
    %3 = vector.load %arg3[%c0_3, %c0_4] : memref<1x128xf32, #tpu.memory_space<vmem>>, vector<1x128xf32>
    %4 = vector.broadcast %3 : vector<1x128xf32> to vector<128x128xf32>
    %5 = arith.addf %2, %4 : vector<128x128xf32>
    %cst_5 = arith.constant 0.000000e+00 : f32
    %6 = vector.broadcast %cst_5 : f32 to vector<128x128xf32>
    %7 = arith.cmpf ogt, %5, %6 : vector<128x128xf32>
    %cst_6 = arith.constant 2.000000e-01 : f32
    %8 = vector.broadcast %cst_6 : f32 to vector<128x128xf32>
    %9 = arith.mulf %8, %5 : vector<128x128xf32>
    %10 = arith.select %7, %5, %9 : vector<128x128xi1>, vector<128x128xf32>
    %c0_7 = arith.constant 0 : index
    %c0_8 = arith.constant 0 : index
    %11 = vector.load %arg4[%c0_7, %c0_8] : memref<128x128xf32, #tpu.memory_space<vmem>>, vector<128x128xf32>
    tpu.vector_store %arg4[%c0_7, %c0_8], %10 {strides = array<i32>} : memref<128x128xf32, #tpu.memory_space<vmem>>, vector<128x128xf32>,
    return
  }
  func.func @transform_0(%arg0: i32) -> (i32, i32) {
    %c0_i32 = arith.constant 0 : i32
    %c0_i32_0 = arith.constant 0 : i32
    return %arg0, %c0_i32 : i32, i32
  }
  func.func @transform_1(%arg0: i32) -> (i32, i32) {
    %c0_i32 = arith.constant 0 : i32
    %c0_i32_0 = arith.constant 0 : i32
    %c0_i32_1 = arith.constant 0 : i32
    return %c0_i32, %c0_i32_0 : i32, i32
  }
  func.func @transform_2(%arg0: i32) -> (i32, i32) {
    %c0_i32 = arith.constant 0 : i32
    %c0_i32_0 = arith.constant 0 : i32
    %c0_i32_1 = arith.constant 0 : i32
    return %c0_i32, %c0_i32_0 : i32, i32
  }
  func.func @transform_3(%arg0: i32) -> (i32, i32) {
    %c0_i32 = arith.constant 0 : i32
    %c0_i32_0 = arith.constant 0 : i32
    return %arg0, %c0_i32 : i32, i32
  }
}

module attributes {stable_mosaic.version = 11 : i64} {
  func.func @_conv2_kernel(%arg0: i32, %arg1: memref<1x112x128xf32, #tpu.memory_space<vmem>>, %arg2: memref<16x128x128xf32, #tpu.memory_space<vmem>>, %arg3: memref<1x128xf32, #tpu.memory_space<vmem>>, %arg4: memref<1x72x128xf32, #tpu.memory_space<vmem>>) attributes {dimension_semantics = [#tpu.dimension_semantics<parallel>], iteration_bounds = array<i64: 2>, scalar_prefetch = 0 : i64, scratch_operands = 0 : i64, tpu.core_type = #tpu.core_type<tc>, window_params = [{transform_indices = @transform_0, window_bounds = array<i64: 1, 112, 128>}, {pipeline_mode = #tpu.pipeline_mode<synchronous>, transform_indices = @transform_1, window_bounds = array<i64: 16, 128, 128>}, {pipeline_mode = #tpu.pipeline_mode<synchronous>, transform_indices = @transform_2, window_bounds = array<i64: 1, 128>}, {transform_indices = @transform_3, window_bounds = array<i64: 1, 72, 128>}]} {
    %cst = arith.constant 0.000000e+00 : f32
    %0 = vector.broadcast %cst : f32 to vector<72x128xf32>
    %c0 = arith.constant 0 : index
    %c0_0 = arith.constant 0 : index
    %c0_1 = arith.constant 0 : index
    %1 = vector.load %arg1[%c0, %c0_0, %c0_1] : memref<1x112x128xf32, #tpu.memory_space<vmem>>, vector<1x72x128xf32>
    %2 = vector.shape_cast %1 : vector<1x72x128xf32> to vector<72x128xf32>
    %c0_2 = arith.constant 0 : index
    %c0_3 = arith.constant 0 : index
    %c0_4 = arith.constant 0 : index
    %3 = vector.load %arg2[%c0_2, %c0_3, %c0_4] : memref<16x128x128xf32, #tpu.memory_space<vmem>>, vector<1x128x128xf32>
    %4 = vector.shape_cast %3 : vector<1x128x128xf32> to vector<128x128xf32>
    %cst_5 = arith.constant dense<0.000000e+00> : vector<72x128xf32>
    %5 = tpu.matmul %2, %4, %cst_5 {dimension_numbers = #tpu.dot_dimension_numbers<[1], [0], [0], [1], [0, 0, 1, 1], [], []>} : vector<72x128xf32>, vector<128x128xf32>, vector<72x128xf32> -> vector<72x128xf32>
    %6 = arith.addf %0, %5 : vector<72x128xf32>
    %c0_6 = arith.constant 0 : index
    %c1 = arith.constant 1 : index
    %c0_7 = arith.constant 0 : index
    %7 = vector.load %arg1[%c0_6, %c1, %c0_7] : memref<1x112x128xf32, #tpu.memory_space<vmem>>, vector<1x72x128xf32>
    %8 = vector.shape_cast %7 : vector<1x72x128xf32> to vector<72x128xf32>
    %c1_8 = arith.constant 1 : index
    %c0_9 = arith.constant 0 : index
    %c0_10 = arith.constant 0 : index
    %9 = vector.load %arg2[%c1_8, %c0_9, %c0_10] : memref<16x128x128xf32, #tpu.memory_space<vmem>>, vector<1x128x128xf32>
    %10 = vector.shape_cast %9 : vector<1x128x128xf32> to vector<128x128xf32>
    %cst_11 = arith.constant dense<0.000000e+00> : vector<72x128xf32>
    %11 = tpu.matmul %8, %10, %cst_11 {dimension_numbers = #tpu.dot_dimension_numbers<[1], [0], [0], [1], [0, 0, 1, 1], [], []>} : vector<72x128xf32>, vector<128x128xf32>, vector<72x128xf32> -> vector<72x128xf32>
    %12 = arith.addf %6, %11 : vector<72x128xf32>
    %c0_12 = arith.constant 0 : index
    %c2 = arith.constant 2 : index
    %c0_13 = arith.constant 0 : index
    %13 = vector.load %arg1[%c0_12, %c2, %c0_13] : memref<1x112x128xf32, #tpu.memory_space<vmem>>, vector<1x72x128xf32>
    %14 = vector.shape_cast %13 : vector<1x72x128xf32> to vector<72x128xf32>
    %c2_14 = arith.constant 2 : index
    %c0_15 = arith.constant 0 : index
    %c0_16 = arith.constant 0 : index
    %15 = vector.load %arg2[%c2_14, %c0_15, %c0_16] : memref<16x128x128xf32, #tpu.memory_space<vmem>>, vector<1x128x128xf32>
    %16 = vector.shape_cast %15 : vector<1x128x128xf32> to vector<128x128xf32>
    %cst_17 = arith.constant dense<0.000000e+00> : vector<72x128xf32>
    %17 = tpu.matmul %14, %16, %cst_17 {dimension_numbers = #tpu.dot_dimension_numbers<[1], [0], [0], [1], [0, 0, 1, 1], [], []>} : vector<72x128xf32>, vector<128x128xf32>, vector<72x128xf32> -> vector<72x128xf32>
    %18 = arith.addf %12, %17 : vector<72x128xf32>
    %c0_18 = arith.constant 0 : index
    %c3 = arith.constant 3 : index
    %c0_19 = arith.constant 0 : index
    %19 = vector.load %arg1[%c0_18, %c3, %c0_19] : memref<1x112x128xf32, #tpu.memory_space<vmem>>, vector<1x72x128xf32>
    %20 = vector.shape_cast %19 : vector<1x72x128xf32> to vector<72x128xf32>
    %c3_20 = arith.constant 3 : index
    %c0_21 = arith.constant 0 : index
    %c0_22 = arith.constant 0 : index
    %21 = vector.load %arg2[%c3_20, %c0_21, %c0_22] : memref<16x128x128xf32, #tpu.memory_space<vmem>>, vector<1x128x128xf32>
    %22 = vector.shape_cast %21 : vector<1x128x128xf32> to vector<128x128xf32>
    %cst_23 = arith.constant dense<0.000000e+00> : vector<72x128xf32>
    %23 = tpu.matmul %20, %22, %cst_23 {dimension_numbers = #tpu.dot_dimension_numbers<[1], [0], [0], [1], [0, 0, 1, 1], [], []>} : vector<72x128xf32>, vector<128x128xf32>, vector<72x128xf32> -> vector<72x128xf32>
    %24 = arith.addf %18, %23 : vector<72x128xf32>
    %c0_24 = arith.constant 0 : index
    %c10 = arith.constant 10 : index
    %c0_25 = arith.constant 0 : index
    %25 = vector.load %arg1[%c0_24, %c10, %c0_25] : memref<1x112x128xf32, #tpu.memory_space<vmem>>, vector<1x72x128xf32>
    %26 = vector.shape_cast %25 : vector<1x72x128xf32> to vector<72x128xf32>
    %c4 = arith.constant 4 : index
    %c0_26 = arith.constant 0 : index
    %c0_27 = arith.constant 0 : index
    %27 = vector.load %arg2[%c4, %c0_26, %c0_27] : memref<16x128x128xf32, #tpu.memory_space<vmem>>, vector<1x128x128xf32>
    %28 = vector.shape_cast %27 : vector<1x128x128xf32> to vector<128x128xf32>
    %cst_28 = arith.constant dense<0.000000e+00> : vector<72x128xf32>
    %29 = tpu.matmul %26, %28, %cst_28 {dimension_numbers = #tpu.dot_dimension_numbers<[1], [0], [0], [1], [0, 0, 1, 1], [], []>} : vector<72x128xf32>, vector<128x128xf32>, vector<72x128xf32> -> vector<72x128xf32>
    %30 = arith.addf %24, %29 : vector<72x128xf32>
    %c0_29 = arith.constant 0 : index
    %c11 = arith.constant 11 : index
    %c0_30 = arith.constant 0 : index
    %31 = vector.load %arg1[%c0_29, %c11, %c0_30] : memref<1x112x128xf32, #tpu.memory_space<vmem>>, vector<1x72x128xf32>
    %32 = vector.shape_cast %31 : vector<1x72x128xf32> to vector<72x128xf32>
    %c5 = arith.constant 5 : index
    %c0_31 = arith.constant 0 : index
    %c0_32 = arith.constant 0 : index
    %33 = vector.load %arg2[%c5, %c0_31, %c0_32] : memref<16x128x128xf32, #tpu.memory_space<vmem>>, vector<1x128x128xf32>
    %34 = vector.shape_cast %33 : vector<1x128x128xf32> to vector<128x128xf32>
    %cst_33 = arith.constant dense<0.000000e+00> : vector<72x128xf32>
    %35 = tpu.matmul %32, %34, %cst_33 {dimension_numbers = #tpu.dot_dimension_numbers<[1], [0], [0], [1], [0, 0, 1, 1], [], []>} : vector<72x128xf32>, vector<128x128xf32>, vector<72x128xf32> -> vector<72x128xf32>
    %36 = arith.addf %30, %35 : vector<72x128xf32>
    %c0_34 = arith.constant 0 : index
    %c12 = arith.constant 12 : index
    %c0_35 = arith.constant 0 : index
    %37 = vector.load %arg1[%c0_34, %c12, %c0_35] : memref<1x112x128xf32, #tpu.memory_space<vmem>>, vector<1x72x128xf32>
    %38 = vector.shape_cast %37 : vector<1x72x128xf32> to vector<72x128xf32>
    %c6 = arith.constant 6 : index
    %c0_36 = arith.constant 0 : index
    %c0_37 = arith.constant 0 : index
    %39 = vector.load %arg2[%c6, %c0_36, %c0_37] : memref<16x128x128xf32, #tpu.memory_space<vmem>>, vector<1x128x128xf32>
    %40 = vector.shape_cast %39 : vector<1x128x128xf32> to vector<128x128xf32>
    %cst_38 = arith.constant dense<0.000000e+00> : vector<72x128xf32>
    %41 = tpu.matmul %38, %40, %cst_38 {dimension_numbers = #tpu.dot_dimension_numbers<[1], [0], [0], [1], [0, 0, 1, 1], [], []>} : vector<72x128xf32>, vector<128x128xf32>, vector<72x128xf32> -> vector<72x128xf32>
    %42 = arith.addf %36, %41 : vector<72x128xf32>
    %c0_39 = arith.constant 0 : index
    %c13 = arith.constant 13 : index
    %c0_40 = arith.constant 0 : index
    %43 = vector.load %arg1[%c0_39, %c13, %c0_40] : memref<1x112x128xf32, #tpu.memory_space<vmem>>, vector<1x72x128xf32>
    %44 = vector.shape_cast %43 : vector<1x72x128xf32> to vector<72x128xf32>
    %c7 = arith.constant 7 : index
    %c0_41 = arith.constant 0 : index
    %c0_42 = arith.constant 0 : index
    %45 = vector.load %arg2[%c7, %c0_41, %c0_42] : memref<16x128x128xf32, #tpu.memory_space<vmem>>, vector<1x128x128xf32>
    %46 = vector.shape_cast %45 : vector<1x128x128xf32> to vector<128x128xf32>
    %cst_43 = arith.constant dense<0.000000e+00> : vector<72x128xf32>
    %47 = tpu.matmul %44, %46, %cst_43 {dimension_numbers = #tpu.dot_dimension_numbers<[1], [0], [0], [1], [0, 0, 1, 1], [], []>} : vector<72x128xf32>, vector<128x128xf32>, vector<72x128xf32> -> vector<72x128xf32>
    %48 = arith.addf %42, %47 : vector<72x128xf32>
    %c0_44 = arith.constant 0 : index
    %c20 = arith.constant 20 : index
    %c0_45 = arith.constant 0 : index
    %49 = vector.load %arg1[%c0_44, %c20, %c0_45] : memref<1x112x128xf32, #tpu.memory_space<vmem>>, vector<1x72x128xf32>
    %50 = vector.shape_cast %49 : vector<1x72x128xf32> to vector<72x128xf32>
    %c8 = arith.constant 8 : index
    %c0_46 = arith.constant 0 : index
    %c0_47 = arith.constant 0 : index
    %51 = vector.load %arg2[%c8, %c0_46, %c0_47] : memref<16x128x128xf32, #tpu.memory_space<vmem>>, vector<1x128x128xf32>
    %52 = vector.shape_cast %51 : vector<1x128x128xf32> to vector<128x128xf32>
    %cst_48 = arith.constant dense<0.000000e+00> : vector<72x128xf32>
    %53 = tpu.matmul %50, %52, %cst_48 {dimension_numbers = #tpu.dot_dimension_numbers<[1], [0], [0], [1], [0, 0, 1, 1], [], []>} : vector<72x128xf32>, vector<128x128xf32>, vector<72x128xf32> -> vector<72x128xf32>
    %54 = arith.addf %48, %53 : vector<72x128xf32>
    %c0_49 = arith.constant 0 : index
    %c21 = arith.constant 21 : index
    %c0_50 = arith.constant 0 : index
    %55 = vector.load %arg1[%c0_49, %c21, %c0_50] : memref<1x112x128xf32, #tpu.memory_space<vmem>>, vector<1x72x128xf32>
    %56 = vector.shape_cast %55 : vector<1x72x128xf32> to vector<72x128xf32>
    %c9 = arith.constant 9 : index
    %c0_51 = arith.constant 0 : index
    %c0_52 = arith.constant 0 : index
    %57 = vector.load %arg2[%c9, %c0_51, %c0_52] : memref<16x128x128xf32, #tpu.memory_space<vmem>>, vector<1x128x128xf32>
    %58 = vector.shape_cast %57 : vector<1x128x128xf32> to vector<128x128xf32>
    %cst_53 = arith.constant dense<0.000000e+00> : vector<72x128xf32>
    %59 = tpu.matmul %56, %58, %cst_53 {dimension_numbers = #tpu.dot_dimension_numbers<[1], [0], [0], [1], [0, 0, 1, 1], [], []>} : vector<72x128xf32>, vector<128x128xf32>, vector<72x128xf32> -> vector<72x128xf32>
    %60 = arith.addf %54, %59 : vector<72x128xf32>
    %c0_54 = arith.constant 0 : index
    %c22 = arith.constant 22 : index
    %c0_55 = arith.constant 0 : index
    %61 = vector.load %arg1[%c0_54, %c22, %c0_55] : memref<1x112x128xf32, #tpu.memory_space<vmem>>, vector<1x72x128xf32>
    %62 = vector.shape_cast %61 : vector<1x72x128xf32> to vector<72x128xf32>
    %c10_56 = arith.constant 10 : index
    %c0_57 = arith.constant 0 : index
    %c0_58 = arith.constant 0 : index
    %63 = vector.load %arg2[%c10_56, %c0_57, %c0_58] : memref<16x128x128xf32, #tpu.memory_space<vmem>>, vector<1x128x128xf32>
    %64 = vector.shape_cast %63 : vector<1x128x128xf32> to vector<128x128xf32>
    %cst_59 = arith.constant dense<0.000000e+00> : vector<72x128xf32>
    %65 = tpu.matmul %62, %64, %cst_59 {dimension_numbers = #tpu.dot_dimension_numbers<[1], [0], [0], [1], [0, 0, 1, 1], [], []>} : vector<72x128xf32>, vector<128x128xf32>, vector<72x128xf32> -> vector<72x128xf32>
    %66 = arith.addf %60, %65 : vector<72x128xf32>
    %c0_60 = arith.constant 0 : index
    %c23 = arith.constant 23 : index
    %c0_61 = arith.constant 0 : index
    %67 = vector.load %arg1[%c0_60, %c23, %c0_61] : memref<1x112x128xf32, #tpu.memory_space<vmem>>, vector<1x72x128xf32>
    %68 = vector.shape_cast %67 : vector<1x72x128xf32> to vector<72x128xf32>
    %c11_62 = arith.constant 11 : index
    %c0_63 = arith.constant 0 : index
    %c0_64 = arith.constant 0 : index
    %69 = vector.load %arg2[%c11_62, %c0_63, %c0_64] : memref<16x128x128xf32, #tpu.memory_space<vmem>>, vector<1x128x128xf32>
    %70 = vector.shape_cast %69 : vector<1x128x128xf32> to vector<128x128xf32>
    %cst_65 = arith.constant dense<0.000000e+00> : vector<72x128xf32>
    %71 = tpu.matmul %68, %70, %cst_65 {dimension_numbers = #tpu.dot_dimension_numbers<[1], [0], [0], [1], [0, 0, 1, 1], [], []>} : vector<72x128xf32>, vector<128x128xf32>, vector<72x128xf32> -> vector<72x128xf32>
    %72 = arith.addf %66, %71 : vector<72x128xf32>
    %c0_66 = arith.constant 0 : index
    %c30 = arith.constant 30 : index
    %c0_67 = arith.constant 0 : index
    %73 = vector.load %arg1[%c0_66, %c30, %c0_67] : memref<1x112x128xf32, #tpu.memory_space<vmem>>, vector<1x72x128xf32>
    %74 = vector.shape_cast %73 : vector<1x72x128xf32> to vector<72x128xf32>
    %c12_68 = arith.constant 12 : index
    %c0_69 = arith.constant 0 : index
    %c0_70 = arith.constant 0 : index
    %75 = vector.load %arg2[%c12_68, %c0_69, %c0_70] : memref<16x128x128xf32, #tpu.memory_space<vmem>>, vector<1x128x128xf32>
    %76 = vector.shape_cast %75 : vector<1x128x128xf32> to vector<128x128xf32>
    %cst_71 = arith.constant dense<0.000000e+00> : vector<72x128xf32>
    %77 = tpu.matmul %74, %76, %cst_71 {dimension_numbers = #tpu.dot_dimension_numbers<[1], [0], [0], [1], [0, 0, 1, 1], [], []>} : vector<72x128xf32>, vector<128x128xf32>, vector<72x128xf32> -> vector<72x128xf32>
    %78 = arith.addf %72, %77 : vector<72x128xf32>
    %c0_72 = arith.constant 0 : index
    %c31 = arith.constant 31 : index
    %c0_73 = arith.constant 0 : index
    %79 = vector.load %arg1[%c0_72, %c31, %c0_73] : memref<1x112x128xf32, #tpu.memory_space<vmem>>, vector<1x72x128xf32>
    %80 = vector.shape_cast %79 : vector<1x72x128xf32> to vector<72x128xf32>
    %c13_74 = arith.constant 13 : index
    %c0_75 = arith.constant 0 : index
    %c0_76 = arith.constant 0 : index
    %81 = vector.load %arg2[%c13_74, %c0_75, %c0_76] : memref<16x128x128xf32, #tpu.memory_space<vmem>>, vector<1x128x128xf32>
    %82 = vector.shape_cast %81 : vector<1x128x128xf32> to vector<128x128xf32>
    %cst_77 = arith.constant dense<0.000000e+00> : vector<72x128xf32>
    %83 = tpu.matmul %80, %82, %cst_77 {dimension_numbers = #tpu.dot_dimension_numbers<[1], [0], [0], [1], [0, 0, 1, 1], [], []>} : vector<72x128xf32>, vector<128x128xf32>, vector<72x128xf32> -> vector<72x128xf32>
    %84 = arith.addf %78, %83 : vector<72x128xf32>
    %c0_78 = arith.constant 0 : index
    %c32 = arith.constant 32 : index
    %c0_79 = arith.constant 0 : index
    %85 = vector.load %arg1[%c0_78, %c32, %c0_79] : memref<1x112x128xf32, #tpu.memory_space<vmem>>, vector<1x72x128xf32>
    %86 = vector.shape_cast %85 : vector<1x72x128xf32> to vector<72x128xf32>
    %c14 = arith.constant 14 : index
    %c0_80 = arith.constant 0 : index
    %c0_81 = arith.constant 0 : index
    %87 = vector.load %arg2[%c14, %c0_80, %c0_81] : memref<16x128x128xf32, #tpu.memory_space<vmem>>, vector<1x128x128xf32>
    %88 = vector.shape_cast %87 : vector<1x128x128xf32> to vector<128x128xf32>
    %cst_82 = arith.constant dense<0.000000e+00> : vector<72x128xf32>
    %89 = tpu.matmul %86, %88, %cst_82 {dimension_numbers = #tpu.dot_dimension_numbers<[1], [0], [0], [1], [0, 0, 1, 1], [], []>} : vector<72x128xf32>, vector<128x128xf32>, vector<72x128xf32> -> vector<72x128xf32>
    %90 = arith.addf %84, %89 : vector<72x128xf32>
    %c0_83 = arith.constant 0 : index
    %c33 = arith.constant 33 : index
    %c0_84 = arith.constant 0 : index
    %91 = vector.load %arg1[%c0_83, %c33, %c0_84] : memref<1x112x128xf32, #tpu.memory_space<vmem>>, vector<1x72x128xf32>
    %92 = vector.shape_cast %91 : vector<1x72x128xf32> to vector<72x128xf32>
    %c15 = arith.constant 15 : index
    %c0_85 = arith.constant 0 : index
    %c0_86 = arith.constant 0 : index
    %93 = vector.load %arg2[%c15, %c0_85, %c0_86] : memref<16x128x128xf32, #tpu.memory_space<vmem>>, vector<1x128x128xf32>
    %94 = vector.shape_cast %93 : vector<1x128x128xf32> to vector<128x128xf32>
    %cst_87 = arith.constant dense<0.000000e+00> : vector<72x128xf32>
    %95 = tpu.matmul %92, %94, %cst_87 {dimension_numbers = #tpu.dot_dimension_numbers<[1], [0], [0], [1], [0, 0, 1, 1], [], []>} : vector<72x128xf32>, vector<128x128xf32>, vector<72x128xf32> -> vector<72x128xf32>
    %96 = arith.addf %90, %95 : vector<72x128xf32>
    %c0_88 = arith.constant 0 : index
    %c0_89 = arith.constant 0 : index
    %97 = vector.load %arg3[%c0_88, %c0_89] : memref<1x128xf32, #tpu.memory_space<vmem>>, vector<1x128xf32>
    %98 = vector.broadcast %97 : vector<1x128xf32> to vector<72x128xf32>
    %99 = arith.addf %96, %98 : vector<72x128xf32>
    %cst_90 = arith.constant 0.000000e+00 : f32
    %100 = vector.broadcast %cst_90 : f32 to vector<72x128xf32>
    %101 = arith.subf %100, %99 : vector<72x128xf32>
    %102 = math.exp %101 : vector<72x128xf32>
    %cst_91 = arith.constant 1.000000e+00 : f32
    %103 = vector.broadcast %cst_91 : f32 to vector<72x128xf32>
    %104 = arith.addf %103, %102 : vector<72x128xf32>
    %cst_92 = arith.constant 1.000000e+00 : f32
    %105 = vector.broadcast %cst_92 : f32 to vector<72x128xf32>
    %106 = arith.divf %105, %104 : vector<72x128xf32>
    %c0_93 = arith.constant 0 : index
    %c0_94 = arith.constant 0 : index
    %c0_95 = arith.constant 0 : index
    %107 = vector.load %arg4[%c0_93, %c0_94, %c0_95] : memref<1x72x128xf32, #tpu.memory_space<vmem>>, vector<1x72x128xf32>
    %108 = vector.shape_cast %107 : vector<1x72x128xf32> to vector<72x128xf32>
    %109 = vector.shape_cast %106 : vector<72x128xf32> to vector<1x72x128xf32>
    tpu.vector_store %arg4[%c0_93, %c0_94, %c0_95], %109 {strides = array<i32>} : memref<1x72x128xf32, #tpu.memory_space<vmem>>, vector<1x72x128xf32>,
    return
  }
  func.func @transform_0(%arg0: i32) -> (i32, i32, i32) {
    %c0_i32 = arith.constant 0 : i32
    %c0_i32_0 = arith.constant 0 : i32
    %c0_i32_1 = arith.constant 0 : i32
    return %arg0, %c0_i32, %c0_i32_0 : i32, i32, i32
  }
  func.func @transform_1(%arg0: i32) -> (i32, i32, i32) {
    %c0_i32 = arith.constant 0 : i32
    %c0_i32_0 = arith.constant 0 : i32
    %c0_i32_1 = arith.constant 0 : i32
    %c0_i32_2 = arith.constant 0 : i32
    return %c0_i32, %c0_i32_0, %c0_i32_1 : i32, i32, i32
  }
  func.func @transform_2(%arg0: i32) -> (i32, i32) {
    %c0_i32 = arith.constant 0 : i32
    %c0_i32_0 = arith.constant 0 : i32
    %c0_i32_1 = arith.constant 0 : i32
    return %c0_i32, %c0_i32_0 : i32, i32
  }
  func.func @transform_3(%arg0: i32) -> (i32, i32, i32) {
    %c0_i32 = arith.constant 0 : i32
    %c0_i32_0 = arith.constant 0 : i32
    %c0_i32_1 = arith.constant 0 : i32
    return %arg0, %c0_i32, %c0_i32_0 : i32, i32, i32
  }
}

</mosaic_0001>

<llo_original>
// kernel: discriminator_forward.2
$region0: #{discriminator_forward.2}
  #allocation0 [shape = 'u32[]', space=smem, size = 0x4, offset = 0x4, fixed_abs, tag = 'smem constant byte address 0x4 - core index']
  #allocation1 [shape = 'u32[144,128]{1,0:T(1,128)}', space=vmem, size = 0x12000, scoped, tag = 'internal scratch']
  %s0 = inlined_call_operand.vmem [shape: f32[128,16], index: 0, kind: input, shape index: {}]
  %s1 = inlined_call_operand.vmem [shape: f32[16,128], index: 1, kind: input, shape index: {}]
  %s2 = inlined_call_operand.vmem [shape: f32[1,128], index: 2, kind: input, shape index: {}]
  %s3 = inlined_call_operand.vmem [shape: f32[128,128], index: 3, kind: output, shape index: {}]
  %s4 = sld [smem:[#allocation0]]
  $region22: #{discriminator_forward.2} parent=0
    _
  %s6 = ssub.s32 1, %s4
  %s7 = scalar_select 0, %s6, %s4
  // Predicated region
  $region2: #{discriminator_forward.2} parent=0 // pred_check
    _
  $region3: #{discriminator_forward.2} parent=0 // pred_check_branch
    %9 = sbr.rel (0) target = $region5
  $region4: #{discriminator_forward.2} parent=0 // pred_region
    _
  $region5: #{discriminator_forward.2} parent=0 // pred_fallthru
    _
  // Predicated region
  $region6: #{discriminator_forward.2} parent=0 // pred_check
    _
  $region7: #{discriminator_forward.2} parent=0 // pred_check_branch
    %11 = sbr.rel (0) target = $region9
  $region8: #{discriminator_forward.2} parent=0 // pred_region
    _
  $region9: #{discriminator_forward.2} parent=0 // pred_fallthru
    _
  // Predicated region
  $region10: #{discriminator_forward.2} parent=0 // pred_check
    _
  $region11: #{discriminator_forward.2} parent=0 // pred_check_branch
    %13 = sbr.rel (0) target = $region13
  $region12: #{discriminator_forward.2} parent=0 // pred_region
    _
  $region13: #{discriminator_forward.2} parent=0 // pred_fallthru
    _
  %v14 = vld [vmem:[%s0] sm:$0xff]
  %v15 = vld [vmem:[%s0 + $0x8] sm:$0xff]
  %v16 = vld [vmem:[%s0 + $0x10] sm:$0xff]
  %v17 = vld [vmem:[%s0 + $0x18] sm:$0xff]
  %v18 = vld [vmem:[%s0 + $0x20] sm:$0xff]
  %v19 = vld [vmem:[%s0 + $0x28] sm:$0xff]
  %v20 = vld [vmem:[%s0 + $0x30] sm:$0xff]
  %v21 = vld [vmem:[%s0 + $0x38] sm:$0xff]
  %v22 = vld [vmem:[%s0 + $0x40] sm:$0xff]
  %v23 = vld [vmem:[%s0 + $0x48] sm:$0xff]
  %v24 = vld [vmem:[%s0 + $0x50] sm:$0xff]
  %v25 = vld [vmem:[%s0 + $0x58] sm:$0xff]
  %v26 = vld [vmem:[%s0 + $0x60] sm:$0xff]
  %v27 = vld [vmem:[%s0 + $0x68] sm:$0xff]
  %v28 = vld [vmem:[%s0 + $0x70] sm:$0xff]
  %v29 = vld [vmem:[%s0 + $0x78] sm:$0xff]
  %v30 = vld [vmem:[%s1] sm:$0xff]
  %v31 = vld [vmem:[%s1 + $0x8] sm:$0xff]
  %v32 = vld [vmem:[%s2] sm:$0x1]
  %v34 = vlaneseq
  %v35 = vshrl.u32 %v34, 7
  %v36 = vsub.s32 0, %v35
  %v37 = vrot.slane %v32, %v36
  %vm39 = vcmask 130048
  %v41 = vsel %vm39, %v14, 0
  %v44 = vsel %vm39, %v15, 0
  %v47 = vsel %vm39, %v16, 0
  %v50 = vsel %vm39, %v17, 0
  %v53 = vsel %vm39, %v18, 0
  %v56 = vsel %vm39, %v19, 0
  %v59 = vsel %vm39, %v20, 0
  %v62 = vsel %vm39, %v21, 0
  %v65 = vsel %vm39, %v22, 0
  %v68 = vsel %vm39, %v23, 0
  %v71 = vsel %vm39, %v24, 0
  %v74 = vsel %vm39, %v25, 0
  %v77 = vsel %vm39, %v26, 0
  %v80 = vsel %vm39, %v27, 0
  %v83 = vsel %vm39, %v28, 0
  %v86 = vsel %vm39, %v29, 0
  %88 = vmatprep.subr.mxu0 0.0
  %89 = vmatpush1.msra.mxu0 %v30
  %90 = vmatprep.subr.mxu0 0.0
  %91 = vmatpush1.msra.mxu0 %v31
  %92 = vmatprep.subr.mxu0 0.0
  %93 = vmatpush1.msra.mxu0 0.0
  %94 = vmatprep.subr.mxu0 0.0
  %95 = vmatpush1.msra.mxu0 0.0
  %96 = vmatprep.subr.mxu0 0.0
  %97 = vmatpush1.msra.mxu0 0.0
  %98 = vmatprep.subr.mxu0 0.0
  %99 = vmatpush1.msra.mxu0 0.0
  %100 = vmatprep.subr.mxu0 0.0
  %101 = vmatpush1.msra.mxu0 0.0
  %102 = vmatprep.subr.mxu0 0.0
  %103 = vmatpush1.msra.mxu0 0.0
  %104 = vmatprep.subr.mxu0 0.0
  %105 = vmatpush1.msra.mxu0 0.0
  %106 = vmatprep.subr.mxu0 0.0
  %107 = vmatpush1.msra.mxu0 0.0
  %108 = vmatprep.subr.mxu0 0.0
  %109 = vmatpush1.msra.mxu0 0.0
  %110 = vmatprep.subr.mxu0 0.0
  %111 = vmatpush1.msra.mxu0 0.0
  %112 = vmatprep.subr.mxu0 0.0
  %113 = vmatpush1.msra.mxu0 0.0
  %114 = vmatprep.subr.mxu0 0.0
  %115 = vmatpush1.msra.mxu0 0.0
  %116 = vmatprep.subr.mxu0 0.0
  %117 = vmatpush1.msra.mxu0 0.0
  %118 = vmatprep.subr.mxu0 0.0
  %119 = vmatpush1.msra.mxu0 0.0
  %120 = vmatprep.subr.mxu0 0.0
  %121 = vmatpush1.msra.mxu0 0.0
  %122 = vmatprep.subr.mxu0 0.0
  %123 = vmatpush1.msra.mxu0 0.0
  %124 = vmatprep.subr.mxu0 0.0
  %125 = vmatpush1.msra.mxu0 0.0
  %126 = vmatprep.subr.mxu0 0.0
  %127 = vmatpush1.msra.mxu0 0.0
  %128 = vmatprep.subr.mxu0 0.0
  %129 = vmatpush1.msra.mxu0 0.0
  %130 = vmatprep.subr.mxu0 0.0
  %131 = vmatpush1.msra.mxu0 0.0
  %132 = vmatprep.subr.mxu0 0.0
  %133 = vmatpush1.msra.mxu0 0.0
  %134 = vmatprep.subr.mxu0 0.0
  %135 = vmatpush1.msra.mxu0 0.0
  %136 = vmatprep.subr.mxu0 0.0
  %137 = vmatpush1.msra.mxu0 0.0
  %138 = vmatprep.subr.mxu0 0.0
  %139 = vmatpush1.msra.mxu0 0.0
  %140 = vmatprep.subr.mxu0 0.0
  %141 = vmatpush1.msra.mxu0 0.0
  %142 = vmatprep.subr.mxu0 0.0
  %143 = vmatpush1.msra.mxu0 0.0
  %144 = vmatprep.subr.mxu0 0.0
  %145 = vmatpush1.msra.mxu0 0.0
  %146 = vmatprep.subr.mxu0 0.0
  %147 = vmatpush1.msra.mxu0 0.0
  %148 = vmatprep.subr.mxu0 0.0
  %149 = vmatpush1.msra.mxu0 0.0
  %150 = vmatprep.subr.mxu0 0.0
  %151 = vmatpush1.msra.mxu0 0.0
  %152 = vmatprep.mubr.f32.mxu0 0.0
  %153 = vmatmul.mubr.f32.gmra.mrb[0].mxu0 %v41
  %v154 = vpop.f32.mrb[0].mxu0
  %v155 = vadd.f32 %v37, %v154
  %v156 = vpop.f32.mrb[0].mxu0
  %157 = vmatprep.mubr.f32.mxu0 0.0
  %158 = vmatmul.mubr.f32.gmra.mrb[0].mxu0 %v44
  %v159 = vpop.f32.mrb[0].mxu0
  %v160 = vadd.f32 %v37, %v159
  %v161 = vpop.f32.mrb[0].mxu0
  %162 = vmatprep.mubr.f32.mxu0 0.0
  %163 = vmatmul.mubr.f32.gmra.mrb[0].mxu0 %v47
  %v164 = vpop.f32.mrb[0].mxu0
  %v165 = vadd.f32 %v37, %v164
  %v166 = vpop.f32.mrb[0].mxu0
  %167 = vmatprep.mubr.f32.mxu0 0.0
  %168 = vmatmul.mubr.f32.gmra.mrb[0].mxu0 %v50
  %v169 = vpop.f32.mrb[0].mxu0
  %v170 = vadd.f32 %v37, %v169
  %v171 = vpop.f32.mrb[0].mxu0
  %172 = vmatprep.mubr.f32.mxu0 0.0
  %173 = vmatmul.mubr.f32.gmra.mrb[0].mxu0 %v53
  %v174 = vpop.f32.mrb[0].mxu0
  %v175 = vadd.f32 %v37, %v174
  %v176 = vpop.f32.mrb[0].mxu0
  %177 = vmatprep.mubr.f32.mxu0 0.0
  %178 = vmatmul.mubr.f32.gmra.mrb[0].mxu0 %v56
  %v179 = vpop.f32.mrb[0].mxu0
  %v180 = vadd.f32 %v37, %v179
  %v181 = vpop.f32.mrb[0].mxu0
  %182 = vmatprep.mubr.f32.mxu0 0.0
  %183 = vmatmul.mubr.f32.gmra.mrb[0].mxu0 %v59
  %v184 = vpop.f32.mrb[0].mxu0
  %v185 = vadd.f32 %v37, %v184
  %v186 = vpop.f32.mrb[0].mxu0
  %187 = vmatprep.mubr.f32.mxu0 0.0
  %188 = vmatmul.mubr.f32.gmra.mrb[0].mxu0 %v62
  %v189 = vpop.f32.mrb[0].mxu0
  %v190 = vadd.f32 %v37, %v189
  %v191 = vpop.f32.mrb[0].mxu0
  %192 = vmatprep.mubr.f32.mxu0 0.0
  %193 = vmatmul.mubr.f32.gmra.mrb[0].mxu0 %v65
  %v194 = vpop.f32.mrb[0].mxu0
  %v195 = vadd.f32 %v37, %v194
  %v196 = vpop.f32.mrb[0].mxu0
  %197 = vmatprep.mubr.f32.mxu0 0.0
  %198 = vmatmul.mubr.f32.gmra.mrb[0].mxu0 %v68
  %v199 = vpop.f32.mrb[0].mxu0
  %v200 = vadd.f32 %v37, %v199
  %v201 = vpop.f32.mrb[0].mxu0
  %202 = vmatprep.mubr.f32.mxu0 0.0
  %203 = vmatmul.mubr.f32.gmra.mrb[0].mxu0 %v71
  %v204 = vpop.f32.mrb[0].mxu0
  %v205 = vadd.f32 %v37, %v204
  %v206 = vpop.f32.mrb[0].mxu0
  %207 = vmatprep.mubr.f32.mxu0 0.0
  %208 = vmatmul.mubr.f32.gmra.mrb[0].mxu0 %v74
  %v209 = vpop.f32.mrb[0].mxu0
  %v210 = vadd.f32 %v37, %v209
  %v211 = vpop.f32.mrb[0].mxu0
  %212 = vmatprep.mubr.f32.mxu0 0.0
  %213 = vmatmul.mubr.f32.gmra.mrb[0].mxu0 %v77
  %v214 = vpop.f32.mrb[0].mxu0
  %v215 = vadd.f32 %v37, %v214
  %v216 = vpop.f32.mrb[0].mxu0
  %217 = vmatprep.mubr.f32.mxu0 0.0
  %218 = vmatmul.mubr.f32.gmra.mrb[0].mxu0 %v80
  %v219 = vpop.f32.mrb[0].mxu0
  %v220 = vadd.f32 %v37, %v219
  %v221 = vpop.f32.mrb[0].mxu0
  %222 = vmatprep.mubr.f32.mxu0 0.0
  %223 = vmatmul.mubr.f32.gmra.mrb[0].mxu0 %v83
  %v224 = vpop.f32.mrb[0].mxu0
  %v225 = vadd.f32 %v37, %v224
  %v226 = vpop.f32.mrb[0].mxu0
  %227 = vmatprep.mubr.f32.mxu0 0.0
  %228 = vmatmul.mubr.f32.gmra.mrb[0].mxu0 %v86
  %v229 = vpop.f32.mrb[0].mxu0
  %v230 = vadd.f32 %v37, %v229
  %v231 = vpop.f32.mrb[0].mxu0
  %232 = vdwg.mxu0
  %vm233 = vcmp.gt.f32.partialorder %v155, 0.0
  %vm234 = vcmp.gt.f32.partialorder %v160, 0.0
  %vm235 = vcmp.gt.f32.partialorder %v165, 0.0
  %vm236 = vcmp.gt.f32.partialorder %v170, 0.0
  %vm237 = vcmp.gt.f32.partialorder %v175, 0.0
  %vm238 = vcmp.gt.f32.partialorder %v180, 0.0
  %vm239 = vcmp.gt.f32.partialorder %v185, 0.0
  %vm240 = vcmp.gt.f32.partialorder %v190, 0.0
  %vm241 = vcmp.gt.f32.partialorder %v195, 0.0
  %vm242 = vcmp.gt.f32.partialorder %v200, 0.0
  %vm243 = vcmp.gt.f32.partialorder %v205, 0.0
  %vm244 = vcmp.gt.f32.partialorder %v210, 0.0
  %vm245 = vcmp.gt.f32.partialorder %v215, 0.0
  %vm246 = vcmp.gt.f32.partialorder %v220, 0.0
  %vm247 = vcmp.gt.f32.partialorder %v225, 0.0
  %vm248 = vcmp.gt.f32.partialorder %v230, 0.0
  %v249 = vmul.f32 %v155, 0.2
  %v250 = vmul.f32 %v160, 0.2
  %v251 = vmul.f32 %v165, 0.2
  %v252 = vmul.f32 %v170, 0.2
  %v253 = vmul.f32 %v175, 0.2
  %v254 = vmul.f32 %v180, 0.2
  %v255 = vmul.f32 %v185, 0.2
  %v256 = vmul.f32 %v190, 0.2
  %v257 = vmul.f32 %v195, 0.2
  %v258 = vmul.f32 %v200, 0.2
  %v259 = vmul.f32 %v205, 0.2
  %v260 = vmul.f32 %v210, 0.2
  %v261 = vmul.f32 %v215, 0.2
  %v262 = vmul.f32 %v220, 0.2
  %v263 = vmul.f32 %v225, 0.2
  %v264 = vmul.f32 %v230, 0.2
  %v265 = vsel %vm233, %v155, %v249
  %v266 = vsel %vm234, %v160, %v250
  %v267 = vsel %vm235, %v165, %v251
  %v268 = vsel %vm236, %v170, %v252
  %v269 = vsel %vm237, %v175, %v253
  %v270 = vsel %vm238, %v180, %v254
  %v271 = vsel %vm239, %v185, %v255
  %v272 = vsel %vm240, %v190, %v256
  %v273 = vsel %vm241, %v195, %v257
  %v274 = vsel %vm242, %v200, %v258
  %v275 = vsel %vm243, %v205, %v259
  %v276 = vsel %vm244, %v210, %v260
  %v277 = vsel %vm245, %v215, %v261
  %v278 = vsel %vm246, %v220, %v262
  %v279 = vsel %vm247, %v225, %v263
  %v280 = vsel %vm248, %v230, %v264
  %281 = vst [vmem:[%s3] sm:$0xff] %v265
  %282 = vst [vmem:[%s3 + $0x8] sm:$0xff] %v266
  %283 = vst [vmem:[%s3 + $0x10] sm:$0xff] %v267
  %284 = vst [vmem:[%s3 + $0x18] sm:$0xff] %v268
  %285 = vst [vmem:[%s3 + $0x20] sm:$0xff] %v269
  %286 = vst [vmem:[%s3 + $0x28] sm:$0xff] %v270
  %287 = vst [vmem:[%s3 + $0x30] sm:$0xff] %v271
  %288 = vst [vmem:[%s3 + $0x38] sm:$0xff] %v272
  %289 = vst [vmem:[%s3 + $0x40] sm:$0xff] %v273
  %290 = vst [vmem:[%s3 + $0x48] sm:$0xff] %v274
  %291 = vst [vmem:[%s3 + $0x50] sm:$0xff] %v275
  %292 = vst [vmem:[%s3 + $0x58] sm:$0xff] %v276
  %293 = vst [vmem:[%s3 + $0x60] sm:$0xff] %v277
  %294 = vst [vmem:[%s3 + $0x68] sm:$0xff] %v278
  %295 = vst [vmem:[%s3 + $0x70] sm:$0xff] %v279
  %296 = vst [vmem:[%s3 + $0x78] sm:$0xff] %v280
  // Predicated region
  $region14: #{discriminator_forward.2} parent=0 // pred_check
    _
  $region15: #{discriminator_forward.2} parent=0 // pred_check_branch
    %298 = sbr.rel (0) target = $region17
  $region16: #{discriminator_forward.2} parent=0 // pred_region
    _
  $region17: #{discriminator_forward.2} parent=0 // pred_fallthru
    _
  // Predicated region
  $region18: #{discriminator_forward.2} parent=0 // pred_check
    _
  $region19: #{discriminator_forward.2} parent=0 // pred_check_branch
    %300 = sbr.rel (0) target = $region21
  $region20: #{discriminator_forward.2} parent=0 // pred_region
    _
  $region21: #{discriminator_forward.2} parent=0 // pred_fallthru
    _

// kernel: discriminator_forward.3
$region0: #{discriminator_forward.3}
  #allocation0 [shape = 'u32[]', space=smem, size = 0x4, offset = 0x4, fixed_abs, tag = 'smem constant byte address 0x4 - core index']
  #allocation1 [shape = 'u32[144,128]{1,0:T(1,128)}', space=vmem, size = 0x12000, scoped, tag = 'internal scratch']
  %s0 = inlined_call_operand.vmem [shape: f32[2,112,128], index: 0, kind: input, shape index: {}]
  %s1 = inlined_call_operand.vmem [shape: f32[16,128,128], index: 1, kind: input, shape index: {}]
  %s2 = inlined_call_operand.vmem [shape: f32[1,128], index: 2, kind: input, shape index: {}]
  %s3 = inlined_call_operand.vmem [shape: f32[2,72,128], index: 3, kind: output, shape index: {}]
  %s4 = sld [smem:[#allocation0]]
  $region45: #{discriminator_forward.3} parent=0
    _
  %s6 = ssub.s32 1, %s4
  %s7 = scalar_select 0, %s6, %s4
  loop: start=0, step=1, limit=4
  $region2: #{discriminator_forward.3} parent=0 // loop_pre_header
    _
  $region3: #{discriminator_forward.3} parent=0 // loop_header
    %s9 = sphi 0, %s13
    %p10 = scmp.ge.s32.totalorder %s9, 4
    %s19 = sphi 0, %s21
    %s22 = sphi 0, %s19
    %s23 = sphi 0, %s22
    %s39 = sphi 0, %s23
    %s43 = sphi 0, %s43
    %s45 = sphi 0, %s43
    %s46 = sphi 0, %s45
    %s60 = sphi 0, %s46
    %s64 = sphi 0, %s64
    %s66 = sphi 0, %s64
    %s67 = sphi 0, %s66
    %s81 = sphi 0, %s67
    %s87 = sphi 0, %s89
    %s90 = sphi 0, %s87
    %s91 = sphi 0, %s90
    %s107 = sphi 0, %s91
  $region4: #{discriminator_forward.3} parent=0 // loop_header_branch
    %12 = sbr.rel (%p10) target = $region8
  $region5: #{discriminator_forward.3} parent=0 // loop_body
    %s14 = ssub.s32 %s9, 1
    %s15 = ssub.s32 %s9, 2
    %s16 = sadd.s32 %s9, 1
    %s17 = ssub.s32 %s9, %s16
    %p18 = scmp.eq.s32.totalorder %s17, 0
    %s20 = sadd.s32 %s19, 1
    %s21 = scalar_select %p18, %s19, %s20
    %p24 = pneg %p18
    %p25 = scmp.eq.s32.totalorder %s9, 1
    %p26 = por %p24, %p25
    %p27 = scmp.ne.s32.totalorder %s19, %s22
    %p28 = scmp.eq.s32.totalorder %s9, 0
    %p29 = por %p27, %p28
    %p30 = scmp.ne.s32.totalorder %s19, %s22
    %p31 = scmp.eq.s32.totalorder %s14, 1
    %p32 = por %p30, %p31
    %p33 = scmp.ne.s32.totalorder %s22, %s23
    %p34 = scmp.eq.s32.totalorder %s14, 0
    %p35 = por %p33, %p34
    %p36 = scmp.ne.s32.totalorder %s22, %s23
    %p37 = scmp.eq.s32.totalorder %s15, 1
    %p38 = por %p36, %p37
    %p40 = scmp.ne.s32.totalorder %s23, %s39
    %p41 = scmp.eq.s32.totalorder %s15, 0
    %p42 = por %p40, %p41
    %s44 = sadd.s32 %s43, 1
    %p47 = scmp.eq.s32.totalorder %s9, 1
    %p48 = scmp.ne.s32.totalorder %s43, %s45
    %p49 = scmp.eq.s32.totalorder %s9, 0
    %p50 = por %p48, %p49
    %p51 = scmp.ne.s32.totalorder %s43, %s45
    %p52 = scmp.eq.s32.totalorder %s14, 1
    %p53 = por %p51, %p52
    %p54 = scmp.ne.s32.totalorder %s45, %s46
    %p55 = scmp.eq.s32.totalorder %s14, 0
    %p56 = por %p54, %p55
    %p57 = scmp.ne.s32.totalorder %s45, %s46
    %p58 = scmp.eq.s32.totalorder %s15, 1
    %p59 = por %p57, %p58
    %p61 = scmp.ne.s32.totalorder %s46, %s60
    %p62 = scmp.eq.s32.totalorder %s15, 0
    %p63 = por %p61, %p62
    %s65 = sadd.s32 %s64, 1
    %p68 = scmp.eq.s32.totalorder %s9, 1
    %p69 = scmp.ne.s32.totalorder %s64, %s66
    %p70 = scmp.eq.s32.totalorder %s9, 0
    %p71 = por %p69, %p70
    %p72 = scmp.ne.s32.totalorder %s64, %s66
    %p73 = scmp.eq.s32.totalorder %s14, 1
    %p74 = por %p72, %p73
    %p75 = scmp.ne.s32.totalorder %s66, %s67
    %p76 = scmp.eq.s32.totalorder %s14, 0
    %p77 = por %p75, %p76
    %p78 = scmp.ne.s32.totalorder %s66, %s67
    %p79 = scmp.eq.s32.totalorder %s15, 1
    %p80 = por %p78, %p79
    %p82 = scmp.ne.s32.totalorder %s67, %s81
    %p83 = scmp.eq.s32.totalorder %s15, 0
    %p84 = por %p82, %p83
    %s85 = ssub.s32 %s9, %s16
    %p86 = scmp.eq.s32.totalorder %s85, 0
    %s88 = sadd.s32 %s87, 1
    %s89 = scalar_select %p86, %s87, %s88
    %p92 = pneg %p86
    %p93 = scmp.eq.s32.totalorder %s9, 1
    %p94 = por %p92, %p93
    %p95 = scmp.ne.s32.totalorder %s87, %s90
    %p96 = scmp.eq.s32.totalorder %s9, 0
    %p97 = por %p95, %p96
    %p98 = scmp.ne.s32.totalorder %s87, %s90
    %p99 = scmp.eq.s32.totalorder %s14, 1
    %p100 = por %p98, %p99
    %p101 = scmp.ne.s32.totalorder %s90, %s91
    %p102 = scmp.eq.s32.totalorder %s14, 0
    %p103 = por %p101, %p102
    %p104 = scmp.ne.s32.totalorder %s90, %s91
    %p105 = scmp.eq.s32.totalorder %s15, 1
    %p106 = por %p104, %p105
    %p108 = scmp.ne.s32.totalorder %s91, %s107
    %p109 = scmp.eq.s32.totalorder %s15, 0
    %p110 = por %p108, %p109
    %p111 = scmp.le.s32.totalorder 1, %s9
    %p112 = scmp.lt.s32.totalorder %s9, 3
    %p113 = pnand %p111, %p112
    %p114 = pneg %p113
    // Predicated region
    $region9: #{discriminator_forward.3} parent=5 // pred_check
      _
    $region10: #{discriminator_forward.3} parent=5 // pred_check_branch
      %116 = sbr.rel (%p113) target = $region12
    $region11: #{discriminator_forward.3} parent=5 // pred_region
      %s117 = ssub.s32 %s9, 1
      // Predicated region
      $region13: #{discriminator_forward.3} parent=11 // pred_check
        %p118 = pneg %p56
      $region14: #{discriminator_forward.3} parent=11 // pred_check_branch
        %120 = sbr.rel (%p118) target = $region16
      $region15: #{discriminator_forward.3} parent=11 // pred_region
        _
      $region16: #{discriminator_forward.3} parent=11 // pred_fallthru
        _
      // Predicated region
      $region17: #{discriminator_forward.3} parent=11 // pred_check
        %p121 = pneg %p77
      $region18: #{discriminator_forward.3} parent=11 // pred_check_branch
        %123 = sbr.rel (%p121) target = $region20
      $region19: #{discriminator_forward.3} parent=11 // pred_region
        _
      $region20: #{discriminator_forward.3} parent=11 // pred_fallthru
        _
    $region12: #{discriminator_forward.3} parent=5 // pred_fallthru
      _
    %p124 = scmp.lt.s32.totalorder %s9, 2
    // Predicated region
    $region21: #{discriminator_forward.3} parent=5 // pred_check
      %p125 = pneg %p124
    $region22: #{discriminator_forward.3} parent=5 // pred_check_branch
      %127 = sbr.rel (%p125) target = $region24
    $region23: #{discriminator_forward.3} parent=5 // pred_region
      // Predicated region
      $region25: #{discriminator_forward.3} parent=23 // pred_check
        %p128 = pneg %p29
      $region26: #{discriminator_forward.3} parent=23 // pred_check_branch
        %130 = sbr.rel (%p128) target = $region28
      $region27: #{discriminator_forward.3} parent=23 // pred_region
        %p131 = scmp.lt.s32.totalorder %s9, 1
        %s132 = scalar_select %p131, %s9, 1
        %s133 = smul.addr %s132, 14
        %s134 = smul.addr %s133, 8
        %s135 = scalar_lea.vmem %s0, %s134
      $region28: #{discriminator_forward.3} parent=23 // pred_fallthru
        _
    $region24: #{discriminator_forward.3} parent=5 // pred_fallthru
      _
    %p136 = scmp.le.s32.totalorder 1, %s9
    %p137 = scmp.lt.s32.totalorder %s9, 3
    %p138 = pnand %p136, %p137
    %p139 = pneg %p138
    // Predicated region
    $region29: #{discriminator_forward.3} parent=5 // pred_check
      _
    $region30: #{discriminator_forward.3} parent=5 // pred_check_branch
      %141 = sbr.rel (%p138) target = $region32
    $region31: #{discriminator_forward.3} parent=5 // pred_region
      %s142 = ssub.s32 %s9, 1
      %p143 = scmp.lt.s32.totalorder %s14, 1
      %s144 = scalar_select %p143, %s14, 1
      %s145 = smul.addr %s144, 14
      %s146 = smul.addr %s145, 8
      %s147 = scalar_lea.vmem %s0, %s146
      %p148 = pneg %p35
      %p149 = pneg %p32
      %p150 = pneg %p56
      %p151 = pneg %p53
      %p152 = pneg %p77
      %p153 = pneg %p74
      %p154 = pneg %p103
      %p155 = pneg %p100
      %p156 = scmp.lt.s32.totalorder %s14, 1
      %s157 = scalar_select %p156, %s14, 1
      %s158 = smul.addr %s157, 9
      %s159 = smul.addr %s158, 8
      %s160 = scalar_lea.vmem %s3, %s159
      %p161 = scmp.lt.s32.totalorder %s14, 1
      %s162 = scalar_select %p161, %s14, 1
      %s163 = smul.addr %s162, 14
      %s164 = smul.addr %s163, 8
      %s165 = scalar_lea.vmem %s0, %s164
      %p166 = scmp.lt.s32.totalorder %s14, 1
      %s167 = scalar_select %p166, %s14, 1
      %s168 = smul.addr %s167, 9
      %s169 = smul.addr %s168, 8
      %s170 = scalar_lea.vmem %s3, %s169
      %v171 = vld [vmem:[%s165] sm:$0xff]
      %v172 = vld [vmem:[%s165 + $0x8] sm:$0xff]
      %v173 = vld [vmem:[%s165 + $0x10] sm:$0xff]
      %v174 = vld [vmem:[%s165 + $0x18] sm:$0xff]
      %v175 = vld [vmem:[%s165 + $0x20] sm:$0xff]
      %v176 = vld [vmem:[%s165 + $0x28] sm:$0xff]
      %v177 = vld [vmem:[%s165 + $0x30] sm:$0xff]
      %v178 = vld [vmem:[%s165 + $0x38] sm:$0xff]
      %v179 = vld [vmem:[%s165 + $0x40] sm:$0xff]
      %v180 = vld [vmem:[%s1] sm:$0xff]
      %v181 = vld [vmem:[%s1 + $0x8] sm:$0xff]
      %v182 = vld [vmem:[%s1 + $0x10] sm:$0xff]
      %v183 = vld [vmem:[%s1 + $0x18] sm:$0xff]
      %v184 = vld [vmem:[%s1 + $0x20] sm:$0xff]
      %v185 = vld [vmem:[%s1 + $0x28] sm:$0xff]
      %v186 = vld [vmem:[%s1 + $0x30] sm:$0xff]
      %v187 = vld [vmem:[%s1 + $0x38] sm:$0xff]
      %v188 = vld [vmem:[%s1 + $0x40] sm:$0xff]
      %v189 = vld [vmem:[%s1 + $0x48] sm:$0xff]
      %v190 = vld [vmem:[%s1 + $0x50] sm:$0xff]
      %v191 = vld [vmem:[%s1 + $0x58] sm:$0xff]
      %v192 = vld [vmem:[%s1 + $0x60] sm:$0xff]
      %v193 = vld [vmem:[%s1 + $0x68] sm:$0xff]
      %v194 = vld [vmem:[%s1 + $0x70] sm:$0xff]
      %v195 = vld [vmem:[%s1 + $0x78] sm:$0xff]
      %v196 = vld [vmem:[%s165 + $0x1] sm:$0xff]
      %v197 = vld [vmem:[%s165 + $0x9] sm:$0xff]
      %v198 = vld [vmem:[%s165 + $0x11] sm:$0xff]
      %v199 = vld [vmem:[%s165 + $0x19] sm:$0xff]
      %v200 = vld [vmem:[%s165 + $0x21] sm:$0xff]
      %v201 = vld [vmem:[%s165 + $0x29] sm:$0xff]
      %v202 = vld [vmem:[%s165 + $0x31] sm:$0xff]
      %v203 = vld [vmem:[%s165 + $0x39] sm:$0xff]
      %v204 = vld [vmem:[%s165 + $0x41] sm:$0xff]
      %s205 = scalar_lea.vmem %s1, 128
      %v206 = vld [vmem:[%s205] sm:$0xff]
      %v207 = vld [vmem:[%s205 + $0x8] sm:$0xff]
      %v208 = vld [vmem:[%s205 + $0x10] sm:$0xff]
      %v209 = vld [vmem:[%s205 + $0x18] sm:$0xff]
      %v210 = vld [vmem:[%s205 + $0x20] sm:$0xff]
      %v211 = vld [vmem:[%s205 + $0x28] sm:$0xff]
      %v212 = vld [vmem:[%s205 + $0x30] sm:$0xff]
      %v213 = vld [vmem:[%s205 + $0x38] sm:$0xff]
      %v214 = vld [vmem:[%s205 + $0x40] sm:$0xff]
      %v215 = vld [vmem:[%s205 + $0x48] sm:$0xff]
      %v216 = vld [vmem:[%s205 + $0x50] sm:$0xff]
      %v217 = vld [vmem:[%s205 + $0x58] sm:$0xff]
      %v218 = vld [vmem:[%s205 + $0x60] sm:$0xff]
      %v219 = vld [vmem:[%s205 + $0x68] sm:$0xff]
      %v220 = vld [vmem:[%s205 + $0x70] sm:$0xff]
      %v221 = vld [vmem:[%s205 + $0x78] sm:$0xff]
      %222 = vmatprep.subr.mxu0 0.0
      %223 = vmatpush1.msra.mxu0 %v206
      %224 = vmatprep.subr.mxu0 0.0
      %225 = vmatpush1.msra.mxu0 %v207
      %226 = vmatprep.subr.mxu0 0.0
      %227 = vmatpush1.msra.mxu0 %v208
      %228 = vmatprep.subr.mxu0 0.0
      %229 = vmatpush1.msra.mxu0 %v209
      %230 = vmatprep.subr.mxu0 0.0
      %231 = vmatpush1.msra.mxu0 %v210
      %232 = vmatprep.subr.mxu0 0.0
      %233 = vmatpush1.msra.mxu0 %v211
      %234 = vmatprep.subr.mxu0 0.0
      %235 = vmatpush1.msra.mxu0 %v212
      %236 = vmatprep.subr.mxu0 0.0
      %237 = vmatpush1.msra.mxu0 %v213
      %238 = vmatprep.subr.mxu0 0.0
      %239 = vmatpush1.msra.mxu0 %v214
      %240 = vmatprep.subr.mxu0 0.0
      %241 = vmatpush1.msra.mxu0 %v215
      %242 = vmatprep.subr.mxu0 0.0
      %243 = vmatpush1.msra.mxu0 %v216
      %244 = vmatprep.subr.mxu0 0.0
      %245 = vmatpush1.msra.mxu0 %v217
      %246 = vmatprep.subr.mxu0 0.0
      %247 = vmatpush1.msra.mxu0 %v218
      %248 = vmatprep.subr.mxu0 0.0
      %249 = vmatpush1.msra.mxu0 %v219
      %250 = vmatprep.subr.mxu0 0.0
      %251 = vmatpush1.msra.mxu0 %v220
      %252 = vmatprep.subr.mxu0 0.0
      %253 = vmatpush1.msra.mxu0 %v221
      %254 = vmatprep.subr.mxu0 0.0
      %255 = vmatpush1.msra.mxu0 0.0
      %256 = vmatprep.subr.mxu0 0.0
      %257 = vmatpush1.msra.mxu0 0.0
      %258 = vmatprep.subr.mxu0 0.0
      %259 = vmatpush1.msra.mxu0 0.0
      %260 = vmatprep.subr.mxu0 0.0
      %261 = vmatpush1.msra.mxu0 0.0
      %262 = vmatprep.subr.mxu0 0.0
      %263 = vmatpush1.msra.mxu0 0.0
      %264 = vmatprep.subr.mxu0 0.0
      %265 = vmatpush1.msra.mxu0 0.0
      %266 = vmatprep.subr.mxu0 0.0
      %267 = vmatpush1.msra.mxu0 0.0
      %268 = vmatprep.subr.mxu0 0.0
      %269 = vmatpush1.msra.mxu0 0.0
      %270 = vmatprep.subr.mxu0 0.0
      %271 = vmatpush1.msra.mxu0 0.0
      %272 = vmatprep.subr.mxu0 0.0
      %273 = vmatpush1.msra.mxu0 0.0
      %274 = vmatprep.subr.mxu0 0.0
      %275 = vmatpush1.msra.mxu0 0.0
      %276 = vmatprep.subr.mxu0 0.0
      %277 = vmatpush1.msra.mxu0 0.0
      %278 = vmatprep.subr.mxu0 0.0
      %279 = vmatpush1.msra.mxu0 0.0
      %280 = vmatprep.subr.mxu0 0.0
      %281 = vmatpush1.msra.mxu0 0.0
      %282 = vmatprep.subr.mxu0 0.0
      %283 = vmatpush1.msra.mxu0 0.0
      %284 = vmatprep.subr.mxu0 0.0
      %285 = vmatpush1.msra.mxu0 0.0
      %286 = vmatprep.mubr.f32.mxu0 0.0
      %287 = vmatmul.mubr.f32.gmra.mrb[0].mxu0 %v196
      %v288 = vpop.f32.mrb[0].mxu0
      %v289 = vadd.f32 0.0, %v288
      %v290 = vpop.f32.mrb[0].mxu0
      %291 = vmatprep.mubr.f32.mxu0 0.0
      %292 = vmatmul.mubr.f32.gmra.mrb[0].mxu0 %v197
      %v293 = vpop.f32.mrb[0].mxu0
      %v294 = vadd.f32 0.0, %v293
      %v295 = vpop.f32.mrb[0].mxu0
      %296 = vmatprep.mubr.f32.mxu0 0.0
      %297 = vmatmul.mubr.f32.gmra.mrb[0].mxu0 %v198
      %v298 = vpop.f32.mrb[0].mxu0
      %v299 = vadd.f32 0.0, %v298
      %v300 = vpop.f32.mrb[0].mxu0
      %301 = vmatprep.mubr.f32.mxu0 0.0
      %302 = vmatmul.mubr.f32.gmra.mrb[0].mxu0 %v199
      %v303 = vpop.f32.mrb[0].mxu0
      %v304 = vadd.f32 0.0, %v303
      %v305 = vpop.f32.mrb[0].mxu0
      %306 = vmatprep.mubr.f32.mxu0 0.0
      %307 = vmatmul.mubr.f32.gmra.mrb[0].mxu0 %v200
      %v308 = vpop.f32.mrb[0].mxu0
      %v309 = vadd.f32 0.0, %v308
      %v310 = vpop.f32.mrb[0].mxu0
      %311 = vmatprep.mubr.f32.mxu0 0.0
      %312 = vmatmul.mubr.f32.gmra.mrb[0].mxu0 %v201
      %v313 = vpop.f32.mrb[0].mxu0
      %v314 = vadd.f32 0.0, %v313
      %v315 = vpop.f32.mrb[0].mxu0
      %316 = vmatprep.mubr.f32.mxu0 0.0
      %317 = vmatmul.mubr.f32.gmra.mrb[0].mxu0 %v202
      %v318 = vpop.f32.mrb[0].mxu0
      %v319 = vadd.f32 0.0, %v318
      %v320 = vpop.f32.mrb[0].mxu0
      %321 = vmatprep.mubr.f32.mxu0 0.0
      %322 = vmatmul.mubr.f32.gmra.mrb[0].mxu0 %v203
      %v323 = vpop.f32.mrb[0].mxu0
      %v324 = vadd.f32 0.0, %v323
      %v325 = vpop.f32.mrb[0].mxu0
      %326 = vmatprep.mubr.f32.mxu0 0.0
      %327 = vmatmul.mubr.f32.gmra.mrb[0].mxu0 %v204
      %v328 = vpop.f32.mrb[0].mxu0
      %v329 = vadd.f32 0.0, %v328
      %v330 = vpop.f32.mrb[0].mxu0
      %331 = vdwg.mxu0
      %332 = vmatprep.subr.mxu0 0.0
      %333 = vmatpush1.msra.mxu0 %v180
      %334 = vmatprep.subr.mxu0 0.0
      %335 = vmatpush1.msra.mxu0 %v181
      %336 = vmatprep.subr.mxu0 0.0
      %337 = vmatpush1.msra.mxu0 %v182
      %338 = vmatprep.subr.mxu0 0.0
      %339 = vmatpush1.msra.mxu0 %v183
      %340 = vmatprep.subr.mxu0 0.0
      %341 = vmatpush1.msra.mxu0 %v184
      %342 = vmatprep.subr.mxu0 0.0
      %343 = vmatpush1.msra.mxu0 %v185
      %344 = vmatprep.subr.mxu0 0.0
      %345 = vmatpush1.msra.mxu0 %v186
      %346 = vmatprep.subr.mxu0 0.0
      %347 = vmatpush1.msra.mxu0 %v187
      %348 = vmatprep.subr.mxu0 0.0
      %349 = vmatpush1.msra.mxu0 %v188
      %350 = vmatprep.subr.mxu0 0.0
      %351 = vmatpush1.msra.mxu0 %v189
      %352 = vmatprep.subr.mxu0 0.0
      %353 = vmatpush1.msra.mxu0 %v190
      %354 = vmatprep.subr.mxu0 0.0
      %355 = vmatpush1.msra.mxu0 %v191
      %356 = vmatprep.subr.mxu0 0.0
      %357 = vmatpush1.msra.mxu0 %v192
      %358 = vmatprep.subr.mxu0 0.0
      %359 = vmatpush1.msra.mxu0 %v193
      %360 = vmatprep.subr.mxu0 0.0
      %361 = vmatpush1.msra.mxu0 %v194
      %362 = vmatprep.subr.mxu0 0.0
      %363 = vmatpush1.msra.mxu0 %v195
      %364 = vmatprep.subr.mxu0 0.0
      %365 = vmatpush1.msra.mxu0 0.0
      %366 = vmatprep.subr.mxu0 0.0
      %367 = vmatpush1.msra.mxu0 0.0
      %368 = vmatprep.subr.mxu0 0.0
      %369 = vmatpush1.msra.mxu0 0.0
      %370 = vmatprep.subr.mxu0 0.0
      %371 = vmatpush1.msra.mxu0 0.0
      %372 = vmatprep.subr.mxu0 0.0
      %373 = vmatpush1.msra.mxu0 0.0
      %374 = vmatprep.subr.mxu0 0.0
      %375 = vmatpush1.msra.mxu0 0.0
      %376 = vmatprep.subr.mxu0 0.0
      %377 = vmatpush1.msra.mxu0 0.0
      %378 = vmatprep.subr.mxu0 0.0
      %379 = vmatpush1.msra.mxu0 0.0
      %380 = vmatprep.subr.mxu0 0.0
      %381 = vmatpush1.msra.mxu0 0.0
      %382 = vmatprep.subr.mxu0 0.0
      %383 = vmatpush1.msra.mxu0 0.0
      %384 = vmatprep.subr.mxu0 0.0
      %385 = vmatpush1.msra.mxu0 0.0
      %386 = vmatprep.subr.mxu0 0.0
      %387 = vmatpush1.msra.mxu0 0.0
      %388 = vmatprep.subr.mxu0 0.0
      %389 = vmatpush1.msra.mxu0 0.0
      %390 = vmatprep.subr.mxu0 0.0
      %391 = vmatpush1.msra.mxu0 0.0
      %392 = vmatprep.subr.mxu0 0.0
      %393 = vmatpush1.msra.mxu0 0.0
      %394 = vmatprep.subr.mxu0 0.0
      %395 = vmatpush1.msra.mxu0 0.0
      %396 = vmatprep.mubr.f32.mxu0 0.0
      %397 = vmatmul.mubr.f32.gmra.mrb[0].mxu0 %v171
      %v398 = vpop.f32.mrb[0].mxu0
      %v399 = vadd.f32 %v289, %v398
      %v400 = vpop.f32.mrb[0].mxu0
      %401 = vmatprep.mubr.f32.mxu0 0.0
      %402 = vmatmul.mubr.f32.gmra.mrb[0].mxu0 %v172
      %v403 = vpop.f32.mrb[0].mxu0
      %v404 = vadd.f32 %v294, %v403
      %v405 = vpop.f32.mrb[0].mxu0
      %406 = vmatprep.mubr.f32.mxu0 0.0
      %407 = vmatmul.mubr.f32.gmra.mrb[0].mxu0 %v173
      %v408 = vpop.f32.mrb[0].mxu0
      %v409 = vadd.f32 %v299, %v408
      %v410 = vpop.f32.mrb[0].mxu0
      %411 = vmatprep.mubr.f32.mxu0 0.0
      %412 = vmatmul.mubr.f32.gmra.mrb[0].mxu0 %v174
      %v413 = vpop.f32.mrb[0].mxu0
      %v414 = vadd.f32 %v304, %v413
      %v415 = vpop.f32.mrb[0].mxu0
      %416 = vmatprep.mubr.f32.mxu0 0.0
      %417 = vmatmul.mubr.f32.gmra.mrb[0].mxu0 %v175
      %v418 = vpop.f32.mrb[0].mxu0
      %v419 = vadd.f32 %v309, %v418
      %v420 = vpop.f32.mrb[0].mxu0
      %421 = vmatprep.mubr.f32.mxu0 0.0
      %422 = vmatmul.mubr.f32.gmra.mrb[0].mxu0 %v176
      %v423 = vpop.f32.mrb[0].mxu0
      %v424 = vadd.f32 %v314, %v423
      %v425 = vpop.f32.mrb[0].mxu0
      %426 = vmatprep.mubr.f32.mxu0 0.0
      %427 = vmatmul.mubr.f32.gmra.mrb[0].mxu0 %v177
      %v428 = vpop.f32.mrb[0].mxu0
      %v429 = vadd.f32 %v319, %v428
      %v430 = vpop.f32.mrb[0].mxu0
      %431 = vmatprep.mubr.f32.mxu0 0.0
      %432 = vmatmul.mubr.f32.gmra.mrb[0].mxu0 %v178
      %v433 = vpop.f32.mrb[0].mxu0
      %v434 = vadd.f32 %v324, %v433
      %v435 = vpop.f32.mrb[0].mxu0
      %436 = vmatprep.mubr.f32.mxu0 0.0
      %437 = vmatmul.mubr.f32.gmra.mrb[0].mxu0 %v179
      %v438 = vpop.f32.mrb[0].mxu0
      %v439 = vadd.f32 %v329, %v438
      %v440 = vpop.f32.mrb[0].mxu0
      %441 = vdwg.mxu0
      %v442 = vld [vmem:[%s165 + $0x2] sm:$0xff]
      %v443 = vld [vmem:[%s165 + $0xa] sm:$0xff]
      %v444 = vld [vmem:[%s165 + $0x12] sm:$0xff]
      %v445 = vld [vmem:[%s165 + $0x1a] sm:$0xff]
      %v446 = vld [vmem:[%s165 + $0x22] sm:$0xff]
      %v447 = vld [vmem:[%s165 + $0x2a] sm:$0xff]
      %v448 = vld [vmem:[%s165 + $0x32] sm:$0xff]
      %v449 = vld [vmem:[%s165 + $0x3a] sm:$0xff]
      %v450 = vld [vmem:[%s165 + $0x42] sm:$0xff]
      %s451 = scalar_lea.vmem %s1, 256
      %v452 = vld [vmem:[%s451] sm:$0xff]
      %v453 = vld [vmem:[%s451 + $0x8] sm:$0xff]
      %v454 = vld [vmem:[%s451 + $0x10] sm:$0xff]
      %v455 = vld [vmem:[%s451 + $0x18] sm:$0xff]
      %v456 = vld [vmem:[%s451 + $0x20] sm:$0xff]
      %v457 = vld [vmem:[%s451 + $0x28] sm:$0xff]
      %v458 = vld [vmem:[%s451 + $0x30] sm:$0xff]
      %v459 = vld [vmem:[%s451 + $0x38] sm:$0xff]
      %v460 = vld [vmem:[%s451 + $0x40] sm:$0xff]
      %v461 = vld [vmem:[%s451 + $0x48] sm:$0xff]
      %v462 = vld [vmem:[%s451 + $0x50] sm:$0xff]
      %v463 = vld [vmem:[%s451 + $0x58] sm:$0xff]
      %v464 = vld [vmem:[%s451 + $0x60] sm:$0xff]
      %v465 = vld [vmem:[%s451 + $0x68] sm:$0xff]
      %v466 = vld [vmem:[%s451 + $0x70] sm:$0xff]
      %v467 = vld [vmem:[%s451 + $0x78] sm:$0xff]
      %468 = vmatprep.subr.mxu0 0.0
      %469 = vmatpush1.msra.mxu0 %v452
      %470 = vmatprep.subr.mxu0 0.0
      %471 = vmatpush1.msra.mxu0 %v453
      %472 = vmatprep.subr.mxu0 0.0
      %473 = vmatpush1.msra.mxu0 %v454
      %474 = vmatprep.subr.mxu0 0.0
      %475 = vmatpush1.msra.mxu0 %v455
      %476 = vmatprep.subr.mxu0 0.0
      %477 = vmatpush1.msra.mxu0 %v456
      %478 = vmatprep.subr.mxu0 0.0
      %479 = vmatpush1.msra.mxu0 %v457
      %480 = vmatprep.subr.mxu0 0.0
      %481 = vmatpush1.msra.mxu0 %v458
      %482 = vmatprep.subr.mxu0 0.0
      %483 = vmatpush1.msra.mxu0 %v459
      %484 = vmatprep.subr.mxu0 0.0
      %485 = vmatpush1.msra.mxu0 %v460
      %486 = vmatprep.subr.mxu0 0.0
      %487 = vmatpush1.msra.mxu0 %v461
      %488 = vmatprep.subr.mxu0 0.0
      %489 = vmatpush1.msra.mxu0 %v462
      %490 = vmatprep.subr.mxu0 0.0
      %491 = vmatpush1.msra.mxu0 %v463
      %492 = vmatprep.subr.mxu0 0.0
      %493 = vmatpush1.msra.mxu0 %v464
      %494 = vmatprep.subr.mxu0 0.0
      %495 = vmatpush1.msra.mxu0 %v465
      %496 = vmatprep.subr.mxu0 0.0
      %497 = vmatpush1.msra.mxu0 %v466
      %498 = vmatprep.subr.mxu0 0.0
      %499 = vmatpush1.msra.mxu0 %v467
      %500 = vmatprep.subr.mxu0 0.0
      %501 = vmatpush1.msra.mxu0 0.0
      %502 = vmatprep.subr.mxu0 0.0
      %503 = vmatpush1.msra.mxu0 0.0
      %504 = vmatprep.subr.mxu0 0.0
      %505 = vmatpush1.msra.mxu0 0.0
      %506 = vmatprep.subr.mxu0 0.0
      %507 = vmatpush1.msra.mxu0 0.0
      %508 = vmatprep.subr.mxu0 0.0
      %509 = vmatpush1.msra.mxu0 0.0
      %510 = vmatprep.subr.mxu0 0.0
      %511 = vmatpush1.msra.mxu0 0.0
      %512 = vmatprep.subr.mxu0 0.0
      %513 = vmatpush1.msra.mxu0 0.0
      %514 = vmatprep.subr.mxu0 0.0
      %515 = vmatpush1.msra.mxu0 0.0
      %516 = vmatprep.subr.mxu0 0.0
      %517 = vmatpush1.msra.mxu0 0.0
      %518 = vmatprep.subr.mxu0 0.0
      %519 = vmatpush1.msra.mxu0 0.0
      %520 = vmatprep.subr.mxu0 0.0
      %521 = vmatpush1.msra.mxu0 0.0
      %522 = vmatprep.subr.mxu0 0.0
      %523 = vmatpush1.msra.mxu0 0.0
      %524 = vmatprep.subr.mxu0 0.0
      %525 = vmatpush1.msra.mxu0 0.0
      %526 = vmatprep.subr.mxu0 0.0
      %527 = vmatpush1.msra.mxu0 0.0
      %528 = vmatprep.subr.mxu0 0.0
      %529 = vmatpush1.msra.mxu0 0.0
      %530 = vmatprep.subr.mxu0 0.0
      %531 = vmatpush1.msra.mxu0 0.0
      %532 = vmatprep.mubr.f32.mxu0 0.0
      %533 = vmatmul.mubr.f32.gmra.mrb[0].mxu0 %v442
      %v534 = vpop.f32.mrb[0].mxu0
      %v535 = vadd.f32 0.0, %v534
      %v536 = vpop.f32.mrb[0].mxu0
      %537 = vmatprep.mubr.f32.mxu0 0.0
      %538 = vmatmul.mubr.f32.gmra.mrb[0].mxu0 %v443
      %v539 = vpop.f32.mrb[0].mxu0
      %v540 = vadd.f32 0.0, %v539
      %v541 = vpop.f32.mrb[0].mxu0
      %542 = vmatprep.mubr.f32.mxu0 0.0
      %543 = vmatmul.mubr.f32.gmra.mrb[0].mxu0 %v444
      %v544 = vpop.f32.mrb[0].mxu0
      %v545 = vadd.f32 0.0, %v544
      %v546 = vpop.f32.mrb[0].mxu0
      %547 = vmatprep.mubr.f32.mxu0 0.0
      %548 = vmatmul.mubr.f32.gmra.mrb[0].mxu0 %v445
      %v549 = vpop.f32.mrb[0].mxu0
      %v550 = vadd.f32 0.0, %v549
      %v551 = vpop.f32.mrb[0].mxu0
      %552 = vmatprep.mubr.f32.mxu0 0.0
      %553 = vmatmul.mubr.f32.gmra.mrb[0].mxu0 %v446
      %v554 = vpop.f32.mrb[0].mxu0
      %v555 = vadd.f32 0.0, %v554
      %v556 = vpop.f32.mrb[0].mxu0
      %557 = vmatprep.mubr.f32.mxu0 0.0
      %558 = vmatmul.mubr.f32.gmra.mrb[0].mxu0 %v447
      %v559 = vpop.f32.mrb[0].mxu0
      %v560 = vadd.f32 0.0, %v559
      %v561 = vpop.f32.mrb[0].mxu0
      %562 = vmatprep.mubr.f32.mxu0 0.0
      %563 = vmatmul.mubr.f32.gmra.mrb[0].mxu0 %v448
      %v564 = vpop.f32.mrb[0].mxu0
      %v565 = vadd.f32 0.0, %v564
      %v566 = vpop.f32.mrb[0].mxu0
      %567 = vmatprep.mubr.f32.mxu0 0.0
      %568 = vmatmul.mubr.f32.gmra.mrb[0].mxu0 %v449
      %v569 = vpop.f32.mrb[0].mxu0
      %v570 = vadd.f32 0.0, %v569
      %v571 = vpop.f32.mrb[0].mxu0
      %572 = vmatprep.mubr.f32.mxu0 0.0
      %573 = vmatmul.mubr.f32.gmra.mrb[0].mxu0 %v450
      %v574 = vpop.f32.mrb[0].mxu0
      %v575 = vadd.f32 0.0, %v574
      %v576 = vpop.f32.mrb[0].mxu0
      %577 = vdwg.mxu0
      %v578 = vadd.f32 %v399, %v535
      %v579 = vadd.f32 %v404, %v540
      %v580 = vadd.f32 %v409, %v545
      %v581 = vadd.f32 %v414, %v550
      %v582 = vadd.f32 %v419, %v555
      %v583 = vadd.f32 %v424, %v560
      %v584 = vadd.f32 %v429, %v565
      %v585 = vadd.f32 %v434, %v570
      %v586 = vadd.f32 %v439, %v575
      %v587 = vld [vmem:[%s165 + $0x3] sm:$0xff]
      %v588 = vld [vmem:[%s165 + $0xb] sm:$0xff]
      %v589 = vld [vmem:[%s165 + $0x13] sm:$0xff]
      %v590 = vld [vmem:[%s165 + $0x1b] sm:$0xff]
      %v591 = vld [vmem:[%s165 + $0x23] sm:$0xff]
      %v592 = vld [vmem:[%s165 + $0x2b] sm:$0xff]
      %v593 = vld [vmem:[%s165 + $0x33] sm:$0xff]
      %v594 = vld [vmem:[%s165 + $0x3b] sm:$0xff]
      %v595 = vld [vmem:[%s165 + $0x43] sm:$0xff]
      %s596 = scalar_lea.vmem %s1, 384
      %v597 = vld [vmem:[%s596] sm:$0xff]
      %v598 = vld [vmem:[%s596 + $0x8] sm:$0xff]
      %v599 = vld [vmem:[%s596 + $0x10] sm:$0xff]
      %v600 = vld [vmem:[%s596 + $0x18] sm:$0xff]
      %v601 = vld [vmem:[%s596 + $0x20] sm:$0xff]
      %v602 = vld [vmem:[%s596 + $0x28] sm:$0xff]
      %v603 = vld [vmem:[%s596 + $0x30] sm:$0xff]
      %v604 = vld [vmem:[%s596 + $0x38] sm:$0xff]
      %v605 = vld [vmem:[%s596 + $0x40] sm:$0xff]
      %v606 = vld [vmem:[%s596 + $0x48] sm:$0xff]
      %v607 = vld [vmem:[%s596 + $0x50] sm:$0xff]
      %v608 = vld [vmem:[%s596 + $0x58] sm:$0xff]
      %v609 = vld [vmem:[%s596 + $0x60] sm:$0xff]
      %v610 = vld [vmem:[%s596 + $0x68] sm:$0xff]
      %v611 = vld [vmem:[%s596 + $0x70] sm:$0xff]
      %v612 = vld [vmem:[%s596 + $0x78] sm:$0xff]
      %613 = vmatprep.subr.mxu0 0.0
      %614 = vmatpush1.msra.mxu0 %v597
      %615 = vmatprep.subr.mxu0 0.0
      %616 = vmatpush1.msra.mxu0 %v598
      %617 = vmatprep.subr.mxu0 0.0
      %618 = vmatpush1.msra.mxu0 %v599
      %619 = vmatprep.subr.mxu0 0.0
      %620 = vmatpush1.msra.mxu0 %v600
      %621 = vmatprep.subr.mxu0 0.0
      %622 = vmatpush1.msra.mxu0 %v601
      %623 = vmatprep.subr.mxu0 0.0
      %624 = vmatpush1.msra.mxu0 %v602
      %625 = vmatprep.subr.mxu0 0.0
      %626 = vmatpush1.msra.mxu0 %v603
      %627 = vmatprep.subr.mxu0 0.0
      %628 = vmatpush1.msra.mxu0 %v604
      %629 = vmatprep.subr.mxu0 0.0
      %630 = vmatpush1.msra.mxu0 %v605
      %631 = vmatprep.subr.mxu0 0.0
      %632 = vmatpush1.msra.mxu0 %v606
      %633 = vmatprep.subr.mxu0 0.0
      %634 = vmatpush1.msra.mxu0 %v607
      %635 = vmatprep.subr.mxu0 0.0
      %636 = vmatpush1.msra.mxu0 %v608
      %637 = vmatprep.subr.mxu0 0.0
      %638 = vmatpush1.msra.mxu0 %v609
      %639 = vmatprep.subr.mxu0 0.0
      %640 = vmatpush1.msra.mxu0 %v610
      %641 = vmatprep.subr.mxu0 0.0
      %642 = vmatpush1.msra.mxu0 %v611
      %643 = vmatprep.subr.mxu0 0.0
      %644 = vmatpush1.msra.mxu0 %v612
      %645 = vmatprep.subr.mxu0 0.0
      %646 = vmatpush1.msra.mxu0 0.0
      %647 = vmatprep.subr.mxu0 0.0
      %648 = vmatpush1.msra.mxu0 0.0
      %649 = vmatprep.subr.mxu0 0.0
      %650 = vmatpush1.msra.mxu0 0.0
      %651 = vmatprep.subr.mxu0 0.0
      %652 = vmatpush1.msra.mxu0 0.0
      %653 = vmatprep.subr.mxu0 0.0
      %654 = vmatpush1.msra.mxu0 0.0
      %655 = vmatprep.subr.mxu0 0.0
      %656 = vmatpush1.msra.mxu0 0.0
      %657 = vmatprep.subr.mxu0 0.0
      %658 = vmatpush1.msra.mxu0 0.0
      %659 = vmatprep.subr.mxu0 0.0
      %660 = vmatpush1.msra.mxu0 0.0
      %661 = vmatprep.subr.mxu0 0.0
      %662 = vmatpush1.msra.mxu0 0.0
      %663 = vmatprep.subr.mxu0 0.0
      %664 = vmatpush1.msra.mxu0 0.0
      %665 = vmatprep.subr.mxu0 0.0
      %666 = vmatpush1.msra.mxu0 0.0
      %667 = vmatprep.subr.mxu0 0.0
      %668 = vmatpush1.msra.mxu0 0.0
      %669 = vmatprep.subr.mxu0 0.0
      %670 = vmatpush1.msra.mxu0 0.0
      %671 = vmatprep.subr.mxu0 0.0
      %672 = vmatpush1.msra.mxu0 0.0
      %673 = vmatprep.subr.mxu0 0.0
      %674 = vmatpush1.msra.mxu0 0.0
      %675 = vmatprep.subr.mxu0 0.0
      %676 = vmatpush1.msra.mxu0 0.0
      %677 = vmatprep.mubr.f32.mxu0 0.0
      %678 = vmatmul.mubr.f32.gmra.mrb[0].mxu0 %v587
      %v679 = vpop.f32.mrb[0].mxu0
      %v680 = vadd.f32 0.0, %v679
      %v681 = vpop.f32.mrb[0].mxu0
      %682 = vmatprep.mubr.f32.mxu0 0.0
      %683 = vmatmul.mubr.f32.gmra.mrb[0].mxu0 %v588
      %v684 = vpop.f32.mrb[0].mxu0
      %v685 = vadd.f32 0.0, %v684
      %v686 = vpop.f32.mrb[0].mxu0
      %687 = vmatprep.mubr.f32.mxu0 0.0
      %688 = vmatmul.mubr.f32.gmra.mrb[0].mxu0 %v589
      %v689 = vpop.f32.mrb[0].mxu0
      %v690 = vadd.f32 0.0, %v689
      %v691 = vpop.f32.mrb[0].mxu0
      %692 = vmatprep.mubr.f32.mxu0 0.0
      %693 = vmatmul.mubr.f32.gmra.mrb[0].mxu0 %v590
      %v694 = vpop.f32.mrb[0].mxu0
      %v695 = vadd.f32 0.0, %v694
      %v696 = vpop.f32.mrb[0].mxu0
      %697 = vmatprep.mubr.f32.mxu0 0.0
      %698 = vmatmul.mubr.f32.gmra.mrb[0].mxu0 %v591
      %v699 = vpop.f32.mrb[0].mxu0
      %v700 = vadd.f32 0.0, %v699
      %v701 = vpop.f32.mrb[0].mxu0
      %702 = vmatprep.mubr.f32.mxu0 0.0
      %703 = vmatmul.mubr.f32.gmra.mrb[0].mxu0 %v592
      %v704 = vpop.f32.mrb[0].mxu0
      %v705 = vadd.f32 0.0, %v704
      %v706 = vpop.f32.mrb[0].mxu0
      %707 = vmatprep.mubr.f32.mxu0 0.0
      %708 = vmatmul.mubr.f32.gmra.mrb[0].mxu0 %v593
      %v709 = vpop.f32.mrb[0].mxu0
      %v710 = vadd.f32 0.0, %v709
      %v711 = vpop.f32.mrb[0].mxu0
      %712 = vmatprep.mubr.f32.mxu0 0.0
      %713 = vmatmul.mubr.f32.gmra.mrb[0].mxu0 %v594
      %v714 = vpop.f32.mrb[0].mxu0
      %v715 = vadd.f32 0.0, %v714
      %v716 = vpop.f32.mrb[0].mxu0
      %717 = vmatprep.mubr.f32.mxu0 0.0
      %718 = vmatmul.mubr.f32.gmra.mrb[0].mxu0 %v595
      %v719 = vpop.f32.mrb[0].mxu0
      %v720 = vadd.f32 0.0, %v719
      %v721 = vpop.f32.mrb[0].mxu0
      %722 = vdwg.mxu0
      %v723 = vadd.f32 %v578, %v680
      %v724 = vadd.f32 %v579, %v685
      %v725 = vadd.f32 %v580, %v690
      %v726 = vadd.f32 %v581, %v695
      %v727 = vadd.f32 %v582, %v700
      %v728 = vadd.f32 %v583, %v705
      %v729 = vadd.f32 %v584, %v710
      %v730 = vadd.f32 %v585, %v715
      %v731 = vadd.f32 %v586, %v720
      %v732 = vld [vmem:[%s165 + $0xa] sm:$0xff]
      %v733 = vld [vmem:[%s165 + $0x12] sm:$0xff]
      %v734 = vld [vmem:[%s165 + $0x1a] sm:$0xff]
      %v735 = vld [vmem:[%s165 + $0x22] sm:$0xff]
      %v736 = vld [vmem:[%s165 + $0x2a] sm:$0xff]
      %v737 = vld [vmem:[%s165 + $0x32] sm:$0xff]
      %v738 = vld [vmem:[%s165 + $0x3a] sm:$0xff]
      %v739 = vld [vmem:[%s165 + $0x42] sm:$0xff]
      %v740 = vld [vmem:[%s165 + $0x4a] sm:$0xff]
      %s741 = scalar_lea.vmem %s1, 512
      %v742 = vld [vmem:[%s741] sm:$0xff]
      %v743 = vld [vmem:[%s741 + $0x8] sm:$0xff]
      %v744 = vld [vmem:[%s741 + $0x10] sm:$0xff]
      %v745 = vld [vmem:[%s741 + $0x18] sm:$0xff]
      %v746 = vld [vmem:[%s741 + $0x20] sm:$0xff]
      %v747 = vld [vmem:[%s741 + $0x28] sm:$0xff]
      %v748 = vld [vmem:[%s741 + $0x30] sm:$0xff]
      %v749 = vld [vmem:[%s741 + $0x38] sm:$0xff]
      %v750 = vld [vmem:[%s741 + $0x40] sm:$0xff]
      %v751 = vld [vmem:[%s741 + $0x48] sm:$0xff]
      %v752 = vld [vmem:[%s741 + $0x50] sm:$0xff]
      %v753 = vld [vmem:[%s741 + $0x58] sm:$0xff]
      %v754 = vld [vmem:[%s741 + $0x60] sm:$0xff]
      %v755 = vld [vmem:[%s741 + $0x68] sm:$0xff]
      %v756 = vld [vmem:[%s741 + $0x70] sm:$0xff]
      %v757 = vld [vmem:[%s741 + $0x78] sm:$0xff]
      %758 = vmatprep.subr.mxu0 0.0
      %759 = vmatpush1.msra.mxu0 %v742
      %760 = vmatprep.subr.mxu0 0.0
      %761 = vmatpush1.msra.mxu0 %v743
      %762 = vmatprep.subr.mxu0 0.0
      %763 = vmatpush1.msra.mxu0 %v744
      %764 = vmatprep.subr.mxu0 0.0
      %765 = vmatpush1.msra.mxu0 %v745
      %766 = vmatprep.subr.mxu0 0.0
      %767 = vmatpush1.msra.mxu0 %v746
      %768 = vmatprep.subr.mxu0 0.0
      %769 = vmatpush1.msra.mxu0 %v747
      %770 = vmatprep.subr.mxu0 0.0
      %771 = vmatpush1.msra.mxu0 %v748
      %772 = vmatprep.subr.mxu0 0.0
      %773 = vmatpush1.msra.mxu0 %v749
      %774 = vmatprep.subr.mxu0 0.0
      %775 = vmatpush1.msra.mxu0 %v750
      %776 = vmatprep.subr.mxu0 0.0
      %777 = vmatpush1.msra.mxu0 %v751
      %778 = vmatprep.subr.mxu0 0.0
      %779 = vmatpush1.msra.mxu0 %v752
      %780 = vmatprep.subr.mxu0 0.0
      %781 = vmatpush1.msra.mxu0 %v753
      %782 = vmatprep.subr.mxu0 0.0
      %783 = vmatpush1.msra.mxu0 %v754
      %784 = vmatprep.subr.mxu0 0.0
      %785 = vmatpush1.msra.mxu0 %v755
      %786 = vmatprep.subr.mxu0 0.0
      %787 = vmatpush1.msra.mxu0 %v756
      %788 = vmatprep.subr.mxu0 0.0
      %789 = vmatpush1.msra.mxu0 %v757
      %790 = vmatprep.subr.mxu0 0.0
      %791 = vmatpush1.msra.mxu0 0.0
      %792 = vmatprep.subr.mxu0 0.0
      %793 = vmatpush1.msra.mxu0 0.0
      %794 = vmatprep.subr.mxu0 0.0
      %795 = vmatpush1.msra.mxu0 0.0
      %796 = vmatprep.subr.mxu0 0.0
      %797 = vmatpush1.msra.mxu0 0.0
      %798 = vmatprep.subr.mxu0 0.0
      %799 = vmatpush1.msra.mxu0 0.0
      %800 = vmatprep.subr.mxu0 0.0
      %801 = vmatpush1.msra.mxu0 0.0
      %802 = vmatprep.subr.mxu0 0.0
      %803 = vmatpush1.msra.mxu0 0.0
      %804 = vmatprep.subr.mxu0 0.0
      %805 = vmatpush1.msra.mxu0 0.0
      %806 = vmatprep.subr.mxu0 0.0
      %807 = vmatpush1.msra.mxu0 0.0
      %808 = vmatprep.subr.mxu0 0.0
      %809 = vmatpush1.msra.mxu0 0.0
      %810 = vmatprep.subr.mxu0 0.0
      %811 = vmatpush1.msra.mxu0 0.0
      %812 = vmatprep.subr.mxu0 0.0
      %813 = vmatpush1.msra.mxu0 0.0
      %814 = vmatprep.subr.mxu0 0.0
      %815 = vmatpush1.msra.mxu0 0.0
      %816 = vmatprep.subr.mxu0 0.0
      %817 = vmatpush1.msra.mxu0 0.0
      %818 = vmatprep.subr.mxu0 0.0
      %819 = vmatpush1.msra.mxu0 0.0
      %820 = vmatprep.subr.mxu0 0.0
      %821 = vmatpush1.msra.mxu0 0.0
      %822 = vmatprep.mubr.f32.mxu0 0.0
      %823 = vmatmul.mubr.f32.gmra.mrb[0].mxu0 %v732
      %v824 = vpop.f32.mrb[0].mxu0
      %v825 = vadd.f32 0.0, %v824
      %v826 = vpop.f32.mrb[0].mxu0
      %827 = vmatprep.mubr.f32.mxu0 0.0
      %828 = vmatmul.mubr.f32.gmra.mrb[0].mxu0 %v733
      %v829 = vpop.f32.mrb[0].mxu0
      %v830 = vadd.f32 0.0, %v829
      %v831 = vpop.f32.mrb[0].mxu0
      %832 = vmatprep.mubr.f32.mxu0 0.0
      %833 = vmatmul.mubr.f32.gmra.mrb[0].mxu0 %v734
      %v834 = vpop.f32.mrb[0].mxu0
      %v835 = vadd.f32 0.0, %v834
      %v836 = vpop.f32.mrb[0].mxu0
      %837 = vmatprep.mubr.f32.mxu0 0.0
      %838 = vmatmul.mubr.f32.gmra.mrb[0].mxu0 %v735
      %v839 = vpop.f32.mrb[0].mxu0
      %v840 = vadd.f32 0.0, %v839
      %v841 = vpop.f32.mrb[0].mxu0
      %842 = vmatprep.mubr.f32.mxu0 0.0
      %843 = vmatmul.mubr.f32.gmra.mrb[0].mxu0 %v736
      %v844 = vpop.f32.mrb[0].mxu0
      %v845 = vadd.f32 0.0, %v844
      %v846 = vpop.f32.mrb[0].mxu0
      %847 = vmatprep.mubr.f32.mxu0 0.0
      %848 = vmatmul.mubr.f32.gmra.mrb[0].mxu0 %v737
      %v849 = vpop.f32.mrb[0].mxu0
      %v850 = vadd.f32 0.0, %v849
      %v851 = vpop.f32.mrb[0].mxu0
      %852 = vmatprep.mubr.f32.mxu0 0.0
      %853 = vmatmul.mubr.f32.gmra.mrb[0].mxu0 %v738
      %v854 = vpop.f32.mrb[0].mxu0
      %v855 = vadd.f32 0.0, %v854
      %v856 = vpop.f32.mrb[0].mxu0
      %857 = vmatprep.mubr.f32.mxu0 0.0
      %858 = vmatmul.mubr.f32.gmra.mrb[0].mxu0 %v739
      %v859 = vpop.f32.mrb[0].mxu0
      %v860 = vadd.f32 0.0, %v859
      %v861 = vpop.f32.mrb[0].mxu0
      %862 = vmatprep.mubr.f32.mxu0 0.0
      %863 = vmatmul.mubr.f32.gmra.mrb[0].mxu0 %v740
      %v864 = vpop.f32.mrb[0].mxu0
      %v865 = vadd.f32 0.0, %v864
      %v866 = vpop.f32.mrb[0].mxu0
      %867 = vdwg.mxu0
      %v868 = vadd.f32 %v723, %v825
      %v869 = vadd.f32 %v724, %v830
      %v870 = vadd.f32 %v725, %v835
      %v871 = vadd.f32 %v726, %v840
      %v872 = vadd.f32 %v727, %v845
      %v873 = vadd.f32 %v728, %v850
      %v874 = vadd.f32 %v729, %v855
      %v875 = vadd.f32 %v730, %v860
      %v876 = vadd.f32 %v731, %v865
      %v877 = vld [vmem:[%s165 + $0xb] sm:$0xff]
      %v878 = vld [vmem:[%s165 + $0x13] sm:$0xff]
      %v879 = vld [vmem:[%s165 + $0x1b] sm:$0xff]
      %v880 = vld [vmem:[%s165 + $0x23] sm:$0xff]
      %v881 = vld [vmem:[%s165 + $0x2b] sm:$0xff]
      %v882 = vld [vmem:[%s165 + $0x33] sm:$0xff]
      %v883 = vld [vmem:[%s165 + $0x3b] sm:$0xff]
      %v884 = vld [vmem:[%s165 + $0x43] sm:$0xff]
      %v885 = vld [vmem:[%s165 + $0x4b] sm:$0xff]
      %s886 = scalar_lea.vmem %s1, 640
      %v887 = vld [vmem:[%s886] sm:$0xff]
      %v888 = vld [vmem:[%s886 + $0x8] sm:$0xff]
      %v889 = vld [vmem:[%s886 + $0x10] sm:$0xff]
      %v890 = vld [vmem:[%s886 + $0x18] sm:$0xff]
      %v891 = vld [vmem:[%s886 + $0x20] sm:$0xff]
      %v892 = vld [vmem:[%s886 + $0x28] sm:$0xff]
      %v893 = vld [vmem:[%s886 + $0x30] sm:$0xff]
      %v894 = vld [vmem:[%s886 + $0x38] sm:$0xff]
      %v895 = vld [vmem:[%s886 + $0x40] sm:$0xff]
      %v896 = vld [vmem:[%s886 + $0x48] sm:$0xff]
      %v897 = vld [vmem:[%s886 + $0x50] sm:$0xff]
      %v898 = vld [vmem:[%s886 + $0x58] sm:$0xff]
      %v899 = vld [vmem:[%s886 + $0x60] sm:$0xff]
      %v900 = vld [vmem:[%s886 + $0x68] sm:$0xff]
      %v901 = vld [vmem:[%s886 + $0x70] sm:$0xff]
      %v902 = vld [vmem:[%s886 + $0x78] sm:$0xff]
      %903 = vmatprep.subr.mxu0 0.0
      %904 = vmatpush1.msra.mxu0 %v887
      %905 = vmatprep.subr.mxu0 0.0
      %906 = vmatpush1.msra.mxu0 %v888
      %907 = vmatprep.subr.mxu0 0.0
      %908 = vmatpush1.msra.mxu0 %v889
      %909 = vmatprep.subr.mxu0 0.0
      %910 = vmatpush1.msra.mxu0 %v890
      %911 = vmatprep.subr.mxu0 0.0
      %912 = vmatpush1.msra.mxu0 %v891
      %913 = vmatprep.subr.mxu0 0.0
      %914 = vmatpush1.msra.mxu0 %v892
      %915 = vmatprep.subr.mxu0 0.0
      %916 = vmatpush1.msra.mxu0 %v893
      %917 = vmatprep.subr.mxu0 0.0
      %918 = vmatpush1.msra.mxu0 %v894
      %919 = vmatprep.subr.mxu0 0.0
      %920 = vmatpush1.msra.mxu0 %v895
      %921 = vmatprep.subr.mxu0 0.0
      %922 = vmatpush1.msra.mxu0 %v896
      %923 = vmatprep.subr.mxu0 0.0
      %924 = vmatpush1.msra.mxu0 %v897
      %925 = vmatprep.subr.mxu0 0.0
      %926 = vmatpush1.msra.mxu0 %v898
      %927 = vmatprep.subr.mxu0 0.0
      %928 = vmatpush1.msra.mxu0 %v899
      %929 = vmatprep.subr.mxu0 0.0
      %930 = vmatpush1.msra.mxu0 %v900
      %931 = vmatprep.subr.mxu0 0.0
      %932 = vmatpush1.msra.mxu0 %v901
      %933 = vmatprep.subr.mxu0 0.0
      %934 = vmatpush1.msra.mxu0 %v902
      %935 = vmatprep.subr.mxu0 0.0
      %936 = vmatpush1.msra.mxu0 0.0
      %937 = vmatprep.subr.mxu0 0.0
      %938 = vmatpush1.msra.mxu0 0.0
      %939 = vmatprep.subr.mxu0 0.0
      %940 = vmatpush1.msra.mxu0 0.0
      %941 = vmatprep.subr.mxu0 0.0
      %942 = vmatpush1.msra.mxu0 0.0
      %943 = vmatprep.subr.mxu0 0.0
      %944 = vmatpush1.msra.mxu0 0.0
      %945 = vmatprep.subr.mxu0 0.0
      %946 = vmatpush1.msra.mxu0 0.0
      %947 = vmatprep.subr.mxu0 0.0
      %948 = vmatpush1.msra.mxu0 0.0
      %949 = vmatprep.subr.mxu0 0.0
      %950 = vmatpush1.msra.mxu0 0.0
      %951 = vmatprep.subr.mxu0 0.0
      %952 = vmatpush1.msra.mxu0 0.0
      %953 = vmatprep.subr.mxu0 0.0
      %954 = vmatpush1.msra.mxu0 0.0
      %955 = vmatprep.subr.mxu0 0.0
      %956 = vmatpush1.msra.mxu0 0.0
      %957 = vmatprep.subr.mxu0 0.0
      %958 = vmatpush1.msra.mxu0 0.0
      %959 = vmatprep.subr.mxu0 0.0
      %960 = vmatpush1.msra.mxu0 0.0
      %961 = vmatprep.subr.mxu0 0.0
      %962 = vmatpush1.msra.mxu0 0.0
      %963 = vmatprep.subr.mxu0 0.0
      %964 = vmatpush1.msra.mxu0 0.0
      %965 = vmatprep.subr.mxu0 0.0
      %966 = vmatpush1.msra.mxu0 0.0
      %967 = vmatprep.mubr.f32.mxu0 0.0
      %968 = vmatmul.mubr.f32.gmra.mrb[0].mxu0 %v877
      %v969 = vpop.f32.mrb[0].mxu0
      %v970 = vadd.f32 0.0, %v969
      %v971 = vpop.f32.mrb[0].mxu0
      %972 = vmatprep.mubr.f32.mxu0 0.0
      %973 = vmatmul.mubr.f32.gmra.mrb[0].mxu0 %v878
      %v974 = vpop.f32.mrb[0].mxu0
      %v975 = vadd.f32 0.0, %v974
      %v976 = vpop.f32.mrb[0].mxu0
      %977 = vmatprep.mubr.f32.mxu0 0.0
      %978 = vmatmul.mubr.f32.gmra.mrb[0].mxu0 %v879
      %v979 = vpop.f32.mrb[0].mxu0
      %v980 = vadd.f32 0.0, %v979
      %v981 = vpop.f32.mrb[0].mxu0
      %982 = vmatprep.mubr.f32.mxu0 0.0
      %983 = vmatmul.mubr.f32.gmra.mrb[0].mxu0 %v880
      %v984 = vpop.f32.mrb[0].mxu0
      %v985 = vadd.f32 0.0, %v984
      %v986 = vpop.f32.mrb[0].mxu0
      %987 = vmatprep.mubr.f32.mxu0 0.0
      %988 = vmatmul.mubr.f32.gmra.mrb[0].mxu0 %v881
      %v989 = vpop.f32.mrb[0].mxu0
      %v990 = vadd.f32 0.0, %v989
      %v991 = vpop.f32.mrb[0].mxu0
      %992 = vmatprep.mubr.f32.mxu0 0.0
      %993 = vmatmul.mubr.f32.gmra.mrb[0].mxu0 %v882
      %v994 = vpop.f32.mrb[0].mxu0
      %v995 = vadd.f32 0.0, %v994
      %v996 = vpop.f32.mrb[0].mxu0
      %997 = vmatprep.mubr.f32.mxu0 0.0
      %998 = vmatmul.mubr.f32.gmra.mrb[0].mxu0 %v883
      %v999 = vpop.f32.mrb[0].mxu0
      %v1000 = vadd.f32 0.0, %v999
      %v1001 = vpop.f32.mrb[0].mxu0
      %1002 = vmatprep.mubr.f32.mxu0 0.0
      %1003 = vmatmul.mubr.f32.gmra.mrb[0].mxu0 %v884
      %v1004 = vpop.f32.mrb[0].mxu0
      %v1005 = vadd.f32 0.0, %v1004
      %v1006 = vpop.f32.mrb[0].mxu0
      %1007 = vmatprep.mubr.f32.mxu0 0.0
      %1008 = vmatmul.mubr.f32.gmra.mrb[0].mxu0 %v885
      %v1009 = vpop.f32.mrb[0].mxu0
      %v1010 = vadd.f32 0.0, %v1009
      %v1011 = vpop.f32.mrb[0].mxu0
      %1012 = vdwg.mxu0
      %v1013 = vadd.f32 %v868, %v970
      %v1014 = vadd.f32 %v869, %v975
      %v1015 = vadd.f32 %v870, %v980
      %v1016 = vadd.f32 %v871, %v985
      %v1017 = vadd.f32 %v872, %v990
      %v1018 = vadd.f32 %v873, %v995
      %v1019 = vadd.f32 %v874, %v1000
      %v1020 = vadd.f32 %v875, %v1005
      %v1021 = vadd.f32 %v876, %v1010
      %v1022 = vld [vmem:[%s165 + $0xc] sm:$0xff]
      %v1023 = vld [vmem:[%s165 + $0x14] sm:$0xff]
      %v1024 = vld [vmem:[%s165 + $0x1c] sm:$0xff]
      %v1025 = vld [vmem:[%s165 + $0x24] sm:$0xff]
      %v1026 = vld [vmem:[%s165 + $0x2c] sm:$0xff]
      %v1027 = vld [vmem:[%s165 + $0x34] sm:$0xff]
      %v1028 = vld [vmem:[%s165 + $0x3c] sm:$0xff]
      %v1029 = vld [vmem:[%s165 + $0x44] sm:$0xff]
      %v1030 = vld [vmem:[%s165 + $0x4c] sm:$0xff]
      %s1031 = scalar_lea.vmem %s1, 768
      %v1032 = vld [vmem:[%s1031] sm:$0xff]
      %v1033 = vld [vmem:[%s1031 + $0x8] sm:$0xff]
      %v1034 = vld [vmem:[%s1031 + $0x10] sm:$0xff]
      %v1035 = vld [vmem:[%s1031 + $0x18] sm:$0xff]
      %v1036 = vld [vmem:[%s1031 + $0x20] sm:$0xff]
      %v1037 = vld [vmem:[%s1031 + $0x28] sm:$0xff]
      %v1038 = vld [vmem:[%s1031 + $0x30] sm:$0xff]
      %v1039 = vld [vmem:[%s1031 + $0x38] sm:$0xff]
      %v1040 = vld [vmem:[%s1031 + $0x40] sm:$0xff]
      %v1041 = vld [vmem:[%s1031 + $0x48] sm:$0xff]
      %v1042 = vld [vmem:[%s1031 + $0x50] sm:$0xff]
      %v1043 = vld [vmem:[%s1031 + $0x58] sm:$0xff]
      %v1044 = vld [vmem:[%s1031 + $0x60] sm:$0xff]
      %v1045 = vld [vmem:[%s1031 + $0x68] sm:$0xff]
      %v1046 = vld [vmem:[%s1031 + $0x70] sm:$0xff]
      %v1047 = vld [vmem:[%s1031 + $0x78] sm:$0xff]
      %1048 = vmatprep.subr.mxu0 0.0
      %1049 = vmatpush1.msra.mxu0 %v1032
      %1050 = vmatprep.subr.mxu0 0.0
      %1051 = vmatpush1.msra.mxu0 %v1033
      %1052 = vmatprep.subr.mxu0 0.0
      %1053 = vmatpush1.msra.mxu0 %v1034
      %1054 = vmatprep.subr.mxu0 0.0
      %1055 = vmatpush1.msra.mxu0 %v1035
      %1056 = vmatprep.subr.mxu0 0.0
      %1057 = vmatpush1.msra.mxu0 %v1036
      %1058 = vmatprep.subr.mxu0 0.0
      %1059 = vmatpush1.msra.mxu0 %v1037
      %1060 = vmatprep.subr.mxu0 0.0
      %1061 = vmatpush1.msra.mxu0 %v1038
      %1062 = vmatprep.subr.mxu0 0.0
      %1063 = vmatpush1.msra.mxu0 %v1039
      %1064 = vmatprep.subr.mxu0 0.0
      %1065 = vmatpush1.msra.mxu0 %v1040
      %1066 = vmatprep.subr.mxu0 0.0
      %1067 = vmatpush1.msra.mxu0 %v1041
      %1068 = vmatprep.subr.mxu0 0.0
      %1069 = vmatpush1.msra.mxu0 %v1042
      %1070 = vmatprep.subr.mxu0 0.0
      %1071 = vmatpush1.msra.mxu0 %v1043
      %1072 = vmatprep.subr.mxu0 0.0
      %1073 = vmatpush1.msra.mxu0 %v1044
      %1074 = vmatprep.subr.mxu0 0.0
      %1075 = vmatpush1.msra.mxu0 %v1045
      %1076 = vmatprep.subr.mxu0 0.0
      %1077 = vmatpush1.msra.mxu0 %v1046
      %1078 = vmatprep.subr.mxu0 0.0
      %1079 = vmatpush1.msra.mxu0 %v1047
      %1080 = vmatprep.subr.mxu0 0.0
      %1081 = vmatpush1.msra.mxu0 0.0
      %1082 = vmatprep.subr.mxu0 0.0
      %1083 = vmatpush1.msra.mxu0 0.0
      %1084 = vmatprep.subr.mxu0 0.0
      %1085 = vmatpush1.msra.mxu0 0.0
      %1086 = vmatprep.subr.mxu0 0.0
      %1087 = vmatpush1.msra.mxu0 0.0
      %1088 = vmatprep.subr.mxu0 0.0
      %1089 = vmatpush1.msra.mxu0 0.0
      %1090 = vmatprep.subr.mxu0 0.0
      %1091 = vmatpush1.msra.mxu0 0.0
      %1092 = vmatprep.subr.mxu0 0.0
      %1093 = vmatpush1.msra.mxu0 0.0
      %1094 = vmatprep.subr.mxu0 0.0
      %1095 = vmatpush1.msra.mxu0 0.0
      %1096 = vmatprep.subr.mxu0 0.0
      %1097 = vmatpush1.msra.mxu0 0.0
      %1098 = vmatprep.subr.mxu0 0.0
      %1099 = vmatpush1.msra.mxu0 0.0
      %1100 = vmatprep.subr.mxu0 0.0
      %1101 = vmatpush1.msra.mxu0 0.0
      %1102 = vmatprep.subr.mxu0 0.0
      %1103 = vmatpush1.msra.mxu0 0.0
      %1104 = vmatprep.subr.mxu0 0.0
      %1105 = vmatpush1.msra.mxu0 0.0
      %1106 = vmatprep.subr.mxu0 0.0
      %1107 = vmatpush1.msra.mxu0 0.0
      %1108 = vmatprep.subr.mxu0 0.0
      %1109 = vmatpush1.msra.mxu0 0.0
      %1110 = vmatprep.subr.mxu0 0.0
      %1111 = vmatpush1.msra.mxu0 0.0
      %1112 = vmatprep.mubr.f32.mxu0 0.0
      %1113 = vmatmul.mubr.f32.gmra.mrb[0].mxu0 %v1022
      %v1114 = vpop.f32.mrb[0].mxu0
      %v1115 = vadd.f32 0.0, %v1114
      %v1116 = vpop.f32.mrb[0].mxu0
      %1117 = vmatprep.mubr.f32.mxu0 0.0
      %1118 = vmatmul.mubr.f32.gmra.mrb[0].mxu0 %v1023
      %v1119 = vpop.f32.mrb[0].mxu0
      %v1120 = vadd.f32 0.0, %v1119
      %v1121 = vpop.f32.mrb[0].mxu0
      %1122 = vmatprep.mubr.f32.mxu0 0.0
      %1123 = vmatmul.mubr.f32.gmra.mrb[0].mxu0 %v1024
      %v1124 = vpop.f32.mrb[0].mxu0
      %v1125 = vadd.f32 0.0, %v1124
      %v1126 = vpop.f32.mrb[0].mxu0
      %1127 = vmatprep.mubr.f32.mxu0 0.0
      %1128 = vmatmul.mubr.f32.gmra.mrb[0].mxu0 %v1025
      %v1129 = vpop.f32.mrb[0].mxu0
      %v1130 = vadd.f32 0.0, %v1129
      %v1131 = vpop.f32.mrb[0].mxu0
      %1132 = vmatprep.mubr.f32.mxu0 0.0
      %1133 = vmatmul.mubr.f32.gmra.mrb[0].mxu0 %v1026
      %v1134 = vpop.f32.mrb[0].mxu0
      %v1135 = vadd.f32 0.0, %v1134
      %v1136 = vpop.f32.mrb[0].mxu0
      %1137 = vmatprep.mubr.f32.mxu0 0.0
      %1138 = vmatmul.mubr.f32.gmra.mrb[0].mxu0 %v1027
      %v1139 = vpop.f32.mrb[0].mxu0
      %v1140 = vadd.f32 0.0, %v1139
      %v1141 = vpop.f32.mrb[0].mxu0
      %1142 = vmatprep.mubr.f32.mxu0 0.0
      %1143 = vmatmul.mubr.f32.gmra.mrb[0].mxu0 %v1028
      %v1144 = vpop.f32.mrb[0].mxu0
      %v1145 = vadd.f32 0.0, %v1144
      %v1146 = vpop.f32.mrb[0].mxu0
      %1147 = vmatprep.mubr.f32.mxu0 0.0
      %1148 = vmatmul.mubr.f32.gmra.mrb[0].mxu0 %v1029
      %v1149 = vpop.f32.mrb[0].mxu0
      %v1150 = vadd.f32 0.0, %v1149
      %v1151 = vpop.f32.mrb[0].mxu0
      %1152 = vmatprep.mubr.f32.mxu0 0.0
      %1153 = vmatmul.mubr.f32.gmra.mrb[0].mxu0 %v1030
      %v1154 = vpop.f32.mrb[0].mxu0
      %v1155 = vadd.f32 0.0, %v1154
      %v1156 = vpop.f32.mrb[0].mxu0
      %1157 = vdwg.mxu0
      %v1158 = vadd.f32 %v1013, %v1115
      %v1159 = vadd.f32 %v1014, %v1120
      %v1160 = vadd.f32 %v1015, %v1125
      %v1161 = vadd.f32 %v1016, %v1130
      %v1162 = vadd.f32 %v1017, %v1135
      %v1163 = vadd.f32 %v1018, %v1140
      %v1164 = vadd.f32 %v1019, %v1145
      %v1165 = vadd.f32 %v1020, %v1150
      %v1166 = vadd.f32 %v1021, %v1155
      %v1167 = vld [vmem:[%s165 + $0xd] sm:$0xff]
      %v1168 = vld [vmem:[%s165 + $0x15] sm:$0xff]
      %v1169 = vld [vmem:[%s165 + $0x1d] sm:$0xff]
      %v1170 = vld [vmem:[%s165 + $0x25] sm:$0xff]
      %v1171 = vld [vmem:[%s165 + $0x2d] sm:$0xff]
      %v1172 = vld [vmem:[%s165 + $0x35] sm:$0xff]
      %v1173 = vld [vmem:[%s165 + $0x3d] sm:$0xff]
      %v1174 = vld [vmem:[%s165 + $0x45] sm:$0xff]
      %v1175 = vld [vmem:[%s165 + $0x4d] sm:$0xff]
      %s1176 = scalar_lea.vmem %s1, 896
      %v1177 = vld [vmem:[%s1176] sm:$0xff]
      %v1178 = vld [vmem:[%s1176 + $0x8] sm:$0xff]
      %v1179 = vld [vmem:[%s1176 + $0x10] sm:$0xff]
      %v1180 = vld [vmem:[%s1176 + $0x18] sm:$0xff]
      %v1181 = vld [vmem:[%s1176 + $0x20] sm:$0xff]
      %v1182 = vld [vmem:[%s1176 + $0x28] sm:$0xff]
      %v1183 = vld [vmem:[%s1176 + $0x30] sm:$0xff]
      %v1184 = vld [vmem:[%s1176 + $0x38] sm:$0xff]
      %v1185 = vld [vmem:[%s1176 + $0x40] sm:$0xff]
      %v1186 = vld [vmem:[%s1176 + $0x48] sm:$0xff]
      %v1187 = vld [vmem:[%s1176 + $0x50] sm:$0xff]
      %v1188 = vld [vmem:[%s1176 + $0x58] sm:$0xff]
      %v1189 = vld [vmem:[%s1176 + $0x60] sm:$0xff]
      %v1190 = vld [vmem:[%s1176 + $0x68] sm:$0xff]
      %v1191 = vld [vmem:[%s1176 + $0x70] sm:$0xff]
      %v1192 = vld [vmem:[%s1176 + $0x78] sm:$0xff]
      %1193 = vmatprep.subr.mxu0 0.0
      %1194 = vmatpush1.msra.mxu0 %v1177
      %1195 = vmatprep.subr.mxu0 0.0
      %1196 = vmatpush1.msra.mxu0 %v1178
      %1197 = vmatprep.subr.mxu0 0.0
      %1198 = vmatpush1.msra.mxu0 %v1179
      %1199 = vmatprep.subr.mxu0 0.0
      %1200 = vmatpush1.msra.mxu0 %v1180
      %1201 = vmatprep.subr.mxu0 0.0
      %1202 = vmatpush1.msra.mxu0 %v1181
      %1203 = vmatprep.subr.mxu0 0.0
      %1204 = vmatpush1.msra.mxu0 %v1182
      %1205 = vmatprep.subr.mxu0 0.0
      %1206 = vmatpush1.msra.mxu0 %v1183
      %1207 = vmatprep.subr.mxu0 0.0
      %1208 = vmatpush1.msra.mxu0 %v1184
      %1209 = vmatprep.subr.mxu0 0.0
      %1210 = vmatpush1.msra.mxu0 %v1185
      %1211 = vmatprep.subr.mxu0 0.0
      %1212 = vmatpush1.msra.mxu0 %v1186
      %1213 = vmatprep.subr.mxu0 0.0
      %1214 = vmatpush1.msra.mxu0 %v1187
      %1215 = vmatprep.subr.mxu0 0.0
      %1216 = vmatpush1.msra.mxu0 %v1188
      %1217 = vmatprep.subr.mxu0 0.0
      %1218 = vmatpush1.msra.mxu0 %v1189
      %1219 = vmatprep.subr.mxu0 0.0
      %1220 = vmatpush1.msra.mxu0 %v1190
      %1221 = vmatprep.subr.mxu0 0.0
      %1222 = vmatpush1.msra.mxu0 %v1191
      %1223 = vmatprep.subr.mxu0 0.0
      %1224 = vmatpush1.msra.mxu0 %v1192
      %1225 = vmatprep.subr.mxu0 0.0
      %1226 = vmatpush1.msra.mxu0 0.0
      %1227 = vmatprep.subr.mxu0 0.0
      %1228 = vmatpush1.msra.mxu0 0.0
      %1229 = vmatprep.subr.mxu0 0.0
      %1230 = vmatpush1.msra.mxu0 0.0
      %1231 = vmatprep.subr.mxu0 0.0
      %1232 = vmatpush1.msra.mxu0 0.0
      %1233 = vmatprep.subr.mxu0 0.0
      %1234 = vmatpush1.msra.mxu0 0.0
      %1235 = vmatprep.subr.mxu0 0.0
      %1236 = vmatpush1.msra.mxu0 0.0
      %1237 = vmatprep.subr.mxu0 0.0
      %1238 = vmatpush1.msra.mxu0 0.0
      %1239 = vmatprep.subr.mxu0 0.0
      %1240 = vmatpush1.msra.mxu0 0.0
      %1241 = vmatprep.subr.mxu0 0.0
      %1242 = vmatpush1.msra.mxu0 0.0
      %1243 = vmatprep.subr.mxu0 0.0
      %1244 = vmatpush1.msra.mxu0 0.0
      %1245 = vmatprep.subr.mxu0 0.0
      %1246 = vmatpush1.msra.mxu0 0.0
      %1247 = vmatprep.subr.mxu0 0.0
      %1248 = vmatpush1.msra.mxu0 0.0
      %1249 = vmatprep.subr.mxu0 0.0
      %1250 = vmatpush1.msra.mxu0 0.0
      %1251 = vmatprep.subr.mxu0 0.0
      %1252 = vmatpush1.msra.mxu0 0.0
      %1253 = vmatprep.subr.mxu0 0.0
      %1254 = vmatpush1.msra.mxu0 0.0
      %1255 = vmatprep.subr.mxu0 0.0
      %1256 = vmatpush1.msra.mxu0 0.0
      %1257 = vmatprep.mubr.f32.mxu0 0.0
      %1258 = vmatmul.mubr.f32.gmra.mrb[0].mxu0 %v1167
      %v1259 = vpop.f32.mrb[0].mxu0
      %v1260 = vadd.f32 0.0, %v1259
      %v1261 = vpop.f32.mrb[0].mxu0
      %1262 = vmatprep.mubr.f32.mxu0 0.0
      %1263 = vmatmul.mubr.f32.gmra.mrb[0].mxu0 %v1168
      %v1264 = vpop.f32.mrb[0].mxu0
      %v1265 = vadd.f32 0.0, %v1264
      %v1266 = vpop.f32.mrb[0].mxu0
      %1267 = vmatprep.mubr.f32.mxu0 0.0
      %1268 = vmatmul.mubr.f32.gmra.mrb[0].mxu0 %v1169
      %v1269 = vpop.f32.mrb[0].mxu0
      %v1270 = vadd.f32 0.0, %v1269
      %v1271 = vpop.f32.mrb[0].mxu0
      %1272 = vmatprep.mubr.f32.mxu0 0.0
      %1273 = vmatmul.mubr.f32.gmra.mrb[0].mxu0 %v1170
      %v1274 = vpop.f32.mrb[0].mxu0
      %v1275 = vadd.f32 0.0, %v1274
      %v1276 = vpop.f32.mrb[0].mxu0
      %1277 = vmatprep.mubr.f32.mxu0 0.0
      %1278 = vmatmul.mubr.f32.gmra.mrb[0].mxu0 %v1171
      %v1279 = vpop.f32.mrb[0].mxu0
      %v1280 = vadd.f32 0.0, %v1279
      %v1281 = vpop.f32.mrb[0].mxu0
      %1282 = vmatprep.mubr.f32.mxu0 0.0
      %1283 = vmatmul.mubr.f32.gmra.mrb[0].mxu0 %v1172
      %v1284 = vpop.f32.mrb[0].mxu0
      %v1285 = vadd.f32 0.0, %v1284
      %v1286 = vpop.f32.mrb[0].mxu0
      %1287 = vmatprep.mubr.f32.mxu0 0.0
      %1288 = vmatmul.mubr.f32.gmra.mrb[0].mxu0 %v1173
      %v1289 = vpop.f32.mrb[0].mxu0
      %v1290 = vadd.f32 0.0, %v1289
      %v1291 = vpop.f32.mrb[0].mxu0
      %1292 = vmatprep.mubr.f32.mxu0 0.0
      %1293 = vmatmul.mubr.f32.gmra.mrb[0].mxu0 %v1174
      %v1294 = vpop.f32.mrb[0].mxu0
      %v1295 = vadd.f32 0.0, %v1294
      %v1296 = vpop.f32.mrb[0].mxu0
      %1297 = vmatprep.mubr.f32.mxu0 0.0
      %1298 = vmatmul.mubr.f32.gmra.mrb[0].mxu0 %v1175
      %v1299 = vpop.f32.mrb[0].mxu0
      %v1300 = vadd.f32 0.0, %v1299
      %v1301 = vpop.f32.mrb[0].mxu0
      %1302 = vdwg.mxu0
      %v1303 = vadd.f32 %v1158, %v1260
      %v1304 = vadd.f32 %v1159, %v1265
      %v1305 = vadd.f32 %v1160, %v1270
      %v1306 = vadd.f32 %v1161, %v1275
      %v1307 = vadd.f32 %v1162, %v1280
      %v1308 = vadd.f32 %v1163, %v1285
      %v1309 = vadd.f32 %v1164, %v1290
      %v1310 = vadd.f32 %v1165, %v1295
      %v1311 = vadd.f32 %v1166, %v1300
      %v1312 = vld [vmem:[%s165 + $0x14] sm:$0xff]
      %v1313 = vld [vmem:[%s165 + $0x1c] sm:$0xff]
      %v1314 = vld [vmem:[%s165 + $0x24] sm:$0xff]
      %v1315 = vld [vmem:[%s165 + $0x2c] sm:$0xff]
      %v1316 = vld [vmem:[%s165 + $0x34] sm:$0xff]
      %v1317 = vld [vmem:[%s165 + $0x3c] sm:$0xff]
      %v1318 = vld [vmem:[%s165 + $0x44] sm:$0xff]
      %v1319 = vld [vmem:[%s165 + $0x4c] sm:$0xff]
      %v1320 = vld [vmem:[%s165 + $0x54] sm:$0xff]
      %s1321 = scalar_lea.vmem %s1, 1024
      %v1322 = vld [vmem:[%s1321] sm:$0xff]
      %v1323 = vld [vmem:[%s1321 + $0x8] sm:$0xff]
      %v1324 = vld [vmem:[%s1321 + $0x10] sm:$0xff]
      %v1325 = vld [vmem:[%s1321 + $0x18] sm:$0xff]
      %v1326 = vld [vmem:[%s1321 + $0x20] sm:$0xff]
      %v1327 = vld [vmem:[%s1321 + $0x28] sm:$0xff]
      %v1328 = vld [vmem:[%s1321 + $0x30] sm:$0xff]
      %v1329 = vld [vmem:[%s1321 + $0x38] sm:$0xff]
      %v1330 = vld [vmem:[%s1321 + $0x40] sm:$0xff]
      %v1331 = vld [vmem:[%s1321 + $0x48] sm:$0xff]
      %v1332 = vld [vmem:[%s1321 + $0x50] sm:$0xff]
      %v1333 = vld [vmem:[%s1321 + $0x58] sm:$0xff]
      %v1334 = vld [vmem:[%s1321 + $0x60] sm:$0xff]
      %v1335 = vld [vmem:[%s1321 + $0x68] sm:$0xff]
      %v1336 = vld [vmem:[%s1321 + $0x70] sm:$0xff]
      %v1337 = vld [vmem:[%s1321 + $0x78] sm:$0xff]
      %1338 = vmatprep.subr.mxu0 0.0
      %1339 = vmatpush1.msra.mxu0 %v1322
      %1340 = vmatprep.subr.mxu0 0.0
      %1341 = vmatpush1.msra.mxu0 %v1323
      %1342 = vmatprep.subr.mxu0 0.0
      %1343 = vmatpush1.msra.mxu0 %v1324
      %1344 = vmatprep.subr.mxu0 0.0
      %1345 = vmatpush1.msra.mxu0 %v1325
      %1346 = vmatprep.subr.mxu0 0.0
      %1347 = vmatpush1.msra.mxu0 %v1326
      %1348 = vmatprep.subr.mxu0 0.0
      %1349 = vmatpush1.msra.mxu0 %v1327
      %1350 = vmatprep.subr.mxu0 0.0
      %1351 = vmatpush1.msra.mxu0 %v1328
      %1352 = vmatprep.subr.mxu0 0.0
      %1353 = vmatpush1.msra.mxu0 %v1329
      %1354 = vmatprep.subr.mxu0 0.0
      %1355 = vmatpush1.msra.mxu0 %v1330
      %1356 = vmatprep.subr.mxu0 0.0
      %1357 = vmatpush1.msra.mxu0 %v1331
      %1358 = vmatprep.subr.mxu0 0.0
      %1359 = vmatpush1.msra.mxu0 %v1332
      %1360 = vmatprep.subr.mxu0 0.0
      %1361 = vmatpush1.msra.mxu0 %v1333
      %1362 = vmatprep.subr.mxu0 0.0
      %1363 = vmatpush1.msra.mxu0 %v1334
      %1364 = vmatprep.subr.mxu0 0.0
      %1365 = vmatpush1.msra.mxu0 %v1335
      %1366 = vmatprep.subr.mxu0 0.0
      %1367 = vmatpush1.msra.mxu0 %v1336
      %1368 = vmatprep.subr.mxu0 0.0
      %1369 = vmatpush1.msra.mxu0 %v1337
      %1370 = vmatprep.subr.mxu0 0.0
      %1371 = vmatpush1.msra.mxu0 0.0
      %1372 = vmatprep.subr.mxu0 0.0
      %1373 = vmatpush1.msra.mxu0 0.0
      %1374 = vmatprep.subr.mxu0 0.0
      %1375 = vmatpush1.msra.mxu0 0.0
      %1376 = vmatprep.subr.mxu0 0.0
      %1377 = vmatpush1.msra.mxu0 0.0
      %1378 = vmatprep.subr.mxu0 0.0
      %1379 = vmatpush1.msra.mxu0 0.0
      %1380 = vmatprep.subr.mxu0 0.0
      %1381 = vmatpush1.msra.mxu0 0.0
      %1382 = vmatprep.subr.mxu0 0.0
      %1383 = vmatpush1.msra.mxu0 0.0
      %1384 = vmatprep.subr.mxu0 0.0
      %1385 = vmatpush1.msra.mxu0 0.0
      %1386 = vmatprep.subr.mxu0 0.0
      %1387 = vmatpush1.msra.mxu0 0.0
      %1388 = vmatprep.subr.mxu0 0.0
      %1389 = vmatpush1.msra.mxu0 0.0
      %1390 = vmatprep.subr.mxu0 0.0
      %1391 = vmatpush1.msra.mxu0 0.0
      %1392 = vmatprep.subr.mxu0 0.0
      %1393 = vmatpush1.msra.mxu0 0.0
      %1394 = vmatprep.subr.mxu0 0.0
      %1395 = vmatpush1.msra.mxu0 0.0
      %1396 = vmatprep.subr.mxu0 0.0
      %1397 = vmatpush1.msra.mxu0 0.0
      %1398 = vmatprep.subr.mxu0 0.0
      %1399 = vmatpush1.msra.mxu0 0.0
      %1400 = vmatprep.subr.mxu0 0.0
      %1401 = vmatpush1.msra.mxu0 0.0
      %1402 = vmatprep.mubr.f32.mxu0 0.0
      %1403 = vmatmul.mubr.f32.gmra.mrb[0].mxu0 %v1312
      %v1404 = vpop.f32.mrb[0].mxu0
      %v1405 = vadd.f32 0.0, %v1404
      %v1406 = vpop.f32.mrb[0].mxu0
      %1407 = vmatprep.mubr.f32.mxu0 0.0
      %1408 = vmatmul.mubr.f32.gmra.mrb[0].mxu0 %v1313
      %v1409 = vpop.f32.mrb[0].mxu0
      %v1410 = vadd.f32 0.0, %v1409
      %v1411 = vpop.f32.mrb[0].mxu0
      %1412 = vmatprep.mubr.f32.mxu0 0.0
      %1413 = vmatmul.mubr.f32.gmra.mrb[0].mxu0 %v1314
      %v1414 = vpop.f32.mrb[0].mxu0
      %v1415 = vadd.f32 0.0, %v1414
      %v1416 = vpop.f32.mrb[0].mxu0
      %1417 = vmatprep.mubr.f32.mxu0 0.0
      %1418 = vmatmul.mubr.f32.gmra.mrb[0].mxu0 %v1315
      %v1419 = vpop.f32.mrb[0].mxu0
      %v1420 = vadd.f32 0.0, %v1419
      %v1421 = vpop.f32.mrb[0].mxu0
      %1422 = vmatprep.mubr.f32.mxu0 0.0
      %1423 = vmatmul.mubr.f32.gmra.mrb[0].mxu0 %v1316
      %v1424 = vpop.f32.mrb[0].mxu0
      %v1425 = vadd.f32 0.0, %v1424
      %v1426 = vpop.f32.mrb[0].mxu0
      %1427 = vmatprep.mubr.f32.mxu0 0.0
      %1428 = vmatmul.mubr.f32.gmra.mrb[0].mxu0 %v1317
      %v1429 = vpop.f32.mrb[0].mxu0
      %v1430 = vadd.f32 0.0, %v1429
      %v1431 = vpop.f32.mrb[0].mxu0
      %1432 = vmatprep.mubr.f32.mxu0 0.0
      %1433 = vmatmul.mubr.f32.gmra.mrb[0].mxu0 %v1318
      %v1434 = vpop.f32.mrb[0].mxu0
      %v1435 = vadd.f32 0.0, %v1434
      %v1436 = vpop.f32.mrb[0].mxu0
      %1437 = vmatprep.mubr.f32.mxu0 0.0
      %1438 = vmatmul.mubr.f32.gmra.mrb[0].mxu0 %v1319
      %v1439 = vpop.f32.mrb[0].mxu0
      %v1440 = vadd.f32 0.0, %v1439
      %v1441 = vpop.f32.mrb[0].mxu0
      %1442 = vmatprep.mubr.f32.mxu0 0.0
      %1443 = vmatmul.mubr.f32.gmra.mrb[0].mxu0 %v1320
      %v1444 = vpop.f32.mrb[0].mxu0
      %v1445 = vadd.f32 0.0, %v1444
      %v1446 = vpop.f32.mrb[0].mxu0
      %1447 = vdwg.mxu0
      %v1448 = vadd.f32 %v1303, %v1405
      %v1449 = vadd.f32 %v1304, %v1410
      %v1450 = vadd.f32 %v1305, %v1415
      %v1451 = vadd.f32 %v1306, %v1420
      %v1452 = vadd.f32 %v1307, %v1425
      %v1453 = vadd.f32 %v1308, %v1430
      %v1454 = vadd.f32 %v1309, %v1435
      %v1455 = vadd.f32 %v1310, %v1440
      %v1456 = vadd.f32 %v1311, %v1445
      %v1457 = vld [vmem:[%s165 + $0x15] sm:$0xff]
      %v1458 = vld [vmem:[%s165 + $0x1d] sm:$0xff]
      %v1459 = vld [vmem:[%s165 + $0x25] sm:$0xff]
      %v1460 = vld [vmem:[%s165 + $0x2d] sm:$0xff]
      %v1461 = vld [vmem:[%s165 + $0x35] sm:$0xff]
      %v1462 = vld [vmem:[%s165 + $0x3d] sm:$0xff]
      %v1463 = vld [vmem:[%s165 + $0x45] sm:$0xff]
      %v1464 = vld [vmem:[%s165 + $0x4d] sm:$0xff]
      %v1465 = vld [vmem:[%s165 + $0x55] sm:$0xff]
      %s1466 = scalar_lea.vmem %s1, 1152
      %v1467 = vld [vmem:[%s1466] sm:$0xff]
      %v1468 = vld [vmem:[%s1466 + $0x8] sm:$0xff]
      %v1469 = vld [vmem:[%s1466 + $0x10] sm:$0xff]
      %v1470 = vld [vmem:[%s1466 + $0x18] sm:$0xff]
      %v1471 = vld [vmem:[%s1466 + $0x20] sm:$0xff]
      %v1472 = vld [vmem:[%s1466 + $0x28] sm:$0xff]
      %v1473 = vld [vmem:[%s1466 + $0x30] sm:$0xff]
      %v1474 = vld [vmem:[%s1466 + $0x38] sm:$0xff]
      %v1475 = vld [vmem:[%s1466 + $0x40] sm:$0xff]
      %v1476 = vld [vmem:[%s1466 + $0x48] sm:$0xff]
      %v1477 = vld [vmem:[%s1466 + $0x50] sm:$0xff]
      %v1478 = vld [vmem:[%s1466 + $0x58] sm:$0xff]
      %v1479 = vld [vmem:[%s1466 + $0x60] sm:$0xff]
      %v1480 = vld [vmem:[%s1466 + $0x68] sm:$0xff]
      %v1481 = vld [vmem:[%s1466 + $0x70] sm:$0xff]
      %v1482 = vld [vmem:[%s1466 + $0x78] sm:$0xff]
      %1483 = vmatprep.subr.mxu0 0.0
      %1484 = vmatpush1.msra.mxu0 %v1467
      %1485 = vmatprep.subr.mxu0 0.0
      %1486 = vmatpush1.msra.mxu0 %v1468
      %1487 = vmatprep.subr.mxu0 0.0
      %1488 = vmatpush1.msra.mxu0 %v1469
      %1489 = vmatprep.subr.mxu0 0.0
      %1490 = vmatpush1.msra.mxu0 %v1470
      %1491 = vmatprep.subr.mxu0 0.0
      %1492 = vmatpush1.msra.mxu0 %v1471
      %1493 = vmatprep.subr.mxu0 0.0
      %1494 = vmatpush1.msra.mxu0 %v1472
      %1495 = vmatprep.subr.mxu0 0.0
      %1496 = vmatpush1.msra.mxu0 %v1473
      %1497 = vmatprep.subr.mxu0 0.0
      %1498 = vmatpush1.msra.mxu0 %v1474
      %1499 = vmatprep.subr.mxu0 0.0
      %1500 = vmatpush1.msra.mxu0 %v1475
      %1501 = vmatprep.subr.mxu0 0.0
      %1502 = vmatpush1.msra.mxu0 %v1476
      %1503 = vmatprep.subr.mxu0 0.0
      %1504 = vmatpush1.msra.mxu0 %v1477
      %1505 = vmatprep.subr.mxu0 0.0
      %1506 = vmatpush1.msra.mxu0 %v1478
      %1507 = vmatprep.subr.mxu0 0.0
      %1508 = vmatpush1.msra.mxu0 %v1479
      %1509 = vmatprep.subr.mxu0 0.0
      %1510 = vmatpush1.msra.mxu0 %v1480
      %1511 = vmatprep.subr.mxu0 0.0
      %1512 = vmatpush1.msra.mxu0 %v1481
      %1513 = vmatprep.subr.mxu0 0.0
      %1514 = vmatpush1.msra.mxu0 %v1482
      %1515 = vmatprep.subr.mxu0 0.0
      %1516 = vmatpush1.msra.mxu0 0.0
      %1517 = vmatprep.subr.mxu0 0.0
      %1518 = vmatpush1.msra.mxu0 0.0
      %1519 = vmatprep.subr.mxu0 0.0
      %1520 = vmatpush1.msra.mxu0 0.0
      %1521 = vmatprep.subr.mxu0 0.0
      %1522 = vmatpush1.msra.mxu0 0.0
      %1523 = vmatprep.subr.mxu0 0.0
      %1524 = vmatpush1.msra.mxu0 0.0
      %1525 = vmatprep.subr.mxu0 0.0
      %1526 = vmatpush1.msra.mxu0 0.0
      %1527 = vmatprep.subr.mxu0 0.0
      %1528 = vmatpush1.msra.mxu0 0.0
      %1529 = vmatprep.subr.mxu0 0.0
      %1530 = vmatpush1.msra.mxu0 0.0
      %1531 = vmatprep.subr.mxu0 0.0
      %1532 = vmatpush1.msra.mxu0 0.0
      %1533 = vmatprep.subr.mxu0 0.0
      %1534 = vmatpush1.msra.mxu0 0.0
      %1535 = vmatprep.subr.mxu0 0.0
      %1536 = vmatpush1.msra.mxu0 0.0
      %1537 = vmatprep.subr.mxu0 0.0
      %1538 = vmatpush1.msra.mxu0 0.0
      %1539 = vmatprep.subr.mxu0 0.0
      %1540 = vmatpush1.msra.mxu0 0.0
      %1541 = vmatprep.subr.mxu0 0.0
      %1542 = vmatpush1.msra.mxu0 0.0
      %1543 = vmatprep.subr.mxu0 0.0
      %1544 = vmatpush1.msra.mxu0 0.0
      %1545 = vmatprep.subr.mxu0 0.0
      %1546 = vmatpush1.msra.mxu0 0.0
      %1547 = vmatprep.mubr.f32.mxu0 0.0
      %1548 = vmatmul.mubr.f32.gmra.mrb[0].mxu0 %v1457
      %v1549 = vpop.f32.mrb[0].mxu0
      %v1550 = vadd.f32 0.0, %v1549
      %v1551 = vpop.f32.mrb[0].mxu0
      %1552 = vmatprep.mubr.f32.mxu0 0.0
      %1553 = vmatmul.mubr.f32.gmra.mrb[0].mxu0 %v1458
      %v1554 = vpop.f32.mrb[0].mxu0
      %v1555 = vadd.f32 0.0, %v1554
      %v1556 = vpop.f32.mrb[0].mxu0
      %1557 = vmatprep.mubr.f32.mxu0 0.0
      %1558 = vmatmul.mubr.f32.gmra.mrb[0].mxu0 %v1459
      %v1559 = vpop.f32.mrb[0].mxu0
      %v1560 = vadd.f32 0.0, %v1559
      %v1561 = vpop.f32.mrb[0].mxu0
      %1562 = vmatprep.mubr.f32.mxu0 0.0
      %1563 = vmatmul.mubr.f32.gmra.mrb[0].mxu0 %v1460
      %v1564 = vpop.f32.mrb[0].mxu0
      %v1565 = vadd.f32 0.0, %v1564
      %v1566 = vpop.f32.mrb[0].mxu0
      %1567 = vmatprep.mubr.f32.mxu0 0.0
      %1568 = vmatmul.mubr.f32.gmra.mrb[0].mxu0 %v1461
      %v1569 = vpop.f32.mrb[0].mxu0
      %v1570 = vadd.f32 0.0, %v1569
      %v1571 = vpop.f32.mrb[0].mxu0
      %1572 = vmatprep.mubr.f32.mxu0 0.0
      %1573 = vmatmul.mubr.f32.gmra.mrb[0].mxu0 %v1462
      %v1574 = vpop.f32.mrb[0].mxu0
      %v1575 = vadd.f32 0.0, %v1574
      %v1576 = vpop.f32.mrb[0].mxu0
      %1577 = vmatprep.mubr.f32.mxu0 0.0
      %1578 = vmatmul.mubr.f32.gmra.mrb[0].mxu0 %v1463
      %v1579 = vpop.f32.mrb[0].mxu0
      %v1580 = vadd.f32 0.0, %v1579
      %v1581 = vpop.f32.mrb[0].mxu0
      %1582 = vmatprep.mubr.f32.mxu0 0.0
      %1583 = vmatmul.mubr.f32.gmra.mrb[0].mxu0 %v1464
      %v1584 = vpop.f32.mrb[0].mxu0
      %v1585 = vadd.f32 0.0, %v1584
      %v1586 = vpop.f32.mrb[0].mxu0
      %1587 = vmatprep.mubr.f32.mxu0 0.0
      %1588 = vmatmul.mubr.f32.gmra.mrb[0].mxu0 %v1465
      %v1589 = vpop.f32.mrb[0].mxu0
      %v1590 = vadd.f32 0.0, %v1589
      %v1591 = vpop.f32.mrb[0].mxu0
      %1592 = vdwg.mxu0
      %v1593 = vadd.f32 %v1448, %v1550
      %v1594 = vadd.f32 %v1449, %v1555
      %v1595 = vadd.f32 %v1450, %v1560
      %v1596 = vadd.f32 %v1451, %v1565
      %v1597 = vadd.f32 %v1452, %v1570
      %v1598 = vadd.f32 %v1453, %v1575
      %v1599 = vadd.f32 %v1454, %v1580
      %v1600 = vadd.f32 %v1455, %v1585
      %v1601 = vadd.f32 %v1456, %v1590
      %v1602 = vld [vmem:[%s165 + $0x16] sm:$0xff]
      %v1603 = vld [vmem:[%s165 + $0x1e] sm:$0xff]
      %v1604 = vld [vmem:[%s165 + $0x26] sm:$0xff]
      %v1605 = vld [vmem:[%s165 + $0x2e] sm:$0xff]
      %v1606 = vld [vmem:[%s165 + $0x36] sm:$0xff]
      %v1607 = vld [vmem:[%s165 + $0x3e] sm:$0xff]
      %v1608 = vld [vmem:[%s165 + $0x46] sm:$0xff]
      %v1609 = vld [vmem:[%s165 + $0x4e] sm:$0xff]
      %v1610 = vld [vmem:[%s165 + $0x56] sm:$0xff]
      %s1611 = scalar_lea.vmem %s1, 1280
      %v1612 = vld [vmem:[%s1611] sm:$0xff]
      %v1613 = vld [vmem:[%s1611 + $0x8] sm:$0xff]
      %v1614 = vld [vmem:[%s1611 + $0x10] sm:$0xff]
      %v1615 = vld [vmem:[%s1611 + $0x18] sm:$0xff]
      %v1616 = vld [vmem:[%s1611 + $0x20] sm:$0xff]
      %v1617 = vld [vmem:[%s1611 + $0x28] sm:$0xff]
      %v1618 = vld [vmem:[%s1611 + $0x30] sm:$0xff]
      %v1619 = vld [vmem:[%s1611 + $0x38] sm:$0xff]
      %v1620 = vld [vmem:[%s1611 + $0x40] sm:$0xff]
      %v1621 = vld [vmem:[%s1611 + $0x48] sm:$0xff]
      %v1622 = vld [vmem:[%s1611 + $0x50] sm:$0xff]
      %v1623 = vld [vmem:[%s1611 + $0x58] sm:$0xff]
      %v1624 = vld [vmem:[%s1611 + $0x60] sm:$0xff]
      %v1625 = vld [vmem:[%s1611 + $0x68] sm:$0xff]
      %v1626 = vld [vmem:[%s1611 + $0x70] sm:$0xff]
      %v1627 = vld [vmem:[%s1611 + $0x78] sm:$0xff]
      %1628 = vmatprep.subr.mxu0 0.0
      %1629 = vmatpush1.msra.mxu0 %v1612
      %1630 = vmatprep.subr.mxu0 0.0
      %1631 = vmatpush1.msra.mxu0 %v1613
      %1632 = vmatprep.subr.mxu0 0.0
      %1633 = vmatpush1.msra.mxu0 %v1614
      %1634 = vmatprep.subr.mxu0 0.0
      %1635 = vmatpush1.msra.mxu0 %v1615
      %1636 = vmatprep.subr.mxu0 0.0
      %1637 = vmatpush1.msra.mxu0 %v1616
      %1638 = vmatprep.subr.mxu0 0.0
      %1639 = vmatpush1.msra.mxu0 %v1617
      %1640 = vmatprep.subr.mxu0 0.0
      %1641 = vmatpush1.msra.mxu0 %v1618
      %1642 = vmatprep.subr.mxu0 0.0
      %1643 = vmatpush1.msra.mxu0 %v1619
      %1644 = vmatprep.subr.mxu0 0.0
      %1645 = vmatpush1.msra.mxu0 %v1620
      %1646 = vmatprep.subr.mxu0 0.0
      %1647 = vmatpush1.msra.mxu0 %v1621
      %1648 = vmatprep.subr.mxu0 0.0
      %1649 = vmatpush1.msra.mxu0 %v1622
      %1650 = vmatprep.subr.mxu0 0.0
      %1651 = vmatpush1.msra.mxu0 %v1623
      %1652 = vmatprep.subr.mxu0 0.0
      %1653 = vmatpush1.msra.mxu0 %v1624
      %1654 = vmatprep.subr.mxu0 0.0
      %1655 = vmatpush1.msra.mxu0 %v1625
      %1656 = vmatprep.subr.mxu0 0.0
      %1657 = vmatpush1.msra.mxu0 %v1626
      %1658 = vmatprep.subr.mxu0 0.0
      %1659 = vmatpush1.msra.mxu0 %v1627
      %1660 = vmatprep.subr.mxu0 0.0
      %1661 = vmatpush1.msra.mxu0 0.0
      %1662 = vmatprep.subr.mxu0 0.0
      %1663 = vmatpush1.msra.mxu0 0.0
      %1664 = vmatprep.subr.mxu0 0.0
      %1665 = vmatpush1.msra.mxu0 0.0
      %1666 = vmatprep.subr.mxu0 0.0
      %1667 = vmatpush1.msra.mxu0 0.0
      %1668 = vmatprep.subr.mxu0 0.0
      %1669 = vmatpush1.msra.mxu0 0.0
      %1670 = vmatprep.subr.mxu0 0.0
      %1671 = vmatpush1.msra.mxu0 0.0
      %1672 = vmatprep.subr.mxu0 0.0
      %1673 = vmatpush1.msra.mxu0 0.0
      %1674 = vmatprep.subr.mxu0 0.0
      %1675 = vmatpush1.msra.mxu0 0.0
      %1676 = vmatprep.subr.mxu0 0.0
      %1677 = vmatpush1.msra.mxu0 0.0
      %1678 = vmatprep.subr.mxu0 0.0
      %1679 = vmatpush1.msra.mxu0 0.0
      %1680 = vmatprep.subr.mxu0 0.0
      %1681 = vmatpush1.msra.mxu0 0.0
      %1682 = vmatprep.subr.mxu0 0.0
      %1683 = vmatpush1.msra.mxu0 0.0
      %1684 = vmatprep.subr.mxu0 0.0
      %1685 = vmatpush1.msra.mxu0 0.0
      %1686 = vmatprep.subr.mxu0 0.0
      %1687 = vmatpush1.msra.mxu0 0.0
      %1688 = vmatprep.subr.mxu0 0.0
      %1689 = vmatpush1.msra.mxu0 0.0
      %1690 = vmatprep.subr.mxu0 0.0
      %1691 = vmatpush1.msra.mxu0 0.0
      %1692 = vmatprep.mubr.f32.mxu0 0.0
      %1693 = vmatmul.mubr.f32.gmra.mrb[0].mxu0 %v1602
      %v1694 = vpop.f32.mrb[0].mxu0
      %v1695 = vadd.f32 0.0, %v1694
      %v1696 = vpop.f32.mrb[0].mxu0
      %1697 = vmatprep.mubr.f32.mxu0 0.0
      %1698 = vmatmul.mubr.f32.gmra.mrb[0].mxu0 %v1603
      %v1699 = vpop.f32.mrb[0].mxu0
      %v1700 = vadd.f32 0.0, %v1699
      %v1701 = vpop.f32.mrb[0].mxu0
      %1702 = vmatprep.mubr.f32.mxu0 0.0
      %1703 = vmatmul.mubr.f32.gmra.mrb[0].mxu0 %v1604
      %v1704 = vpop.f32.mrb[0].mxu0
      %v1705 = vadd.f32 0.0, %v1704
      %v1706 = vpop.f32.mrb[0].mxu0
      %1707 = vmatprep.mubr.f32.mxu0 0.0
      %1708 = vmatmul.mubr.f32.gmra.mrb[0].mxu0 %v1605
      %v1709 = vpop.f32.mrb[0].mxu0
      %v1710 = vadd.f32 0.0, %v1709
      %v1711 = vpop.f32.mrb[0].mxu0
      %1712 = vmatprep.mubr.f32.mxu0 0.0
      %1713 = vmatmul.mubr.f32.gmra.mrb[0].mxu0 %v1606
      %v1714 = vpop.f32.mrb[0].mxu0
      %v1715 = vadd.f32 0.0, %v1714
      %v1716 = vpop.f32.mrb[0].mxu0
      %1717 = vmatprep.mubr.f32.mxu0 0.0
      %1718 = vmatmul.mubr.f32.gmra.mrb[0].mxu0 %v1607
      %v1719 = vpop.f32.mrb[0].mxu0
      %v1720 = vadd.f32 0.0, %v1719
      %v1721 = vpop.f32.mrb[0].mxu0
      %1722 = vmatprep.mubr.f32.mxu0 0.0
      %1723 = vmatmul.mubr.f32.gmra.mrb[0].mxu0 %v1608
      %v1724 = vpop.f32.mrb[0].mxu0
      %v1725 = vadd.f32 0.0, %v1724
      %v1726 = vpop.f32.mrb[0].mxu0
      %1727 = vmatprep.mubr.f32.mxu0 0.0
      %1728 = vmatmul.mubr.f32.gmra.mrb[0].mxu0 %v1609
      %v1729 = vpop.f32.mrb[0].mxu0
      %v1730 = vadd.f32 0.0, %v1729
      %v1731 = vpop.f32.mrb[0].mxu0
      %1732 = vmatprep.mubr.f32.mxu0 0.0
      %1733 = vmatmul.mubr.f32.gmra.mrb[0].mxu0 %v1610
      %v1734 = vpop.f32.mrb[0].mxu0
      %v1735 = vadd.f32 0.0, %v1734
      %v1736 = vpop.f32.mrb[0].mxu0
      %1737 = vdwg.mxu0
      %v1738 = vadd.f32 %v1593, %v1695
      %v1739 = vadd.f32 %v1594, %v1700
      %v1740 = vadd.f32 %v1595, %v1705
      %v1741 = vadd.f32 %v1596, %v1710
      %v1742 = vadd.f32 %v1597, %v1715
      %v1743 = vadd.f32 %v1598, %v1720
      %v1744 = vadd.f32 %v1599, %v1725
      %v1745 = vadd.f32 %v1600, %v1730
      %v1746 = vadd.f32 %v1601, %v1735
      %v1747 = vld [vmem:[%s165 + $0x17] sm:$0xff]
      %v1748 = vld [vmem:[%s165 + $0x1f] sm:$0xff]
      %v1749 = vld [vmem:[%s165 + $0x27] sm:$0xff]
      %v1750 = vld [vmem:[%s165 + $0x2f] sm:$0xff]
      %v1751 = vld [vmem:[%s165 + $0x37] sm:$0xff]
      %v1752 = vld [vmem:[%s165 + $0x3f] sm:$0xff]
      %v1753 = vld [vmem:[%s165 + $0x47] sm:$0xff]
      %v1754 = vld [vmem:[%s165 + $0x4f] sm:$0xff]
      %v1755 = vld [vmem:[%s165 + $0x57] sm:$0xff]
      %s1756 = scalar_lea.vmem %s1, 1408
      %v1757 = vld [vmem:[%s1756] sm:$0xff]
      %v1758 = vld [vmem:[%s1756 + $0x8] sm:$0xff]
      %v1759 = vld [vmem:[%s1756 + $0x10] sm:$0xff]
      %v1760 = vld [vmem:[%s1756 + $0x18] sm:$0xff]
      %v1761 = vld [vmem:[%s1756 + $0x20] sm:$0xff]
      %v1762 = vld [vmem:[%s1756 + $0x28] sm:$0xff]
      %v1763 = vld [vmem:[%s1756 + $0x30] sm:$0xff]
      %v1764 = vld [vmem:[%s1756 + $0x38] sm:$0xff]
      %v1765 = vld [vmem:[%s1756 + $0x40] sm:$0xff]
      %v1766 = vld [vmem:[%s1756 + $0x48] sm:$0xff]
      %v1767 = vld [vmem:[%s1756 + $0x50] sm:$0xff]
      %v1768 = vld [vmem:[%s1756 + $0x58] sm:$0xff]
      %v1769 = vld [vmem:[%s1756 + $0x60] sm:$0xff]
      %v1770 = vld [vmem:[%s1756 + $0x68] sm:$0xff]
      %v1771 = vld [vmem:[%s1756 + $0x70] sm:$0xff]
      %v1772 = vld [vmem:[%s1756 + $0x78] sm:$0xff]
      %1773 = vmatprep.subr.mxu0 0.0
      %1774 = vmatpush1.msra.mxu0 %v1757
      %1775 = vmatprep.subr.mxu0 0.0
      %1776 = vmatpush1.msra.mxu0 %v1758
      %1777 = vmatprep.subr.mxu0 0.0
      %1778 = vmatpush1.msra.mxu0 %v1759
      %1779 = vmatprep.subr.mxu0 0.0
      %1780 = vmatpush1.msra.mxu0 %v1760
      %1781 = vmatprep.subr.mxu0 0.0
      %1782 = vmatpush1.msra.mxu0 %v1761
      %1783 = vmatprep.subr.mxu0 0.0
      %1784 = vmatpush1.msra.mxu0 %v1762
      %1785 = vmatprep.subr.mxu0 0.0
      %1786 = vmatpush1.msra.mxu0 %v1763
      %1787 = vmatprep.subr.mxu0 0.0
      %1788 = vmatpush1.msra.mxu0 %v1764
      %1789 = vmatprep.subr.mxu0 0.0
      %1790 = vmatpush1.msra.mxu0 %v1765
      %1791 = vmatprep.subr.mxu0 0.0
      %1792 = vmatpush1.msra.mxu0 %v1766
      %1793 = vmatprep.subr.mxu0 0.0
      %1794 = vmatpush1.msra.mxu0 %v1767
      %1795 = vmatprep.subr.mxu0 0.0
      %1796 = vmatpush1.msra.mxu0 %v1768
      %1797 = vmatprep.subr.mxu0 0.0
      %1798 = vmatpush1.msra.mxu0 %v1769
      %1799 = vmatprep.subr.mxu0 0.0
      %1800 = vmatpush1.msra.mxu0 %v1770
      %1801 = vmatprep.subr.mxu0 0.0
      %1802 = vmatpush1.msra.mxu0 %v1771
      %1803 = vmatprep.subr.mxu0 0.0
      %1804 = vmatpush1.msra.mxu0 %v1772
      %1805 = vmatprep.subr.mxu0 0.0
      %1806 = vmatpush1.msra.mxu0 0.0
      %1807 = vmatprep.subr.mxu0 0.0
      %1808 = vmatpush1.msra.mxu0 0.0
      %1809 = vmatprep.subr.mxu0 0.0
      %1810 = vmatpush1.msra.mxu0 0.0
      %1811 = vmatprep.subr.mxu0 0.0
      %1812 = vmatpush1.msra.mxu0 0.0
      %1813 = vmatprep.subr.mxu0 0.0
      %1814 = vmatpush1.msra.mxu0 0.0
      %1815 = vmatprep.subr.mxu0 0.0
      %1816 = vmatpush1.msra.mxu0 0.0
      %1817 = vmatprep.subr.mxu0 0.0
      %1818 = vmatpush1.msra.mxu0 0.0
      %1819 = vmatprep.subr.mxu0 0.0
      %1820 = vmatpush1.msra.mxu0 0.0
      %1821 = vmatprep.subr.mxu0 0.0
      %1822 = vmatpush1.msra.mxu0 0.0
      %1823 = vmatprep.subr.mxu0 0.0
      %1824 = vmatpush1.msra.mxu0 0.0
      %1825 = vmatprep.subr.mxu0 0.0
      %1826 = vmatpush1.msra.mxu0 0.0
      %1827 = vmatprep.subr.mxu0 0.0
      %1828 = vmatpush1.msra.mxu0 0.0
      %1829 = vmatprep.subr.mxu0 0.0
      %1830 = vmatpush1.msra.mxu0 0.0
      %1831 = vmatprep.subr.mxu0 0.0
      %1832 = vmatpush1.msra.mxu0 0.0
      %1833 = vmatprep.subr.mxu0 0.0
      %1834 = vmatpush1.msra.mxu0 0.0
      %1835 = vmatprep.subr.mxu0 0.0
      %1836 = vmatpush1.msra.mxu0 0.0
      %1837 = vmatprep.mubr.f32.mxu0 0.0
      %1838 = vmatmul.mubr.f32.gmra.mrb[0].mxu0 %v1747
      %v1839 = vpop.f32.mrb[0].mxu0
      %v1840 = vadd.f32 0.0, %v1839
      %v1841 = vpop.f32.mrb[0].mxu0
      %1842 = vmatprep.mubr.f32.mxu0 0.0
      %1843 = vmatmul.mubr.f32.gmra.mrb[0].mxu0 %v1748
      %v1844 = vpop.f32.mrb[0].mxu0
      %v1845 = vadd.f32 0.0, %v1844
      %v1846 = vpop.f32.mrb[0].mxu0
      %1847 = vmatprep.mubr.f32.mxu0 0.0
      %1848 = vmatmul.mubr.f32.gmra.mrb[0].mxu0 %v1749
      %v1849 = vpop.f32.mrb[0].mxu0
      %v1850 = vadd.f32 0.0, %v1849
      %v1851 = vpop.f32.mrb[0].mxu0
      %1852 = vmatprep.mubr.f32.mxu0 0.0
      %1853 = vmatmul.mubr.f32.gmra.mrb[0].mxu0 %v1750
      %v1854 = vpop.f32.mrb[0].mxu0
      %v1855 = vadd.f32 0.0, %v1854
      %v1856 = vpop.f32.mrb[0].mxu0
      %1857 = vmatprep.mubr.f32.mxu0 0.0
      %1858 = vmatmul.mubr.f32.gmra.mrb[0].mxu0 %v1751
      %v1859 = vpop.f32.mrb[0].mxu0
      %v1860 = vadd.f32 0.0, %v1859
      %v1861 = vpop.f32.mrb[0].mxu0
      %1862 = vmatprep.mubr.f32.mxu0 0.0
      %1863 = vmatmul.mubr.f32.gmra.mrb[0].mxu0 %v1752
      %v1864 = vpop.f32.mrb[0].mxu0
      %v1865 = vadd.f32 0.0, %v1864
      %v1866 = vpop.f32.mrb[0].mxu0
      %1867 = vmatprep.mubr.f32.mxu0 0.0
      %1868 = vmatmul.mubr.f32.gmra.mrb[0].mxu0 %v1753
      %v1869 = vpop.f32.mrb[0].mxu0
      %v1870 = vadd.f32 0.0, %v1869
      %v1871 = vpop.f32.mrb[0].mxu0
      %1872 = vmatprep.mubr.f32.mxu0 0.0
      %1873 = vmatmul.mubr.f32.gmra.mrb[0].mxu0 %v1754
      %v1874 = vpop.f32.mrb[0].mxu0
      %v1875 = vadd.f32 0.0, %v1874
      %v1876 = vpop.f32.mrb[0].mxu0
      %1877 = vmatprep.mubr.f32.mxu0 0.0
      %1878 = vmatmul.mubr.f32.gmra.mrb[0].mxu0 %v1755
      %v1879 = vpop.f32.mrb[0].mxu0
      %v1880 = vadd.f32 0.0, %v1879
      %v1881 = vpop.f32.mrb[0].mxu0
      %1882 = vdwg.mxu0
      %v1883 = vadd.f32 %v1738, %v1840
      %v1884 = vadd.f32 %v1739, %v1845
      %v1885 = vadd.f32 %v1740, %v1850
      %v1886 = vadd.f32 %v1741, %v1855
      %v1887 = vadd.f32 %v1742, %v1860
      %v1888 = vadd.f32 %v1743, %v1865
      %v1889 = vadd.f32 %v1744, %v1870
      %v1890 = vadd.f32 %v1745, %v1875
      %v1891 = vadd.f32 %v1746, %v1880
      %v1892 = vld [vmem:[%s165 + $0x1e] sm:$0xff]
      %v1893 = vld [vmem:[%s165 + $0x26] sm:$0xff]
      %v1894 = vld [vmem:[%s165 + $0x2e] sm:$0xff]
      %v1895 = vld [vmem:[%s165 + $0x36] sm:$0xff]
      %v1896 = vld [vmem:[%s165 + $0x3e] sm:$0xff]
      %v1897 = vld [vmem:[%s165 + $0x46] sm:$0xff]
      %v1898 = vld [vmem:[%s165 + $0x4e] sm:$0xff]
      %v1899 = vld [vmem:[%s165 + $0x56] sm:$0xff]
      %v1900 = vld [vmem:[%s165 + $0x5e] sm:$0xff]
      %s1901 = scalar_lea.vmem %s1, 1536
      %v1902 = vld [vmem:[%s1901] sm:$0xff]
      %v1903 = vld [vmem:[%s1901 + $0x8] sm:$0xff]
      %v1904 = vld [vmem:[%s1901 + $0x10] sm:$0xff]
      %v1905 = vld [vmem:[%s1901 + $0x18] sm:$0xff]
      %v1906 = vld [vmem:[%s1901 + $0x20] sm:$0xff]
      %v1907 = vld [vmem:[%s1901 + $0x28] sm:$0xff]
      %v1908 = vld [vmem:[%s1901 + $0x30] sm:$0xff]
      %v1909 = vld [vmem:[%s1901 + $0x38] sm:$0xff]
      %v1910 = vld [vmem:[%s1901 + $0x40] sm:$0xff]
      %v1911 = vld [vmem:[%s1901 + $0x48] sm:$0xff]
      %v1912 = vld [vmem:[%s1901 + $0x50] sm:$0xff]
      %v1913 = vld [vmem:[%s1901 + $0x58] sm:$0xff]
      %v1914 = vld [vmem:[%s1901 + $0x60] sm:$0xff]
      %v1915 = vld [vmem:[%s1901 + $0x68] sm:$0xff]
      %v1916 = vld [vmem:[%s1901 + $0x70] sm:$0xff]
      %v1917 = vld [vmem:[%s1901 + $0x78] sm:$0xff]
      %1918 = vmatprep.subr.mxu0 0.0
      %1919 = vmatpush1.msra.mxu0 %v1902
      %1920 = vmatprep.subr.mxu0 0.0
      %1921 = vmatpush1.msra.mxu0 %v1903
      %1922 = vmatprep.subr.mxu0 0.0
      %1923 = vmatpush1.msra.mxu0 %v1904
      %1924 = vmatprep.subr.mxu0 0.0
      %1925 = vmatpush1.msra.mxu0 %v1905
      %1926 = vmatprep.subr.mxu0 0.0
      %1927 = vmatpush1.msra.mxu0 %v1906
      %1928 = vmatprep.subr.mxu0 0.0
      %1929 = vmatpush1.msra.mxu0 %v1907
      %1930 = vmatprep.subr.mxu0 0.0
      %1931 = vmatpush1.msra.mxu0 %v1908
      %1932 = vmatprep.subr.mxu0 0.0
      %1933 = vmatpush1.msra.mxu0 %v1909
      %1934 = vmatprep.subr.mxu0 0.0
      %1935 = vmatpush1.msra.mxu0 %v1910
      %1936 = vmatprep.subr.mxu0 0.0
      %1937 = vmatpush1.msra.mxu0 %v1911
      %1938 = vmatprep.subr.mxu0 0.0
      %1939 = vmatpush1.msra.mxu0 %v1912
      %1940 = vmatprep.subr.mxu0 0.0
      %1941 = vmatpush1.msra.mxu0 %v1913
      %1942 = vmatprep.subr.mxu0 0.0
      %1943 = vmatpush1.msra.mxu0 %v1914
      %1944 = vmatprep.subr.mxu0 0.0
      %1945 = vmatpush1.msra.mxu0 %v1915
      %1946 = vmatprep.subr.mxu0 0.0
      %1947 = vmatpush1.msra.mxu0 %v1916
      %1948 = vmatprep.subr.mxu0 0.0
      %1949 = vmatpush1.msra.mxu0 %v1917
      %1950 = vmatprep.subr.mxu0 0.0
      %1951 = vmatpush1.msra.mxu0 0.0
      %1952 = vmatprep.subr.mxu0 0.0
      %1953 = vmatpush1.msra.mxu0 0.0
      %1954 = vmatprep.subr.mxu0 0.0
      %1955 = vmatpush1.msra.mxu0 0.0
      %1956 = vmatprep.subr.mxu0 0.0
      %1957 = vmatpush1.msra.mxu0 0.0
      %1958 = vmatprep.subr.mxu0 0.0
      %1959 = vmatpush1.msra.mxu0 0.0
      %1960 = vmatprep.subr.mxu0 0.0
      %1961 = vmatpush1.msra.mxu0 0.0
      %1962 = vmatprep.subr.mxu0 0.0
      %1963 = vmatpush1.msra.mxu0 0.0
      %1964 = vmatprep.subr.mxu0 0.0
      %1965 = vmatpush1.msra.mxu0 0.0
      %1966 = vmatprep.subr.mxu0 0.0
      %1967 = vmatpush1.msra.mxu0 0.0
      %1968 = vmatprep.subr.mxu0 0.0
      %1969 = vmatpush1.msra.mxu0 0.0
      %1970 = vmatprep.subr.mxu0 0.0
      %1971 = vmatpush1.msra.mxu0 0.0
      %1972 = vmatprep.subr.mxu0 0.0
      %1973 = vmatpush1.msra.mxu0 0.0
      %1974 = vmatprep.subr.mxu0 0.0
      %1975 = vmatpush1.msra.mxu0 0.0
      %1976 = vmatprep.subr.mxu0 0.0
      %1977 = vmatpush1.msra.mxu0 0.0
      %1978 = vmatprep.subr.mxu0 0.0
      %1979 = vmatpush1.msra.mxu0 0.0
      %1980 = vmatprep.subr.mxu0 0.0
      %1981 = vmatpush1.msra.mxu0 0.0
      %1982 = vmatprep.mubr.f32.mxu0 0.0
      %1983 = vmatmul.mubr.f32.gmra.mrb[0].mxu0 %v1892
      %v1984 = vpop.f32.mrb[0].mxu0
      %v1985 = vadd.f32 0.0, %v1984
      %v1986 = vpop.f32.mrb[0].mxu0
      %1987 = vmatprep.mubr.f32.mxu0 0.0
      %1988 = vmatmul.mubr.f32.gmra.mrb[0].mxu0 %v1893
      %v1989 = vpop.f32.mrb[0].mxu0
      %v1990 = vadd.f32 0.0, %v1989
      %v1991 = vpop.f32.mrb[0].mxu0
      %1992 = vmatprep.mubr.f32.mxu0 0.0
      %1993 = vmatmul.mubr.f32.gmra.mrb[0].mxu0 %v1894
      %v1994 = vpop.f32.mrb[0].mxu0
      %v1995 = vadd.f32 0.0, %v1994
      %v1996 = vpop.f32.mrb[0].mxu0
      %1997 = vmatprep.mubr.f32.mxu0 0.0
      %1998 = vmatmul.mubr.f32.gmra.mrb[0].mxu0 %v1895
      %v1999 = vpop.f32.mrb[0].mxu0
      %v2000 = vadd.f32 0.0, %v1999
      %v2001 = vpop.f32.mrb[0].mxu0
      %2002 = vmatprep.mubr.f32.mxu0 0.0
      %2003 = vmatmul.mubr.f32.gmra.mrb[0].mxu0 %v1896
      %v2004 = vpop.f32.mrb[0].mxu0
      %v2005 = vadd.f32 0.0, %v2004
      %v2006 = vpop.f32.mrb[0].mxu0
      %2007 = vmatprep.mubr.f32.mxu0 0.0
      %2008 = vmatmul.mubr.f32.gmra.mrb[0].mxu0 %v1897
      %v2009 = vpop.f32.mrb[0].mxu0
      %v2010 = vadd.f32 0.0, %v2009
      %v2011 = vpop.f32.mrb[0].mxu0
      %2012 = vmatprep.mubr.f32.mxu0 0.0
      %2013 = vmatmul.mubr.f32.gmra.mrb[0].mxu0 %v1898
      %v2014 = vpop.f32.mrb[0].mxu0
      %v2015 = vadd.f32 0.0, %v2014
      %v2016 = vpop.f32.mrb[0].mxu0
      %2017 = vmatprep.mubr.f32.mxu0 0.0
      %2018 = vmatmul.mubr.f32.gmra.mrb[0].mxu0 %v1899
      %v2019 = vpop.f32.mrb[0].mxu0
      %v2020 = vadd.f32 0.0, %v2019
      %v2021 = vpop.f32.mrb[0].mxu0
      %2022 = vmatprep.mubr.f32.mxu0 0.0
      %2023 = vmatmul.mubr.f32.gmra.mrb[0].mxu0 %v1900
      %v2024 = vpop.f32.mrb[0].mxu0
      %v2025 = vadd.f32 0.0, %v2024
      %v2026 = vpop.f32.mrb[0].mxu0
      %2027 = vdwg.mxu0
      %v2028 = vadd.f32 %v1883, %v1985
      %v2029 = vadd.f32 %v1884, %v1990
      %v2030 = vadd.f32 %v1885, %v1995
      %v2031 = vadd.f32 %v1886, %v2000
      %v2032 = vadd.f32 %v1887, %v2005
      %v2033 = vadd.f32 %v1888, %v2010
      %v2034 = vadd.f32 %v1889, %v2015
      %v2035 = vadd.f32 %v1890, %v2020
      %v2036 = vadd.f32 %v1891, %v2025
      %v2037 = vld [vmem:[%s165 + $0x1f] sm:$0xff]
      %v2038 = vld [vmem:[%s165 + $0x27] sm:$0xff]
      %v2039 = vld [vmem:[%s165 + $0x2f] sm:$0xff]
      %v2040 = vld [vmem:[%s165 + $0x37] sm:$0xff]
      %v2041 = vld [vmem:[%s165 + $0x3f] sm:$0xff]
      %v2042 = vld [vmem:[%s165 + $0x47] sm:$0xff]
      %v2043 = vld [vmem:[%s165 + $0x4f] sm:$0xff]
      %v2044 = vld [vmem:[%s165 + $0x57] sm:$0xff]
      %v2045 = vld [vmem:[%s165 + $0x5f] sm:$0xff]
      %s2046 = scalar_lea.vmem %s1, 1664
      %v2047 = vld [vmem:[%s2046] sm:$0xff]
      %v2048 = vld [vmem:[%s2046 + $0x8] sm:$0xff]
      %v2049 = vld [vmem:[%s2046 + $0x10] sm:$0xff]
      %v2050 = vld [vmem:[%s2046 + $0x18] sm:$0xff]
      %v2051 = vld [vmem:[%s2046 + $0x20] sm:$0xff]
      %v2052 = vld [vmem:[%s2046 + $0x28] sm:$0xff]
      %v2053 = vld [vmem:[%s2046 + $0x30] sm:$0xff]
      %v2054 = vld [vmem:[%s2046 + $0x38] sm:$0xff]
      %v2055 = vld [vmem:[%s2046 + $0x40] sm:$0xff]
      %v2056 = vld [vmem:[%s2046 + $0x48] sm:$0xff]
      %v2057 = vld [vmem:[%s2046 + $0x50] sm:$0xff]
      %v2058 = vld [vmem:[%s2046 + $0x58] sm:$0xff]
      %v2059 = vld [vmem:[%s2046 + $0x60] sm:$0xff]
      %v2060 = vld [vmem:[%s2046 + $0x68] sm:$0xff]
      %v2061 = vld [vmem:[%s2046 + $0x70] sm:$0xff]
      %v2062 = vld [vmem:[%s2046 + $0x78] sm:$0xff]
      %2063 = vmatprep.subr.mxu0 0.0
      %2064 = vmatpush1.msra.mxu0 %v2047
      %2065 = vmatprep.subr.mxu0 0.0
      %2066 = vmatpush1.msra.mxu0 %v2048
      %2067 = vmatprep.subr.mxu0 0.0
      %2068 = vmatpush1.msra.mxu0 %v2049
      %2069 = vmatprep.subr.mxu0 0.0
      %2070 = vmatpush1.msra.mxu0 %v2050
      %2071 = vmatprep.subr.mxu0 0.0
      %2072 = vmatpush1.msra.mxu0 %v2051
      %2073 = vmatprep.subr.mxu0 0.0
      %2074 = vmatpush1.msra.mxu0 %v2052
      %2075 = vmatprep.subr.mxu0 0.0
      %2076 = vmatpush1.msra.mxu0 %v2053
      %2077 = vmatprep.subr.mxu0 0.0
      %2078 = vmatpush1.msra.mxu0 %v2054
      %2079 = vmatprep.subr.mxu0 0.0
      %2080 = vmatpush1.msra.mxu0 %v2055
      %2081 = vmatprep.subr.mxu0 0.0
      %2082 = vmatpush1.msra.mxu0 %v2056
      %2083 = vmatprep.subr.mxu0 0.0
      %2084 = vmatpush1.msra.mxu0 %v2057
      %2085 = vmatprep.subr.mxu0 0.0
      %2086 = vmatpush1.msra.mxu0 %v2058
      %2087 = vmatprep.subr.mxu0 0.0
      %2088 = vmatpush1.msra.mxu0 %v2059
      %2089 = vmatprep.subr.mxu0 0.0
      %2090 = vmatpush1.msra.mxu0 %v2060
      %2091 = vmatprep.subr.mxu0 0.0
      %2092 = vmatpush1.msra.mxu0 %v2061
      %2093 = vmatprep.subr.mxu0 0.0
      %2094 = vmatpush1.msra.mxu0 %v2062
      %2095 = vmatprep.subr.mxu0 0.0
      %2096 = vmatpush1.msra.mxu0 0.0
      %2097 = vmatprep.subr.mxu0 0.0
      %2098 = vmatpush1.msra.mxu0 0.0
      %2099 = vmatprep.subr.mxu0 0.0
      %2100 = vmatpush1.msra.mxu0 0.0
      %2101 = vmatprep.subr.mxu0 0.0
      %2102 = vmatpush1.msra.mxu0 0.0
      %2103 = vmatprep.subr.mxu0 0.0
      %2104 = vmatpush1.msra.mxu0 0.0
      %2105 = vmatprep.subr.mxu0 0.0
      %2106 = vmatpush1.msra.mxu0 0.0
      %2107 = vmatprep.subr.mxu0 0.0
      %2108 = vmatpush1.msra.mxu0 0.0
      %2109 = vmatprep.subr.mxu0 0.0
      %2110 = vmatpush1.msra.mxu0 0.0
      %2111 = vmatprep.subr.mxu0 0.0
      %2112 = vmatpush1.msra.mxu0 0.0
      %2113 = vmatprep.subr.mxu0 0.0
      %2114 = vmatpush1.msra.mxu0 0.0
      %2115 = vmatprep.subr.mxu0 0.0
      %2116 = vmatpush1.msra.mxu0 0.0
      %2117 = vmatprep.subr.mxu0 0.0
      %2118 = vmatpush1.msra.mxu0 0.0
      %2119 = vmatprep.subr.mxu0 0.0
      %2120 = vmatpush1.msra.mxu0 0.0
      %2121 = vmatprep.subr.mxu0 0.0
      %2122 = vmatpush1.msra.mxu0 0.0
      %2123 = vmatprep.subr.mxu0 0.0
      %2124 = vmatpush1.msra.mxu0 0.0
      %2125 = vmatprep.subr.mxu0 0.0
      %2126 = vmatpush1.msra.mxu0 0.0
      %2127 = vmatprep.mubr.f32.mxu0 0.0
      %2128 = vmatmul.mubr.f32.gmra.mrb[0].mxu0 %v2037
      %v2129 = vpop.f32.mrb[0].mxu0
      %v2130 = vadd.f32 0.0, %v2129
      %v2131 = vpop.f32.mrb[0].mxu0
      %2132 = vmatprep.mubr.f32.mxu0 0.0
      %2133 = vmatmul.mubr.f32.gmra.mrb[0].mxu0 %v2038
      %v2134 = vpop.f32.mrb[0].mxu0
      %v2135 = vadd.f32 0.0, %v2134
      %v2136 = vpop.f32.mrb[0].mxu0
      %2137 = vmatprep.mubr.f32.mxu0 0.0
      %2138 = vmatmul.mubr.f32.gmra.mrb[0].mxu0 %v2039
      %v2139 = vpop.f32.mrb[0].mxu0
      %v2140 = vadd.f32 0.0, %v2139
      %v2141 = vpop.f32.mrb[0].mxu0
      %2142 = vmatprep.mubr.f32.mxu0 0.0
      %2143 = vmatmul.mubr.f32.gmra.mrb[0].mxu0 %v2040
      %v2144 = vpop.f32.mrb[0].mxu0
      %v2145 = vadd.f32 0.0, %v2144
      %v2146 = vpop.f32.mrb[0].mxu0
      %2147 = vmatprep.mubr.f32.mxu0 0.0
      %2148 = vmatmul.mubr.f32.gmra.mrb[0].mxu0 %v2041
      %v2149 = vpop.f32.mrb[0].mxu0
      %v2150 = vadd.f32 0.0, %v2149
      %v2151 = vpop.f32.mrb[0].mxu0
      %2152 = vmatprep.mubr.f32.mxu0 0.0
      %2153 = vmatmul.mubr.f32.gmra.mrb[0].mxu0 %v2042
      %v2154 = vpop.f32.mrb[0].mxu0
      %v2155 = vadd.f32 0.0, %v2154
      %v2156 = vpop.f32.mrb[0].mxu0
      %2157 = vmatprep.mubr.f32.mxu0 0.0
      %2158 = vmatmul.mubr.f32.gmra.mrb[0].mxu0 %v2043
      %v2159 = vpop.f32.mrb[0].mxu0
      %v2160 = vadd.f32 0.0, %v2159
      %v2161 = vpop.f32.mrb[0].mxu0
      %2162 = vmatprep.mubr.f32.mxu0 0.0
      %2163 = vmatmul.mubr.f32.gmra.mrb[0].mxu0 %v2044
      %v2164 = vpop.f32.mrb[0].mxu0
      %v2165 = vadd.f32 0.0, %v2164
      %v2166 = vpop.f32.mrb[0].mxu0
      %2167 = vmatprep.mubr.f32.mxu0 0.0
      %2168 = vmatmul.mubr.f32.gmra.mrb[0].mxu0 %v2045
      %v2169 = vpop.f32.mrb[0].mxu0
      %v2170 = vadd.f32 0.0, %v2169
      %v2171 = vpop.f32.mrb[0].mxu0
      %2172 = vdwg.mxu0
      %v2173 = vadd.f32 %v2028, %v2130
      %v2174 = vadd.f32 %v2029, %v2135
      %v2175 = vadd.f32 %v2030, %v2140
      %v2176 = vadd.f32 %v2031, %v2145
      %v2177 = vadd.f32 %v2032, %v2150
      %v2178 = vadd.f32 %v2033, %v2155
      %v2179 = vadd.f32 %v2034, %v2160
      %v2180 = vadd.f32 %v2035, %v2165
      %v2181 = vadd.f32 %v2036, %v2170
      %v2182 = vld [vmem:[%s165 + $0x20] sm:$0xff]
      %v2183 = vld [vmem:[%s165 + $0x28] sm:$0xff]
      %v2184 = vld [vmem:[%s165 + $0x30] sm:$0xff]
      %v2185 = vld [vmem:[%s165 + $0x38] sm:$0xff]
      %v2186 = vld [vmem:[%s165 + $0x40] sm:$0xff]
      %v2187 = vld [vmem:[%s165 + $0x48] sm:$0xff]
      %v2188 = vld [vmem:[%s165 + $0x50] sm:$0xff]
      %v2189 = vld [vmem:[%s165 + $0x58] sm:$0xff]
      %v2190 = vld [vmem:[%s165 + $0x60] sm:$0xff]
      %s2191 = scalar_lea.vmem %s1, 1792
      %v2192 = vld [vmem:[%s2191] sm:$0xff]
      %v2193 = vld [vmem:[%s2191 + $0x8] sm:$0xff]
      %v2194 = vld [vmem:[%s2191 + $0x10] sm:$0xff]
      %v2195 = vld [vmem:[%s2191 + $0x18] sm:$0xff]
      %v2196 = vld [vmem:[%s2191 + $0x20] sm:$0xff]
      %v2197 = vld [vmem:[%s2191 + $0x28] sm:$0xff]
      %v2198 = vld [vmem:[%s2191 + $0x30] sm:$0xff]
      %v2199 = vld [vmem:[%s2191 + $0x38] sm:$0xff]
      %v2200 = vld [vmem:[%s2191 + $0x40] sm:$0xff]
      %v2201 = vld [vmem:[%s2191 + $0x48] sm:$0xff]
      %v2202 = vld [vmem:[%s2191 + $0x50] sm:$0xff]
      %v2203 = vld [vmem:[%s2191 + $0x58] sm:$0xff]
      %v2204 = vld [vmem:[%s2191 + $0x60] sm:$0xff]
      %v2205 = vld [vmem:[%s2191 + $0x68] sm:$0xff]
      %v2206 = vld [vmem:[%s2191 + $0x70] sm:$0xff]
      %v2207 = vld [vmem:[%s2191 + $0x78] sm:$0xff]
      %2208 = vmatprep.subr.mxu0 0.0
      %2209 = vmatpush1.msra.mxu0 %v2192
      %2210 = vmatprep.subr.mxu0 0.0
      %2211 = vmatpush1.msra.mxu0 %v2193
      %2212 = vmatprep.subr.mxu0 0.0
      %2213 = vmatpush1.msra.mxu0 %v2194
      %2214 = vmatprep.subr.mxu0 0.0
      %2215 = vmatpush1.msra.mxu0 %v2195
      %2216 = vmatprep.subr.mxu0 0.0
      %2217 = vmatpush1.msra.mxu0 %v2196
      %2218 = vmatprep.subr.mxu0 0.0
      %2219 = vmatpush1.msra.mxu0 %v2197
      %2220 = vmatprep.subr.mxu0 0.0
      %2221 = vmatpush1.msra.mxu0 %v2198
      %2222 = vmatprep.subr.mxu0 0.0
      %2223 = vmatpush1.msra.mxu0 %v2199
      %2224 = vmatprep.subr.mxu0 0.0
      %2225 = vmatpush1.msra.mxu0 %v2200
      %2226 = vmatprep.subr.mxu0 0.0
      %2227 = vmatpush1.msra.mxu0 %v2201
      %2228 = vmatprep.subr.mxu0 0.0
      %2229 = vmatpush1.msra.mxu0 %v2202
      %2230 = vmatprep.subr.mxu0 0.0
      %2231 = vmatpush1.msra.mxu0 %v2203
      %2232 = vmatprep.subr.mxu0 0.0
      %2233 = vmatpush1.msra.mxu0 %v2204
      %2234 = vmatprep.subr.mxu0 0.0
      %2235 = vmatpush1.msra.mxu0 %v2205
      %2236 = vmatprep.subr.mxu0 0.0
      %2237 = vmatpush1.msra.mxu0 %v2206
      %2238 = vmatprep.subr.mxu0 0.0
      %2239 = vmatpush1.msra.mxu0 %v2207
      %2240 = vmatprep.subr.mxu0 0.0
      %2241 = vmatpush1.msra.mxu0 0.0
      %2242 = vmatprep.subr.mxu0 0.0
      %2243 = vmatpush1.msra.mxu0 0.0
      %2244 = vmatprep.subr.mxu0 0.0
      %2245 = vmatpush1.msra.mxu0 0.0
      %2246 = vmatprep.subr.mxu0 0.0
      %2247 = vmatpush1.msra.mxu0 0.0
      %2248 = vmatprep.subr.mxu0 0.0
      %2249 = vmatpush1.msra.mxu0 0.0
      %2250 = vmatprep.subr.mxu0 0.0
      %2251 = vmatpush1.msra.mxu0 0.0
      %2252 = vmatprep.subr.mxu0 0.0
      %2253 = vmatpush1.msra.mxu0 0.0
      %2254 = vmatprep.subr.mxu0 0.0
      %2255 = vmatpush1.msra.mxu0 0.0
      %2256 = vmatprep.subr.mxu0 0.0
      %2257 = vmatpush1.msra.mxu0 0.0
      %2258 = vmatprep.subr.mxu0 0.0
      %2259 = vmatpush1.msra.mxu0 0.0
      %2260 = vmatprep.subr.mxu0 0.0
      %2261 = vmatpush1.msra.mxu0 0.0
      %2262 = vmatprep.subr.mxu0 0.0
      %2263 = vmatpush1.msra.mxu0 0.0
      %2264 = vmatprep.subr.mxu0 0.0
      %2265 = vmatpush1.msra.mxu0 0.0
      %2266 = vmatprep.subr.mxu0 0.0
      %2267 = vmatpush1.msra.mxu0 0.0
      %2268 = vmatprep.subr.mxu0 0.0
      %2269 = vmatpush1.msra.mxu0 0.0
      %2270 = vmatprep.subr.mxu0 0.0
      %2271 = vmatpush1.msra.mxu0 0.0
      %2272 = vmatprep.mubr.f32.mxu0 0.0
      %2273 = vmatmul.mubr.f32.gmra.mrb[0].mxu0 %v2182
      %v2274 = vpop.f32.mrb[0].mxu0
      %v2275 = vadd.f32 0.0, %v2274
      %v2276 = vpop.f32.mrb[0].mxu0
      %2277 = vmatprep.mubr.f32.mxu0 0.0
      %2278 = vmatmul.mubr.f32.gmra.mrb[0].mxu0 %v2183
      %v2279 = vpop.f32.mrb[0].mxu0
      %v2280 = vadd.f32 0.0, %v2279
      %v2281 = vpop.f32.mrb[0].mxu0
      %2282 = vmatprep.mubr.f32.mxu0 0.0
      %2283 = vmatmul.mubr.f32.gmra.mrb[0].mxu0 %v2184
      %v2284 = vpop.f32.mrb[0].mxu0
      %v2285 = vadd.f32 0.0, %v2284
      %v2286 = vpop.f32.mrb[0].mxu0
      %2287 = vmatprep.mubr.f32.mxu0 0.0
      %2288 = vmatmul.mubr.f32.gmra.mrb[0].mxu0 %v2185
      %v2289 = vpop.f32.mrb[0].mxu0
      %v2290 = vadd.f32 0.0, %v2289
      %v2291 = vpop.f32.mrb[0].mxu0
      %2292 = vmatprep.mubr.f32.mxu0 0.0
      %2293 = vmatmul.mubr.f32.gmra.mrb[0].mxu0 %v2186
      %v2294 = vpop.f32.mrb[0].mxu0
      %v2295 = vadd.f32 0.0, %v2294
      %v2296 = vpop.f32.mrb[0].mxu0
      %2297 = vmatprep.mubr.f32.mxu0 0.0
      %2298 = vmatmul.mubr.f32.gmra.mrb[0].mxu0 %v2187
      %v2299 = vpop.f32.mrb[0].mxu0
      %v2300 = vadd.f32 0.0, %v2299
      %v2301 = vpop.f32.mrb[0].mxu0
      %2302 = vmatprep.mubr.f32.mxu0 0.0
      %2303 = vmatmul.mubr.f32.gmra.mrb[0].mxu0 %v2188
      %v2304 = vpop.f32.mrb[0].mxu0
      %v2305 = vadd.f32 0.0, %v2304
      %v2306 = vpop.f32.mrb[0].mxu0
      %2307 = vmatprep.mubr.f32.mxu0 0.0
      %2308 = vmatmul.mubr.f32.gmra.mrb[0].mxu0 %v2189
      %v2309 = vpop.f32.mrb[0].mxu0
      %v2310 = vadd.f32 0.0, %v2309
      %v2311 = vpop.f32.mrb[0].mxu0
      %2312 = vmatprep.mubr.f32.mxu0 0.0
      %2313 = vmatmul.mubr.f32.gmra.mrb[0].mxu0 %v2190
      %v2314 = vpop.f32.mrb[0].mxu0
      %v2315 = vadd.f32 0.0, %v2314
      %v2316 = vpop.f32.mrb[0].mxu0
      %2317 = vdwg.mxu0
      %v2318 = vadd.f32 %v2173, %v2275
      %v2319 = vadd.f32 %v2174, %v2280
      %v2320 = vadd.f32 %v2175, %v2285
      %v2321 = vadd.f32 %v2176, %v2290
      %v2322 = vadd.f32 %v2177, %v2295
      %v2323 = vadd.f32 %v2178, %v2300
      %v2324 = vadd.f32 %v2179, %v2305
      %v2325 = vadd.f32 %v2180, %v2310
      %v2326 = vadd.f32 %v2181, %v2315
      %v2327 = vld [vmem:[%s165 + $0x21] sm:$0xff]
      %v2328 = vld [vmem:[%s165 + $0x29] sm:$0xff]
      %v2329 = vld [vmem:[%s165 + $0x31] sm:$0xff]
      %v2330 = vld [vmem:[%s165 + $0x39] sm:$0xff]
      %v2331 = vld [vmem:[%s165 + $0x41] sm:$0xff]
      %v2332 = vld [vmem:[%s165 + $0x49] sm:$0xff]
      %v2333 = vld [vmem:[%s165 + $0x51] sm:$0xff]
      %v2334 = vld [vmem:[%s165 + $0x59] sm:$0xff]
      %v2335 = vld [vmem:[%s165 + $0x61] sm:$0xff]
      %s2336 = scalar_lea.vmem %s1, 1920
      %v2337 = vld [vmem:[%s2336] sm:$0xff]
      %v2338 = vld [vmem:[%s2336 + $0x8] sm:$0xff]
      %v2339 = vld [vmem:[%s2336 + $0x10] sm:$0xff]
      %v2340 = vld [vmem:[%s2336 + $0x18] sm:$0xff]
      %v2341 = vld [vmem:[%s2336 + $0x20] sm:$0xff]
      %v2342 = vld [vmem:[%s2336 + $0x28] sm:$0xff]
      %v2343 = vld [vmem:[%s2336 + $0x30] sm:$0xff]
      %v2344 = vld [vmem:[%s2336 + $0x38] sm:$0xff]
      %v2345 = vld [vmem:[%s2336 + $0x40] sm:$0xff]
      %v2346 = vld [vmem:[%s2336 + $0x48] sm:$0xff]
      %v2347 = vld [vmem:[%s2336 + $0x50] sm:$0xff]
      %v2348 = vld [vmem:[%s2336 + $0x58] sm:$0xff]
      %v2349 = vld [vmem:[%s2336 + $0x60] sm:$0xff]
      %v2350 = vld [vmem:[%s2336 + $0x68] sm:$0xff]
      %v2351 = vld [vmem:[%s2336 + $0x70] sm:$0xff]
      %v2352 = vld [vmem:[%s2336 + $0x78] sm:$0xff]
      %2353 = vmatprep.subr.mxu0 0.0
      %2354 = vmatpush1.msra.mxu0 %v2337
      %2355 = vmatprep.subr.mxu0 0.0
      %2356 = vmatpush1.msra.mxu0 %v2338
      %2357 = vmatprep.subr.mxu0 0.0
      %2358 = vmatpush1.msra.mxu0 %v2339
      %2359 = vmatprep.subr.mxu0 0.0
      %2360 = vmatpush1.msra.mxu0 %v2340
      %2361 = vmatprep.subr.mxu0 0.0
      %2362 = vmatpush1.msra.mxu0 %v2341
      %2363 = vmatprep.subr.mxu0 0.0
      %2364 = vmatpush1.msra.mxu0 %v2342
      %2365 = vmatprep.subr.mxu0 0.0
      %2366 = vmatpush1.msra.mxu0 %v2343
      %2367 = vmatprep.subr.mxu0 0.0
      %2368 = vmatpush1.msra.mxu0 %v2344
      %2369 = vmatprep.subr.mxu0 0.0
      %2370 = vmatpush1.msra.mxu0 %v2345
      %2371 = vmatprep.subr.mxu0 0.0
      %2372 = vmatpush1.msra.mxu0 %v2346
      %2373 = vmatprep.subr.mxu0 0.0
      %2374 = vmatpush1.msra.mxu0 %v2347
      %2375 = vmatprep.subr.mxu0 0.0
      %2376 = vmatpush1.msra.mxu0 %v2348
      %2377 = vmatprep.subr.mxu0 0.0
      %2378 = vmatpush1.msra.mxu0 %v2349
      %2379 = vmatprep.subr.mxu0 0.0
      %2380 = vmatpush1.msra.mxu0 %v2350
      %2381 = vmatprep.subr.mxu0 0.0
      %2382 = vmatpush1.msra.mxu0 %v2351
      %2383 = vmatprep.subr.mxu0 0.0
      %2384 = vmatpush1.msra.mxu0 %v2352
      %2385 = vmatprep.subr.mxu0 0.0
      %2386 = vmatpush1.msra.mxu0 0.0
      %2387 = vmatprep.subr.mxu0 0.0
      %2388 = vmatpush1.msra.mxu0 0.0
      %2389 = vmatprep.subr.mxu0 0.0
      %2390 = vmatpush1.msra.mxu0 0.0
      %2391 = vmatprep.subr.mxu0 0.0
      %2392 = vmatpush1.msra.mxu0 0.0
      %2393 = vmatprep.subr.mxu0 0.0
      %2394 = vmatpush1.msra.mxu0 0.0
      %2395 = vmatprep.subr.mxu0 0.0
      %2396 = vmatpush1.msra.mxu0 0.0
      %2397 = vmatprep.subr.mxu0 0.0
      %2398 = vmatpush1.msra.mxu0 0.0
      %2399 = vmatprep.subr.mxu0 0.0
      %2400 = vmatpush1.msra.mxu0 0.0
      %2401 = vmatprep.subr.mxu0 0.0
      %2402 = vmatpush1.msra.mxu0 0.0
      %2403 = vmatprep.subr.mxu0 0.0
      %2404 = vmatpush1.msra.mxu0 0.0
      %2405 = vmatprep.subr.mxu0 0.0
      %2406 = vmatpush1.msra.mxu0 0.0
      %2407 = vmatprep.subr.mxu0 0.0
      %2408 = vmatpush1.msra.mxu0 0.0
      %2409 = vmatprep.subr.mxu0 0.0
      %2410 = vmatpush1.msra.mxu0 0.0
      %2411 = vmatprep.subr.mxu0 0.0
      %2412 = vmatpush1.msra.mxu0 0.0
      %2413 = vmatprep.subr.mxu0 0.0
      %2414 = vmatpush1.msra.mxu0 0.0
      %2415 = vmatprep.subr.mxu0 0.0
      %2416 = vmatpush1.msra.mxu0 0.0
      %2417 = vmatprep.mubr.f32.mxu0 0.0
      %2418 = vmatmul.mubr.f32.gmra.mrb[0].mxu0 %v2327
      %v2419 = vpop.f32.mrb[0].mxu0
      %v2420 = vadd.f32 0.0, %v2419
      %v2421 = vpop.f32.mrb[0].mxu0
      %2422 = vmatprep.mubr.f32.mxu0 0.0
      %2423 = vmatmul.mubr.f32.gmra.mrb[0].mxu0 %v2328
      %v2424 = vpop.f32.mrb[0].mxu0
      %v2425 = vadd.f32 0.0, %v2424
      %v2426 = vpop.f32.mrb[0].mxu0
      %2427 = vmatprep.mubr.f32.mxu0 0.0
      %2428 = vmatmul.mubr.f32.gmra.mrb[0].mxu0 %v2329
      %v2429 = vpop.f32.mrb[0].mxu0
      %v2430 = vadd.f32 0.0, %v2429
      %v2431 = vpop.f32.mrb[0].mxu0
      %2432 = vmatprep.mubr.f32.mxu0 0.0
      %2433 = vmatmul.mubr.f32.gmra.mrb[0].mxu0 %v2330
      %v2434 = vpop.f32.mrb[0].mxu0
      %v2435 = vadd.f32 0.0, %v2434
      %v2436 = vpop.f32.mrb[0].mxu0
      %2437 = vmatprep.mubr.f32.mxu0 0.0
      %2438 = vmatmul.mubr.f32.gmra.mrb[0].mxu0 %v2331
      %v2439 = vpop.f32.mrb[0].mxu0
      %v2440 = vadd.f32 0.0, %v2439
      %v2441 = vpop.f32.mrb[0].mxu0
      %2442 = vmatprep.mubr.f32.mxu0 0.0
      %2443 = vmatmul.mubr.f32.gmra.mrb[0].mxu0 %v2332
      %v2444 = vpop.f32.mrb[0].mxu0
      %v2445 = vadd.f32 0.0, %v2444
      %v2446 = vpop.f32.mrb[0].mxu0
      %2447 = vmatprep.mubr.f32.mxu0 0.0
      %2448 = vmatmul.mubr.f32.gmra.mrb[0].mxu0 %v2333
      %v2449 = vpop.f32.mrb[0].mxu0
      %v2450 = vadd.f32 0.0, %v2449
      %v2451 = vpop.f32.mrb[0].mxu0
      %2452 = vmatprep.mubr.f32.mxu0 0.0
      %2453 = vmatmul.mubr.f32.gmra.mrb[0].mxu0 %v2334
      %v2454 = vpop.f32.mrb[0].mxu0
      %v2455 = vadd.f32 0.0, %v2454
      %v2456 = vpop.f32.mrb[0].mxu0
      %2457 = vmatprep.mubr.f32.mxu0 0.0
      %2458 = vmatmul.mubr.f32.gmra.mrb[0].mxu0 %v2335
      %v2459 = vpop.f32.mrb[0].mxu0
      %v2460 = vadd.f32 0.0, %v2459
      %v2461 = vpop.f32.mrb[0].mxu0
      %2462 = vdwg.mxu0
      %v2463 = vadd.f32 %v2318, %v2420
      %v2464 = vadd.f32 %v2319, %v2425
      %v2465 = vadd.f32 %v2320, %v2430
      %v2466 = vadd.f32 %v2321, %v2435
      %v2467 = vadd.f32 %v2322, %v2440
      %v2468 = vadd.f32 %v2323, %v2445
      %v2469 = vadd.f32 %v2324, %v2450
      %v2470 = vadd.f32 %v2325, %v2455
      %v2471 = vadd.f32 %v2326, %v2460
      %v2472 = vld [vmem:[%s2] sm:$0x1]
      %v2474 = vlaneseq
      %v2475 = vshrl.u32 %v2474, 7
      %v2476 = vsub.s32 0, %v2475
      %v2477 = vrot.slane %v2472, %v2476
      %v2479 = vadd.f32 %v2463, %v2477
      %v2480 = vadd.f32 %v2464, %v2477
      %v2481 = vadd.f32 %v2465, %v2477
      %v2482 = vadd.f32 %v2466, %v2477
      %v2483 = vadd.f32 %v2467, %v2477
      %v2484 = vadd.f32 %v2468, %v2477
      %v2485 = vadd.f32 %v2469, %v2477
      %v2486 = vadd.f32 %v2470, %v2477
      %v2487 = vadd.f32 %v2471, %v2477
      %v2488 = vsub.f32 0.0, %v2479
      %v2489 = vsub.f32 0.0, %v2480
      %v2490 = vsub.f32 0.0, %v2481
      %v2491 = vsub.f32 0.0, %v2482
      %v2492 = vsub.f32 0.0, %v2483
      %v2493 = vsub.f32 0.0, %v2484
      %v2494 = vsub.f32 0.0, %v2485
      %v2495 = vsub.f32 0.0, %v2486
      %v2496 = vsub.f32 0.0, %v2487
      %v2497 = vmul.f32 %v2488, 1.442695
      %v2498 = vpow.pop %v2497
      %v2499 = vmul.f32 %v2489, 1.442695
      %v2500 = vpow.pop %v2499
      %v2501 = vmul.f32 %v2490, 1.442695
      %v2502 = vpow.pop %v2501
      %v2503 = vmul.f32 %v2491, 1.442695
      %v2504 = vpow.pop %v2503
      %v2505 = vmul.f32 %v2492, 1.442695
      %v2506 = vpow.pop %v2505
      %v2507 = vmul.f32 %v2493, 1.442695
      %v2508 = vpow.pop %v2507
      %v2509 = vmul.f32 %v2494, 1.442695
      %v2510 = vpow.pop %v2509
      %v2511 = vmul.f32 %v2495, 1.442695
      %v2512 = vpow.pop %v2511
      %v2513 = vmul.f32 %v2496, 1.442695
      %v2514 = vpow.pop %v2513
      %v2515 = vadd.f32 %v2498, 1.0
      %v2516 = vadd.f32 %v2500, 1.0
      %v2517 = vadd.f32 %v2502, 1.0
      %v2518 = vadd.f32 %v2504, 1.0
      %v2519 = vadd.f32 %v2506, 1.0
      %v2520 = vadd.f32 %v2508, 1.0
      %v2521 = vadd.f32 %v2510, 1.0
      %v2522 = vadd.f32 %v2512, 1.0
      %v2523 = vadd.f32 %v2514, 1.0
      %v2524 = vrcp.pop %v2515
      %v2525 = vmul.f32 1.0, %v2524
      %v2526 = vrcp.pop %v2516
      %v2527 = vmul.f32 1.0, %v2526
      %v2528 = vrcp.pop %v2517
      %v2529 = vmul.f32 1.0, %v2528
      %v2530 = vrcp.pop %v2518
      %v2531 = vmul.f32 1.0, %v2530
      %v2532 = vrcp.pop %v2519
      %v2533 = vmul.f32 1.0, %v2532
      %v2534 = vrcp.pop %v2520
      %v2535 = vmul.f32 1.0, %v2534
      %v2536 = vrcp.pop %v2521
      %v2537 = vmul.f32 1.0, %v2536
      %v2538 = vrcp.pop %v2522
      %v2539 = vmul.f32 1.0, %v2538
      %v2540 = vrcp.pop %v2523
      %v2541 = vmul.f32 1.0, %v2540
      %2542 = vst [vmem:[%s170] sm:$0xff] %v2525
      %2543 = vst [vmem:[%s170 + $0x8] sm:$0xff] %v2527
      %2544 = vst [vmem:[%s170 + $0x10] sm:$0xff] %v2529
      %2545 = vst [vmem:[%s170 + $0x18] sm:$0xff] %v2531
      %2546 = vst [vmem:[%s170 + $0x20] sm:$0xff] %v2533
      %2547 = vst [vmem:[%s170 + $0x28] sm:$0xff] %v2535
      %2548 = vst [vmem:[%s170 + $0x30] sm:$0xff] %v2537
      %2549 = vst [vmem:[%s170 + $0x38] sm:$0xff] %v2539
      %2550 = vst [vmem:[%s170 + $0x40] sm:$0xff] %v2541
      %p2551 = scmp.lt.s32.totalorder %s14, 1
      %s2552 = scalar_select %p2551, %s14, 1
      %s2553 = smul.addr %s2552, 9
      %s2554 = smul.addr %s2553, 8
      %s2555 = scalar_lea.vmem %s3, %s2554
      // Predicated region
      $region33: #{discriminator_forward.3} parent=31 // pred_check
        %p2556 = pneg %p100
      $region34: #{discriminator_forward.3} parent=31 // pred_check_branch
        %2558 = sbr.rel (%p2556) target = $region36
      $region35: #{discriminator_forward.3} parent=31 // pred_region
        _
      $region36: #{discriminator_forward.3} parent=31 // pred_fallthru
        _
    $region32: #{discriminator_forward.3} parent=5 // pred_fallthru
      _
    %p2559 = scmp.le.s32.totalorder 2, %s9
    // Predicated region
    $region37: #{discriminator_forward.3} parent=5 // pred_check
      %p2560 = pneg %p2559
    $region38: #{discriminator_forward.3} parent=5 // pred_check_branch
      %2562 = sbr.rel (%p2560) target = $region40
    $region39: #{discriminator_forward.3} parent=5 // pred_region
      %s2563 = ssub.s32 %s9, 2
      // Predicated region
      $region41: #{discriminator_forward.3} parent=39 // pred_check
        %p2564 = pneg %p106
      $region42: #{discriminator_forward.3} parent=39 // pred_check_branch
        %2566 = sbr.rel (%p2564) target = $region44
      $region43: #{discriminator_forward.3} parent=39 // pred_region
        %p2567 = scmp.lt.s32.totalorder %s15, 1
        %s2568 = scalar_select %p2567, %s15, 1
        %s2569 = smul.addr %s2568, 9
        %s2570 = smul.addr %s2569, 8
        %s2571 = scalar_lea.vmem %s3, %s2570
      $region44: #{discriminator_forward.3} parent=39 // pred_fallthru
        _
    $region40: #{discriminator_forward.3} parent=5 // pred_fallthru
      _
  $region6: #{discriminator_forward.3} parent=0 // loop_footer
    %s13 = sadd.s32 1, %s9
  $region7: #{discriminator_forward.3} parent=0 // loop_footer_branch
    %8 = sbr.rel target = $region3
  $region8: #{discriminator_forward.3} parent=0 // loop_exit
    _

</llo_original>
